<compile_context>
chip_gen: v6e
topology: v6e:2x2x1
jax: 0.10.0
libtpu: 0.0.40
codegen_flags: <defaults>
</compile_context>

<pallas_src>
import jax
import jax.numpy as jnp
from jax.experimental import pallas as pl
from jax.experimental.pallas import tpu as pltpu

D_SRELU = 0.01        # Srelu smoothing constant (from the PyTorch module)
H = 16                # hidden width (fixed by the module)
LANE = 128            # vreg lane count
CHUNK_ROWS = 8        # sublanes per inner chunk -> one (8,128) vreg per unit
CHUNK = CHUNK_ROWS * LANE   # 1024 samples per inner-loop step


def _srelu(x):
    # Piecewise ReLU: x for x>=d ; x^2/(2d) for 0<x<d ; 0 for x<=0.
    # Clamp first, then a single compare + select (one fewer VALU op).
    t = jnp.maximum(x, 0.0)
    return jnp.where(t >= D_SRELU, t, t * t * (1.0 / (2.0 * D_SRELU)))


def icnn_kernel(wz0_ref, wy1_ref, wz1p_ref, wz2p_ref, wy2_ref, z_ref, out_ref):
    """Fused ICNN forward over one batch tile (all-VPU, scalar-weight FMAs).

    wz0_ref  : SMEM (2, 16)   -- w_z0
    wy1_ref  : SMEM (2, 16)   -- w_y1
    wz1p_ref : SMEM (16, 16)  -- relu(w_z1)  (clamped in the wrapper)
    wz2p_ref : SMEM (16,)     -- relu(w_z2)
    wy2_ref  : SMEM (2,)      -- w_y2
    z_ref    : VMEM (2, TILE_ROWS, 128)  -- feature-major, lane-dense batch
    out_ref  : VMEM (TILE_ROWS, 128)
    """
    n_chunks = z_ref.shape[1] // CHUNK_ROWS

    def chunk_body(c, carry):
        r0 = pl.multiple_of(c * CHUNK_ROWS, CHUNK_ROWS)
        a0 = z_ref[0, pl.ds(r0, CHUNK_ROWS), :]          # (8, 128) full vreg
        a1 = z_ref[1, pl.ds(r0, CHUNK_ROWS), :]          # (8, 128) full vreg

        # Layer 1: z1s[h] = Srelu(z @ w_z0)[:, h]
        z1s = [_srelu(wz0_ref[0, h] * a0 + wz0_ref[1, h] * a1) for h in range(H)]

        # Layer 2: z2s[h] = Srelu(z1s @ relu(w_z1) + z @ w_y1)[:, h]
        # Two independent accumulators break the 16-deep serial add chain.
        z2s = []
        for h in range(H):
            acc0 = wy1_ref[0, h] * a0 + wy1_ref[1, h] * a1
            acc1 = wz1p_ref[0, h] * z1s[0]
            for k in range(1, H):
                t = wz1p_ref[k, h] * z1s[k]
                if k & 1:
                    acc1 = acc1 + t
                else:
                    acc0 = acc0 + t
            z2s.append(_srelu(acc0 + acc1))

        # Layer 3 (single output unit): Srelu(z2s @ relu(w_z2) + z @ w_y2)
        acc0 = wy2_ref[0] * a0 + wy2_ref[1] * a1
        acc1 = wz2p_ref[0] * z2s[0]
        for k in range(1, H):
            t = wz2p_ref[k] * z2s[k]
            if k & 1:
                acc1 = acc1 + t
            else:
                acc0 = acc0 + t
        out_ref[pl.ds(r0, CHUNK_ROWS), :] = _srelu(acc0 + acc1)
        return carry

    jax.lax.fori_loop(0, n_chunks, chunk_body, 0)


def icnn_forward(z, params, *, tile_b=32768):
    """ICNN forward. `z` is (B, 2) row-major (PyTorch layout); returns (B, 1).

    tile_b: target samples per grid step (rounded to 1024-sample chunks).
    At 32K samples/step the double-buffered VMEM footprint is ~0.75 MiB, far
    below the scoped-VMEM limit on v5e/v6e/v7x, so no vmem_limit override.
    """
    B = z.shape[0]
    n_chunks = pl.cdiv(B, CHUNK)
    tile_chunks = max(1, min(tile_b // CHUNK, n_chunks))
    # v7x megacore: keep at least two grid steps when there is enough work so
    # the "parallel" batch axis can be sharded across both TensorCores.
    if n_chunks >= 2 and tile_chunks >= n_chunks:
        tile_chunks = pl.cdiv(n_chunks, 2)
    grid_b = pl.cdiv(n_chunks, tile_chunks)
    b_padded = grid_b * tile_chunks * CHUNK
    tile_rows = tile_chunks * CHUNK_ROWS
    rows = b_padded // LANE

    # Feature-major, lane-dense input: (2, rows, 128). Padded samples are
    # zeros -> the Srelu chain yields 0 and they are sliced off at the end.
    # TODO(synk): if callers can supply z feature-major, this transpose+pad
    # HBM pass (one extra read+write of z) can be dropped entirely.
    zt = jnp.transpose(z.astype(jnp.float32))
    if b_padded != B:
        zt = jnp.pad(zt, ((0, 0), (0, b_padded - B)))
    z3d = zt.reshape(2, rows, LANE)

    # Weight preprocessing hoisted out of the per-tile hot path (runs once).
    wz0 = params["w_z0"].astype(jnp.float32)                          # (2, 16)
    wy1 = params["w_y1"].astype(jnp.float32)                          # (2, 16)
    wz1p = jnp.maximum(params["w_z1"].astype(jnp.float32), 0.0)       # (16, 16)
    wz2p = jnp.maximum(params["w_z2"].astype(jnp.float32), 0.0).reshape(H)  # (16,)
    wy2 = params["w_y2"].astype(jnp.float32).reshape(2)               # (2,)

    smem_spec = pl.BlockSpec(memory_space=pltpu.MemorySpace.SMEM)

    out2d = pl.pallas_call(
        icnn_kernel,
        out_shape=jax.ShapeDtypeStruct((rows, LANE), jnp.float32),
        grid=(grid_b,),
        in_specs=[
            smem_spec,  # wz0
            smem_spec,  # wy1
            smem_spec,  # relu(w_z1)
            smem_spec,  # relu(w_z2)
            smem_spec,  # wy2
            pl.BlockSpec((2, tile_rows, LANE), lambda i: (0, i, 0)),  # z, streamed
        ],
        out_specs=pl.BlockSpec((tile_rows, LANE), lambda i: (i, 0)),  # lane-dense
        compiler_params=pltpu.CompilerParams(
            dimension_semantics=("parallel",),   # megacore sharding on v7x
        ),
    )(wz0, wy1, wz1p, wz2p, wy2, z3d)

    # Back to the module's (B, 1) row-major output.
    return out2d.reshape(-1)[:B].reshape(B, 1)


def init_params(key):
    """Deterministic stand-in for torch.randn parameter init."""
    k1, k2, k3, k4, k5 = jax.random.split(key, 5)
    return {
        "w_y1": jax.random.normal(k1, (2, 16), jnp.float32),
        "w_y2": jax.random.normal(k2, (2, 1), jnp.float32),
        "w_z0": jax.random.normal(k3, (2, 16), jnp.float32),
        "w_z1": jax.random.normal(k4, (16, 16), jnp.float32),
        "w_z2": jax.random.normal(k5, (16, 1), jnp.float32),
    }


def icnn_reference(z, p):
    """Pure-JAX reference for verification (matches the PyTorch module)."""
    z1s = _srelu(z @ p["w_z0"])
    z2s = _srelu(z1s @ jnp.maximum(p["w_z1"], 0.0) + z @ p["w_y1"])
    return _srelu(z2s @ jnp.maximum(p["w_z2"], 0.0) + z @ p["w_y2"])


if __name__ == "__main__":
    key = jax.random.PRNGKey(0)
    kp, kx = jax.random.split(key)
    params = init_params(kp)

    # Small demo: B is deliberately NOT a multiple of the 1024-sample chunk
    # (exercises the padding path) and large enough for a 2-step grid
    # (exercises megacore splitting + the multi-chunk inner loop).
    B = 3000
    z = jax.random.normal(kx, (B, 2), jnp.float32)

    fwd = jax.jit(lambda zz: icnn_forward(zz, params))
    out = jax.block_until_ready(fwd(z))

    ref = icnn_reference(z, params)
    assert out.shape == (B, 1), out.shape
    assert jnp.allclose(out, ref, atol=1e-5, rtol=1e-5)

    print("KERNEL_OK")
</pallas_src>

<mosaic_0001>
module attributes {stable_mosaic.version = 11 : i64} {
  func.func @icnn_kernel(%arg0: i32, %arg1: memref<2x16xf32, #tpu.memory_space<smem>>, %arg2: memref<2x16xf32, #tpu.memory_space<smem>>, %arg3: memref<16x16xf32, #tpu.memory_space<smem>>, %arg4: memref<16xf32, #tpu.memory_space<smem>>, %arg5: memref<2xf32, #tpu.memory_space<smem>>, %arg6: memref<2x16x128xf32, #tpu.memory_space<vmem>>, %arg7: memref<16x128xf32, #tpu.memory_space<vmem>>) attributes {dimension_semantics = [#tpu.dimension_semantics<parallel>], iteration_bounds = array<i64: 2>, scalar_prefetch = 0 : i64, scratch_operands = 0 : i64, tpu.core_type = #tpu.core_type<tc>, window_params = [{transform_indices = @transform_0, window_bounds = array<i64: 2, 16>}, {transform_indices = @transform_1, window_bounds = array<i64: 2, 16>}, {transform_indices = @transform_2, window_bounds = array<i64: 16, 16>}, {transform_indices = @transform_3, window_bounds = array<i64: 16>}, {transform_indices = @transform_4, window_bounds = array<i64: 2>}, {transform_indices = @transform_5, window_bounds = array<i64: 2, 16, 128>}, {transform_indices = @transform_6, window_bounds = array<i64: 16, 128>}]} {
    %c0_i32 = arith.constant 0 : i32
    %c2_i32 = arith.constant 2 : i32
    %0 = arith.addi %c0_i32, %c2_i32 : i32
    %c1_i32 = arith.constant 1 : i32
    scf.for %arg8 = %c0_i32 to %0 step %c1_i32  : i32 {
      %c8_i32 = arith.constant 8 : i32
      %1 = arith.muli %arg8, %c8_i32 : i32
      %2 = tpu.assume_multiple %1, 8 : i32
      %c0 = arith.constant 0 : index
      %3 = arith.index_cast %2 : i32 to index
      %c0_1 = arith.constant 0 : index
      %4 = vector.load %arg6[%c0, %3, %c0_1] : memref<2x16x128xf32, #tpu.memory_space<vmem>>, vector<1x8x128xf32>
      %5 = vector.shape_cast %4 : vector<1x8x128xf32> to vector<8x128xf32>
      %c1 = arith.constant 1 : index
      %6 = arith.index_cast %2 : i32 to index
      %c0_2 = arith.constant 0 : index
      %7 = vector.load %arg6[%c1, %6, %c0_2] : memref<2x16x128xf32, #tpu.memory_space<vmem>>, vector<1x8x128xf32>
      %8 = vector.shape_cast %7 : vector<1x8x128xf32> to vector<8x128xf32>
      %c0_3 = arith.constant 0 : index
      %c0_4 = arith.constant 0 : index
      %9 = memref.load %arg1[%c0_3, %c0_4] : memref<2x16xf32, #tpu.memory_space<smem>>
      %10 = vector.broadcast %9 : f32 to vector<8x128xf32>
      %11 = arith.mulf %10, %5 : vector<8x128xf32>
      %c1_5 = arith.constant 1 : index
      %c0_6 = arith.constant 0 : index
      %12 = memref.load %arg1[%c1_5, %c0_6] : memref<2x16xf32, #tpu.memory_space<smem>>
      %13 = vector.broadcast %12 : f32 to vector<8x128xf32>
      %14 = arith.mulf %13, %8 : vector<8x128xf32>
      %15 = arith.addf %11, %14 : vector<8x128xf32>
      %cst = arith.constant 0.000000e+00 : f32
      %16 = vector.broadcast %cst : f32 to vector<8x128xf32>
      %17 = arith.maximumf %15, %16 : vector<8x128xf32>
      %cst_7 = arith.constant 0.00999999977 : f32
      %18 = vector.broadcast %cst_7 : f32 to vector<8x128xf32>
      %19 = arith.cmpf oge, %17, %18 : vector<8x128xf32>
      %20 = arith.mulf %17, %17 : vector<8x128xf32>
      %cst_8 = arith.constant 5.000000e+01 : f32
      %21 = vector.broadcast %cst_8 : f32 to vector<8x128xf32>
      %22 = arith.mulf %20, %21 : vector<8x128xf32>
      %23 = arith.select %19, %17, %22 : vector<8x128xi1>, vector<8x128xf32>
      %c0_9 = arith.constant 0 : index
      %c1_10 = arith.constant 1 : index
      %24 = memref.load %arg1[%c0_9, %c1_10] : memref<2x16xf32, #tpu.memory_space<smem>>
      %25 = vector.broadcast %24 : f32 to vector<8x128xf32>
      %26 = arith.mulf %25, %5 : vector<8x128xf32>
      %c1_11 = arith.constant 1 : index
      %c1_12 = arith.constant 1 : index
      %27 = memref.load %arg1[%c1_11, %c1_12] : memref<2x16xf32, #tpu.memory_space<smem>>
      %28 = vector.broadcast %27 : f32 to vector<8x128xf32>
      %29 = arith.mulf %28, %8 : vector<8x128xf32>
      %30 = arith.addf %26, %29 : vector<8x128xf32>
      %cst_13 = arith.constant 0.000000e+00 : f32
      %31 = vector.broadcast %cst_13 : f32 to vector<8x128xf32>
      %32 = arith.maximumf %30, %31 : vector<8x128xf32>
      %cst_14 = arith.constant 0.00999999977 : f32
      %33 = vector.broadcast %cst_14 : f32 to vector<8x128xf32>
      %34 = arith.cmpf oge, %32, %33 : vector<8x128xf32>
      %35 = arith.mulf %32, %32 : vector<8x128xf32>
      %cst_15 = arith.constant 5.000000e+01 : f32
      %36 = vector.broadcast %cst_15 : f32 to vector<8x128xf32>
      %37 = arith.mulf %35, %36 : vector<8x128xf32>
      %38 = arith.select %34, %32, %37 : vector<8x128xi1>, vector<8x128xf32>
      %c0_16 = arith.constant 0 : index
      %c2 = arith.constant 2 : index
      %39 = memref.load %arg1[%c0_16, %c2] : memref<2x16xf32, #tpu.memory_space<smem>>
      %40 = vector.broadcast %39 : f32 to vector<8x128xf32>
      %41 = arith.mulf %40, %5 : vector<8x128xf32>
      %c1_17 = arith.constant 1 : index
      %c2_18 = arith.constant 2 : index
      %42 = memref.load %arg1[%c1_17, %c2_18] : memref<2x16xf32, #tpu.memory_space<smem>>
      %43 = vector.broadcast %42 : f32 to vector<8x128xf32>
      %44 = arith.mulf %43, %8 : vector<8x128xf32>
      %45 = arith.addf %41, %44 : vector<8x128xf32>
      %cst_19 = arith.constant 0.000000e+00 : f32
      %46 = vector.broadcast %cst_19 : f32 to vector<8x128xf32>
      %47 = arith.maximumf %45, %46 : vector<8x128xf32>
      %cst_20 = arith.constant 0.00999999977 : f32
      %48 = vector.broadcast %cst_20 : f32 to vector<8x128xf32>
      %49 = arith.cmpf oge, %47, %48 : vector<8x128xf32>
      %50 = arith.mulf %47, %47 : vector<8x128xf32>
      %cst_21 = arith.constant 5.000000e+01 : f32
      %51 = vector.broadcast %cst_21 : f32 to vector<8x128xf32>
      %52 = arith.mulf %50, %51 : vector<8x128xf32>
      %53 = arith.select %49, %47, %52 : vector<8x128xi1>, vector<8x128xf32>
      %c0_22 = arith.constant 0 : index
      %c3 = arith.constant 3 : index
      %54 = memref.load %arg1[%c0_22, %c3] : memref<2x16xf32, #tpu.memory_space<smem>>
      %55 = vector.broadcast %54 : f32 to vector<8x128xf32>
      %56 = arith.mulf %55, %5 : vector<8x128xf32>
      %c1_23 = arith.constant 1 : index
      %c3_24 = arith.constant 3 : index
      %57 = memref.load %arg1[%c1_23, %c3_24] : memref<2x16xf32, #tpu.memory_space<smem>>
      %58 = vector.broadcast %57 : f32 to vector<8x128xf32>
      %59 = arith.mulf %58, %8 : vector<8x128xf32>
      %60 = arith.addf %56, %59 : vector<8x128xf32>
      %cst_25 = arith.constant 0.000000e+00 : f32
      %61 = vector.broadcast %cst_25 : f32 to vector<8x128xf32>
      %62 = arith.maximumf %60, %61 : vector<8x128xf32>
      %cst_26 = arith.constant 0.00999999977 : f32
      %63 = vector.broadcast %cst_26 : f32 to vector<8x128xf32>
      %64 = arith.cmpf oge, %62, %63 : vector<8x128xf32>
      %65 = arith.mulf %62, %62 : vector<8x128xf32>
      %cst_27 = arith.constant 5.000000e+01 : f32
      %66 = vector.broadcast %cst_27 : f32 to vector<8x128xf32>
      %67 = arith.mulf %65, %66 : vector<8x128xf32>
      %68 = arith.select %64, %62, %67 : vector<8x128xi1>, vector<8x128xf32>
      %c0_28 = arith.constant 0 : index
      %c4 = arith.constant 4 : index
      %69 = memref.load %arg1[%c0_28, %c4] : memref<2x16xf32, #tpu.memory_space<smem>>
      %70 = vector.broadcast %69 : f32 to vector<8x128xf32>
      %71 = arith.mulf %70, %5 : vector<8x128xf32>
      %c1_29 = arith.constant 1 : index
      %c4_30 = arith.constant 4 : index
      %72 = memref.load %arg1[%c1_29, %c4_30] : memref<2x16xf32, #tpu.memory_space<smem>>
      %73 = vector.broadcast %72 : f32 to vector<8x128xf32>
      %74 = arith.mulf %73, %8 : vector<8x128xf32>
      %75 = arith.addf %71, %74 : vector<8x128xf32>
      %cst_31 = arith.constant 0.000000e+00 : f32
      %76 = vector.broadcast %cst_31 : f32 to vector<8x128xf32>
      %77 = arith.maximumf %75, %76 : vector<8x128xf32>
      %cst_32 = arith.constant 0.00999999977 : f32
      %78 = vector.broadcast %cst_32 : f32 to vector<8x128xf32>
      %79 = arith.cmpf oge, %77, %78 : vector<8x128xf32>
      %80 = arith.mulf %77, %77 : vector<8x128xf32>
      %cst_33 = arith.constant 5.000000e+01 : f32
      %81 = vector.broadcast %cst_33 : f32 to vector<8x128xf32>
      %82 = arith.mulf %80, %81 : vector<8x128xf32>
      %83 = arith.select %79, %77, %82 : vector<8x128xi1>, vector<8x128xf32>
      %c0_34 = arith.constant 0 : index
      %c5 = arith.constant 5 : index
      %84 = memref.load %arg1[%c0_34, %c5] : memref<2x16xf32, #tpu.memory_space<smem>>
      %85 = vector.broadcast %84 : f32 to vector<8x128xf32>
      %86 = arith.mulf %85, %5 : vector<8x128xf32>
      %c1_35 = arith.constant 1 : index
      %c5_36 = arith.constant 5 : index
      %87 = memref.load %arg1[%c1_35, %c5_36] : memref<2x16xf32, #tpu.memory_space<smem>>
      %88 = vector.broadcast %87 : f32 to vector<8x128xf32>
      %89 = arith.mulf %88, %8 : vector<8x128xf32>
      %90 = arith.addf %86, %89 : vector<8x128xf32>
      %cst_37 = arith.constant 0.000000e+00 : f32
      %91 = vector.broadcast %cst_37 : f32 to vector<8x128xf32>
      %92 = arith.maximumf %90, %91 : vector<8x128xf32>
      %cst_38 = arith.constant 0.00999999977 : f32
      %93 = vector.broadcast %cst_38 : f32 to vector<8x128xf32>
      %94 = arith.cmpf oge, %92, %93 : vector<8x128xf32>
      %95 = arith.mulf %92, %92 : vector<8x128xf32>
      %cst_39 = arith.constant 5.000000e+01 : f32
      %96 = vector.broadcast %cst_39 : f32 to vector<8x128xf32>
      %97 = arith.mulf %95, %96 : vector<8x128xf32>
      %98 = arith.select %94, %92, %97 : vector<8x128xi1>, vector<8x128xf32>
      %c0_40 = arith.constant 0 : index
      %c6 = arith.constant 6 : index
      %99 = memref.load %arg1[%c0_40, %c6] : memref<2x16xf32, #tpu.memory_space<smem>>
      %100 = vector.broadcast %99 : f32 to vector<8x128xf32>
      %101 = arith.mulf %100, %5 : vector<8x128xf32>
      %c1_41 = arith.constant 1 : index
      %c6_42 = arith.constant 6 : index
      %102 = memref.load %arg1[%c1_41, %c6_42] : memref<2x16xf32, #tpu.memory_space<smem>>
      %103 = vector.broadcast %102 : f32 to vector<8x128xf32>
      %104 = arith.mulf %103, %8 : vector<8x128xf32>
      %105 = arith.addf %101, %104 : vector<8x128xf32>
      %cst_43 = arith.constant 0.000000e+00 : f32
      %106 = vector.broadcast %cst_43 : f32 to vector<8x128xf32>
      %107 = arith.maximumf %105, %106 : vector<8x128xf32>
      %cst_44 = arith.constant 0.00999999977 : f32
      %108 = vector.broadcast %cst_44 : f32 to vector<8x128xf32>
      %109 = arith.cmpf oge, %107, %108 : vector<8x128xf32>
      %110 = arith.mulf %107, %107 : vector<8x128xf32>
      %cst_45 = arith.constant 5.000000e+01 : f32
      %111 = vector.broadcast %cst_45 : f32 to vector<8x128xf32>
      %112 = arith.mulf %110, %111 : vector<8x128xf32>
      %113 = arith.select %109, %107, %112 : vector<8x128xi1>, vector<8x128xf32>
      %c0_46 = arith.constant 0 : index
      %c7 = arith.constant 7 : index
      %114 = memref.load %arg1[%c0_46, %c7] : memref<2x16xf32, #tpu.memory_space<smem>>
      %115 = vector.broadcast %114 : f32 to vector<8x128xf32>
      %116 = arith.mulf %115, %5 : vector<8x128xf32>
      %c1_47 = arith.constant 1 : index
      %c7_48 = arith.constant 7 : index
      %117 = memref.load %arg1[%c1_47, %c7_48] : memref<2x16xf32, #tpu.memory_space<smem>>
      %118 = vector.broadcast %117 : f32 to vector<8x128xf32>
      %119 = arith.mulf %118, %8 : vector<8x128xf32>
      %120 = arith.addf %116, %119 : vector<8x128xf32>
      %cst_49 = arith.constant 0.000000e+00 : f32
      %121 = vector.broadcast %cst_49 : f32 to vector<8x128xf32>
      %122 = arith.maximumf %120, %121 : vector<8x128xf32>
      %cst_50 = arith.constant 0.00999999977 : f32
      %123 = vector.broadcast %cst_50 : f32 to vector<8x128xf32>
      %124 = arith.cmpf oge, %122, %123 : vector<8x128xf32>
      %125 = arith.mulf %122, %122 : vector<8x128xf32>
      %cst_51 = arith.constant 5.000000e+01 : f32
      %126 = vector.broadcast %cst_51 : f32 to vector<8x128xf32>
      %127 = arith.mulf %125, %126 : vector<8x128xf32>
      %128 = arith.select %124, %122, %127 : vector<8x128xi1>, vector<8x128xf32>
      %c0_52 = arith.constant 0 : index
      %c8 = arith.constant 8 : index
      %129 = memref.load %arg1[%c0_52, %c8] : memref<2x16xf32, #tpu.memory_space<smem>>
      %130 = vector.broadcast %129 : f32 to vector<8x128xf32>
      %131 = arith.mulf %130, %5 : vector<8x128xf32>
      %c1_53 = arith.constant 1 : index
      %c8_54 = arith.constant 8 : index
      %132 = memref.load %arg1[%c1_53, %c8_54] : memref<2x16xf32, #tpu.memory_space<smem>>
      %133 = vector.broadcast %132 : f32 to vector<8x128xf32>
      %134 = arith.mulf %133, %8 : vector<8x128xf32>
      %135 = arith.addf %131, %134 : vector<8x128xf32>
      %cst_55 = arith.constant 0.000000e+00 : f32
      %136 = vector.broadcast %cst_55 : f32 to vector<8x128xf32>
      %137 = arith.maximumf %135, %136 : vector<8x128xf32>
      %cst_56 = arith.constant 0.00999999977 : f32
      %138 = vector.broadcast %cst_56 : f32 to vector<8x128xf32>
      %139 = arith.cmpf oge, %137, %138 : vector<8x128xf32>
      %140 = arith.mulf %137, %137 : vector<8x128xf32>
      %cst_57 = arith.constant 5.000000e+01 : f32
      %141 = vector.broadcast %cst_57 : f32 to vector<8x128xf32>
      %142 = arith.mulf %140, %141 : vector<8x128xf32>
      %143 = arith.select %139, %137, %142 : vector<8x128xi1>, vector<8x128xf32>
      %c0_58 = arith.constant 0 : index
      %c9 = arith.constant 9 : index
      %144 = memref.load %arg1[%c0_58, %c9] : memref<2x16xf32, #tpu.memory_space<smem>>
      %145 = vector.broadcast %144 : f32 to vector<8x128xf32>
      %146 = arith.mulf %145, %5 : vector<8x128xf32>
      %c1_59 = arith.constant 1 : index
      %c9_60 = arith.constant 9 : index
      %147 = memref.load %arg1[%c1_59, %c9_60] : memref<2x16xf32, #tpu.memory_space<smem>>
      %148 = vector.broadcast %147 : f32 to vector<8x128xf32>
      %149 = arith.mulf %148, %8 : vector<8x128xf32>
      %150 = arith.addf %146, %149 : vector<8x128xf32>
      %cst_61 = arith.constant 0.000000e+00 : f32
      %151 = vector.broadcast %cst_61 : f32 to vector<8x128xf32>
      %152 = arith.maximumf %150, %151 : vector<8x128xf32>
      %cst_62 = arith.constant 0.00999999977 : f32
      %153 = vector.broadcast %cst_62 : f32 to vector<8x128xf32>
      %154 = arith.cmpf oge, %152, %153 : vector<8x128xf32>
      %155 = arith.mulf %152, %152 : vector<8x128xf32>
      %cst_63 = arith.constant 5.000000e+01 : f32
      %156 = vector.broadcast %cst_63 : f32 to vector<8x128xf32>
      %157 = arith.mulf %155, %156 : vector<8x128xf32>
      %158 = arith.select %154, %152, %157 : vector<8x128xi1>, vector<8x128xf32>
      %c0_64 = arith.constant 0 : index
      %c10 = arith.constant 10 : index
      %159 = memref.load %arg1[%c0_64, %c10] : memref<2x16xf32, #tpu.memory_space<smem>>
      %160 = vector.broadcast %159 : f32 to vector<8x128xf32>
      %161 = arith.mulf %160, %5 : vector<8x128xf32>
      %c1_65 = arith.constant 1 : index
      %c10_66 = arith.constant 10 : index
      %162 = memref.load %arg1[%c1_65, %c10_66] : memref<2x16xf32, #tpu.memory_space<smem>>
      %163 = vector.broadcast %162 : f32 to vector<8x128xf32>
      %164 = arith.mulf %163, %8 : vector<8x128xf32>
      %165 = arith.addf %161, %164 : vector<8x128xf32>
      %cst_67 = arith.constant 0.000000e+00 : f32
      %166 = vector.broadcast %cst_67 : f32 to vector<8x128xf32>
      %167 = arith.maximumf %165, %166 : vector<8x128xf32>
      %cst_68 = arith.constant 0.00999999977 : f32
      %168 = vector.broadcast %cst_68 : f32 to vector<8x128xf32>
      %169 = arith.cmpf oge, %167, %168 : vector<8x128xf32>
      %170 = arith.mulf %167, %167 : vector<8x128xf32>
      %cst_69 = arith.constant 5.000000e+01 : f32
      %171 = vector.broadcast %cst_69 : f32 to vector<8x128xf32>
      %172 = arith.mulf %170, %171 : vector<8x128xf32>
      %173 = arith.select %169, %167, %172 : vector<8x128xi1>, vector<8x128xf32>
      %c0_70 = arith.constant 0 : index
      %c11 = arith.constant 11 : index
      %174 = memref.load %arg1[%c0_70, %c11] : memref<2x16xf32, #tpu.memory_space<smem>>
      %175 = vector.broadcast %174 : f32 to vector<8x128xf32>
      %176 = arith.mulf %175, %5 : vector<8x128xf32>
      %c1_71 = arith.constant 1 : index
      %c11_72 = arith.constant 11 : index
      %177 = memref.load %arg1[%c1_71, %c11_72] : memref<2x16xf32, #tpu.memory_space<smem>>
      %178 = vector.broadcast %177 : f32 to vector<8x128xf32>
      %179 = arith.mulf %178, %8 : vector<8x128xf32>
      %180 = arith.addf %176, %179 : vector<8x128xf32>
      %cst_73 = arith.constant 0.000000e+00 : f32
      %181 = vector.broadcast %cst_73 : f32 to vector<8x128xf32>
      %182 = arith.maximumf %180, %181 : vector<8x128xf32>
      %cst_74 = arith.constant 0.00999999977 : f32
      %183 = vector.broadcast %cst_74 : f32 to vector<8x128xf32>
      %184 = arith.cmpf oge, %182, %183 : vector<8x128xf32>
      %185 = arith.mulf %182, %182 : vector<8x128xf32>
      %cst_75 = arith.constant 5.000000e+01 : f32
      %186 = vector.broadcast %cst_75 : f32 to vector<8x128xf32>
      %187 = arith.mulf %185, %186 : vector<8x128xf32>
      %188 = arith.select %184, %182, %187 : vector<8x128xi1>, vector<8x128xf32>
      %c0_76 = arith.constant 0 : index
      %c12 = arith.constant 12 : index
      %189 = memref.load %arg1[%c0_76, %c12] : memref<2x16xf32, #tpu.memory_space<smem>>
      %190 = vector.broadcast %189 : f32 to vector<8x128xf32>
      %191 = arith.mulf %190, %5 : vector<8x128xf32>
      %c1_77 = arith.constant 1 : index
      %c12_78 = arith.constant 12 : index
      %192 = memref.load %arg1[%c1_77, %c12_78] : memref<2x16xf32, #tpu.memory_space<smem>>
      %193 = vector.broadcast %192 : f32 to vector<8x128xf32>
      %194 = arith.mulf %193, %8 : vector<8x128xf32>
      %195 = arith.addf %191, %194 : vector<8x128xf32>
      %cst_79 = arith.constant 0.000000e+00 : f32
      %196 = vector.broadcast %cst_79 : f32 to vector<8x128xf32>
      %197 = arith.maximumf %195, %196 : vector<8x128xf32>
      %cst_80 = arith.constant 0.00999999977 : f32
      %198 = vector.broadcast %cst_80 : f32 to vector<8x128xf32>
      %199 = arith.cmpf oge, %197, %198 : vector<8x128xf32>
      %200 = arith.mulf %197, %197 : vector<8x128xf32>
      %cst_81 = arith.constant 5.000000e+01 : f32
      %201 = vector.broadcast %cst_81 : f32 to vector<8x128xf32>
      %202 = arith.mulf %200, %201 : vector<8x128xf32>
      %203 = arith.select %199, %197, %202 : vector<8x128xi1>, vector<8x128xf32>
      %c0_82 = arith.constant 0 : index
      %c13 = arith.constant 13 : index
      %204 = memref.load %arg1[%c0_82, %c13] : memref<2x16xf32, #tpu.memory_space<smem>>
      %205 = vector.broadcast %204 : f32 to vector<8x128xf32>
      %206 = arith.mulf %205, %5 : vector<8x128xf32>
      %c1_83 = arith.constant 1 : index
      %c13_84 = arith.constant 13 : index
      %207 = memref.load %arg1[%c1_83, %c13_84] : memref<2x16xf32, #tpu.memory_space<smem>>
      %208 = vector.broadcast %207 : f32 to vector<8x128xf32>
      %209 = arith.mulf %208, %8 : vector<8x128xf32>
      %210 = arith.addf %206, %209 : vector<8x128xf32>
      %cst_85 = arith.constant 0.000000e+00 : f32
      %211 = vector.broadcast %cst_85 : f32 to vector<8x128xf32>
      %212 = arith.maximumf %210, %211 : vector<8x128xf32>
      %cst_86 = arith.constant 0.00999999977 : f32
      %213 = vector.broadcast %cst_86 : f32 to vector<8x128xf32>
      %214 = arith.cmpf oge, %212, %213 : vector<8x128xf32>
      %215 = arith.mulf %212, %212 : vector<8x128xf32>
      %cst_87 = arith.constant 5.000000e+01 : f32
      %216 = vector.broadcast %cst_87 : f32 to vector<8x128xf32>
      %217 = arith.mulf %215, %216 : vector<8x128xf32>
      %218 = arith.select %214, %212, %217 : vector<8x128xi1>, vector<8x128xf32>
      %c0_88 = arith.constant 0 : index
      %c14 = arith.constant 14 : index
      %219 = memref.load %arg1[%c0_88, %c14] : memref<2x16xf32, #tpu.memory_space<smem>>
      %220 = vector.broadcast %219 : f32 to vector<8x128xf32>
      %221 = arith.mulf %220, %5 : vector<8x128xf32>
      %c1_89 = arith.constant 1 : index
      %c14_90 = arith.constant 14 : index
      %222 = memref.load %arg1[%c1_89, %c14_90] : memref<2x16xf32, #tpu.memory_space<smem>>
      %223 = vector.broadcast %222 : f32 to vector<8x128xf32>
      %224 = arith.mulf %223, %8 : vector<8x128xf32>
      %225 = arith.addf %221, %224 : vector<8x128xf32>
      %cst_91 = arith.constant 0.000000e+00 : f32
      %226 = vector.broadcast %cst_91 : f32 to vector<8x128xf32>
      %227 = arith.maximumf %225, %226 : vector<8x128xf32>
      %cst_92 = arith.constant 0.00999999977 : f32
      %228 = vector.broadcast %cst_92 : f32 to vector<8x128xf32>
      %229 = arith.cmpf oge, %227, %228 : vector<8x128xf32>
      %230 = arith.mulf %227, %227 : vector<8x128xf32>
      %cst_93 = arith.constant 5.000000e+01 : f32
      %231 = vector.broadcast %cst_93 : f32 to vector<8x128xf32>
      %232 = arith.mulf %230, %231 : vector<8x128xf32>
      %233 = arith.select %229, %227, %232 : vector<8x128xi1>, vector<8x128xf32>
      %c0_94 = arith.constant 0 : index
      %c15 = arith.constant 15 : index
      %234 = memref.load %arg1[%c0_94, %c15] : memref<2x16xf32, #tpu.memory_space<smem>>
      %235 = vector.broadcast %234 : f32 to vector<8x128xf32>
      %236 = arith.mulf %235, %5 : vector<8x128xf32>
      %c1_95 = arith.constant 1 : index
      %c15_96 = arith.constant 15 : index
      %237 = memref.load %arg1[%c1_95, %c15_96] : memref<2x16xf32, #tpu.memory_space<smem>>
      %238 = vector.broadcast %237 : f32 to vector<8x128xf32>
      %239 = arith.mulf %238, %8 : vector<8x128xf32>
      %240 = arith.addf %236, %239 : vector<8x128xf32>
      %cst_97 = arith.constant 0.000000e+00 : f32
      %241 = vector.broadcast %cst_97 : f32 to vector<8x128xf32>
      %242 = arith.maximumf %240, %241 : vector<8x128xf32>
      %cst_98 = arith.constant 0.00999999977 : f32
      %243 = vector.broadcast %cst_98 : f32 to vector<8x128xf32>
      %244 = arith.cmpf oge, %242, %243 : vector<8x128xf32>
      %245 = arith.mulf %242, %242 : vector<8x128xf32>
      %cst_99 = arith.constant 5.000000e+01 : f32
      %246 = vector.broadcast %cst_99 : f32 to vector<8x128xf32>
      %247 = arith.mulf %245, %246 : vector<8x128xf32>
      %248 = arith.select %244, %242, %247 : vector<8x128xi1>, vector<8x128xf32>
      %c0_100 = arith.constant 0 : index
      %c0_101 = arith.constant 0 : index
      %249 = memref.load %arg2[%c0_100, %c0_101] : memref<2x16xf32, #tpu.memory_space<smem>>
      %250 = vector.broadcast %249 : f32 to vector<8x128xf32>
      %251 = arith.mulf %250, %5 : vector<8x128xf32>
      %c1_102 = arith.constant 1 : index
      %c0_103 = arith.constant 0 : index
      %252 = memref.load %arg2[%c1_102, %c0_103] : memref<2x16xf32, #tpu.memory_space<smem>>
      %253 = vector.broadcast %252 : f32 to vector<8x128xf32>
      %254 = arith.mulf %253, %8 : vector<8x128xf32>
      %255 = arith.addf %251, %254 : vector<8x128xf32>
      %c0_104 = arith.constant 0 : index
      %c0_105 = arith.constant 0 : index
      %256 = memref.load %arg3[%c0_104, %c0_105] : memref<16x16xf32, #tpu.memory_space<smem>>
      %257 = vector.broadcast %256 : f32 to vector<8x128xf32>
      %258 = arith.mulf %257, %23 : vector<8x128xf32>
      %c1_106 = arith.constant 1 : index
      %c0_107 = arith.constant 0 : index
      %259 = memref.load %arg3[%c1_106, %c0_107] : memref<16x16xf32, #tpu.memory_space<smem>>
      %260 = vector.broadcast %259 : f32 to vector<8x128xf32>
      %261 = arith.mulf %260, %38 : vector<8x128xf32>
      %262 = arith.addf %258, %261 : vector<8x128xf32>
      %c2_108 = arith.constant 2 : index
      %c0_109 = arith.constant 0 : index
      %263 = memref.load %arg3[%c2_108, %c0_109] : memref<16x16xf32, #tpu.memory_space<smem>>
      %264 = vector.broadcast %263 : f32 to vector<8x128xf32>
      %265 = arith.mulf %264, %53 : vector<8x128xf32>
      %266 = arith.addf %255, %265 : vector<8x128xf32>
      %c3_110 = arith.constant 3 : index
      %c0_111 = arith.constant 0 : index
      %267 = memref.load %arg3[%c3_110, %c0_111] : memref<16x16xf32, #tpu.memory_space<smem>>
      %268 = vector.broadcast %267 : f32 to vector<8x128xf32>
      %269 = arith.mulf %268, %68 : vector<8x128xf32>
      %270 = arith.addf %262, %269 : vector<8x128xf32>
      %c4_112 = arith.constant 4 : index
      %c0_113 = arith.constant 0 : index
      %271 = memref.load %arg3[%c4_112, %c0_113] : memref<16x16xf32, #tpu.memory_space<smem>>
      %272 = vector.broadcast %271 : f32 to vector<8x128xf32>
      %273 = arith.mulf %272, %83 : vector<8x128xf32>
      %274 = arith.addf %266, %273 : vector<8x128xf32>
      %c5_114 = arith.constant 5 : index
      %c0_115 = arith.constant 0 : index
      %275 = memref.load %arg3[%c5_114, %c0_115] : memref<16x16xf32, #tpu.memory_space<smem>>
      %276 = vector.broadcast %275 : f32 to vector<8x128xf32>
      %277 = arith.mulf %276, %98 : vector<8x128xf32>
      %278 = arith.addf %270, %277 : vector<8x128xf32>
      %c6_116 = arith.constant 6 : index
      %c0_117 = arith.constant 0 : index
      %279 = memref.load %arg3[%c6_116, %c0_117] : memref<16x16xf32, #tpu.memory_space<smem>>
      %280 = vector.broadcast %279 : f32 to vector<8x128xf32>
      %281 = arith.mulf %280, %113 : vector<8x128xf32>
      %282 = arith.addf %274, %281 : vector<8x128xf32>
      %c7_118 = arith.constant 7 : index
      %c0_119 = arith.constant 0 : index
      %283 = memref.load %arg3[%c7_118, %c0_119] : memref<16x16xf32, #tpu.memory_space<smem>>
      %284 = vector.broadcast %283 : f32 to vector<8x128xf32>
      %285 = arith.mulf %284, %128 : vector<8x128xf32>
      %286 = arith.addf %278, %285 : vector<8x128xf32>
      %c8_120 = arith.constant 8 : index
      %c0_121 = arith.constant 0 : index
      %287 = memref.load %arg3[%c8_120, %c0_121] : memref<16x16xf32, #tpu.memory_space<smem>>
      %288 = vector.broadcast %287 : f32 to vector<8x128xf32>
      %289 = arith.mulf %288, %143 : vector<8x128xf32>
      %290 = arith.addf %282, %289 : vector<8x128xf32>
      %c9_122 = arith.constant 9 : index
      %c0_123 = arith.constant 0 : index
      %291 = memref.load %arg3[%c9_122, %c0_123] : memref<16x16xf32, #tpu.memory_space<smem>>
      %292 = vector.broadcast %291 : f32 to vector<8x128xf32>
      %293 = arith.mulf %292, %158 : vector<8x128xf32>
      %294 = arith.addf %286, %293 : vector<8x128xf32>
      %c10_124 = arith.constant 10 : index
      %c0_125 = arith.constant 0 : index
      %295 = memref.load %arg3[%c10_124, %c0_125] : memref<16x16xf32, #tpu.memory_space<smem>>
      %296 = vector.broadcast %295 : f32 to vector<8x128xf32>
      %297 = arith.mulf %296, %173 : vector<8x128xf32>
      %298 = arith.addf %290, %297 : vector<8x128xf32>
      %c11_126 = arith.constant 11 : index
      %c0_127 = arith.constant 0 : index
      %299 = memref.load %arg3[%c11_126, %c0_127] : memref<16x16xf32, #tpu.memory_space<smem>>
      %300 = vector.broadcast %299 : f32 to vector<8x128xf32>
      %301 = arith.mulf %300, %188 : vector<8x128xf32>
      %302 = arith.addf %294, %301 : vector<8x128xf32>
      %c12_128 = arith.constant 12 : index
      %c0_129 = arith.constant 0 : index
      %303 = memref.load %arg3[%c12_128, %c0_129] : memref<16x16xf32, #tpu.memory_space<smem>>
      %304 = vector.broadcast %303 : f32 to vector<8x128xf32>
      %305 = arith.mulf %304, %203 : vector<8x128xf32>
      %306 = arith.addf %298, %305 : vector<8x128xf32>
      %c13_130 = arith.constant 13 : index
      %c0_131 = arith.constant 0 : index
      %307 = memref.load %arg3[%c13_130, %c0_131] : memref<16x16xf32, #tpu.memory_space<smem>>
      %308 = vector.broadcast %307 : f32 to vector<8x128xf32>
      %309 = arith.mulf %308, %218 : vector<8x128xf32>
      %310 = arith.addf %302, %309 : vector<8x128xf32>
      %c14_132 = arith.constant 14 : index
      %c0_133 = arith.constant 0 : index
      %311 = memref.load %arg3[%c14_132, %c0_133] : memref<16x16xf32, #tpu.memory_space<smem>>
      %312 = vector.broadcast %311 : f32 to vector<8x128xf32>
      %313 = arith.mulf %312, %233 : vector<8x128xf32>
      %314 = arith.addf %306, %313 : vector<8x128xf32>
      %c15_134 = arith.constant 15 : index
      %c0_135 = arith.constant 0 : index
      %315 = memref.load %arg3[%c15_134, %c0_135] : memref<16x16xf32, #tpu.memory_space<smem>>
      %316 = vector.broadcast %315 : f32 to vector<8x128xf32>
      %317 = arith.mulf %316, %248 : vector<8x128xf32>
      %318 = arith.addf %310, %317 : vector<8x128xf32>
      %319 = arith.addf %314, %318 : vector<8x128xf32>
      %cst_136 = arith.constant 0.000000e+00 : f32
      %320 = vector.broadcast %cst_136 : f32 to vector<8x128xf32>
      %321 = arith.maximumf %319, %320 : vector<8x128xf32>
      %cst_137 = arith.constant 0.00999999977 : f32
      %322 = vector.broadcast %cst_137 : f32 to vector<8x128xf32>
      %323 = arith.cmpf oge, %321, %322 : vector<8x128xf32>
      %324 = arith.mulf %321, %321 : vector<8x128xf32>
      %cst_138 = arith.constant 5.000000e+01 : f32
      %325 = vector.broadcast %cst_138 : f32 to vector<8x128xf32>
      %326 = arith.mulf %324, %325 : vector<8x128xf32>
      %327 = arith.select %323, %321, %326 : vector<8x128xi1>, vector<8x128xf32>
      %c0_139 = arith.constant 0 : index
      %c1_140 = arith.constant 1 : index
      %328 = memref.load %arg2[%c0_139, %c1_140] : memref<2x16xf32, #tpu.memory_space<smem>>
      %329 = vector.broadcast %328 : f32 to vector<8x128xf32>
      %330 = arith.mulf %329, %5 : vector<8x128xf32>
      %c1_141 = arith.constant 1 : index
      %c1_142 = arith.constant 1 : index
      %331 = memref.load %arg2[%c1_141, %c1_142] : memref<2x16xf32, #tpu.memory_space<smem>>
      %332 = vector.broadcast %331 : f32 to vector<8x128xf32>
      %333 = arith.mulf %332, %8 : vector<8x128xf32>
      %334 = arith.addf %330, %333 : vector<8x128xf32>
      %c0_143 = arith.constant 0 : index
      %c1_144 = arith.constant 1 : index
      %335 = memref.load %arg3[%c0_143, %c1_144] : memref<16x16xf32, #tpu.memory_space<smem>>
      %336 = vector.broadcast %335 : f32 to vector<8x128xf32>
      %337 = arith.mulf %336, %23 : vector<8x128xf32>
      %c1_145 = arith.constant 1 : index
      %c1_146 = arith.constant 1 : index
      %338 = memref.load %arg3[%c1_145, %c1_146] : memref<16x16xf32, #tpu.memory_space<smem>>
      %339 = vector.broadcast %338 : f32 to vector<8x128xf32>
      %340 = arith.mulf %339, %38 : vector<8x128xf32>
      %341 = arith.addf %337, %340 : vector<8x128xf32>
      %c2_147 = arith.constant 2 : index
      %c1_148 = arith.constant 1 : index
      %342 = memref.load %arg3[%c2_147, %c1_148] : memref<16x16xf32, #tpu.memory_space<smem>>
      %343 = vector.broadcast %342 : f32 to vector<8x128xf32>
      %344 = arith.mulf %343, %53 : vector<8x128xf32>
      %345 = arith.addf %334, %344 : vector<8x128xf32>
      %c3_149 = arith.constant 3 : index
      %c1_150 = arith.constant 1 : index
      %346 = memref.load %arg3[%c3_149, %c1_150] : memref<16x16xf32, #tpu.memory_space<smem>>
      %347 = vector.broadcast %346 : f32 to vector<8x128xf32>
      %348 = arith.mulf %347, %68 : vector<8x128xf32>
      %349 = arith.addf %341, %348 : vector<8x128xf32>
      %c4_151 = arith.constant 4 : index
      %c1_152 = arith.constant 1 : index
      %350 = memref.load %arg3[%c4_151, %c1_152] : memref<16x16xf32, #tpu.memory_space<smem>>
      %351 = vector.broadcast %350 : f32 to vector<8x128xf32>
      %352 = arith.mulf %351, %83 : vector<8x128xf32>
      %353 = arith.addf %345, %352 : vector<8x128xf32>
      %c5_153 = arith.constant 5 : index
      %c1_154 = arith.constant 1 : index
      %354 = memref.load %arg3[%c5_153, %c1_154] : memref<16x16xf32, #tpu.memory_space<smem>>
      %355 = vector.broadcast %354 : f32 to vector<8x128xf32>
      %356 = arith.mulf %355, %98 : vector<8x128xf32>
      %357 = arith.addf %349, %356 : vector<8x128xf32>
      %c6_155 = arith.constant 6 : index
      %c1_156 = arith.constant 1 : index
      %358 = memref.load %arg3[%c6_155, %c1_156] : memref<16x16xf32, #tpu.memory_space<smem>>
      %359 = vector.broadcast %358 : f32 to vector<8x128xf32>
      %360 = arith.mulf %359, %113 : vector<8x128xf32>
      %361 = arith.addf %353, %360 : vector<8x128xf32>
      %c7_157 = arith.constant 7 : index
      %c1_158 = arith.constant 1 : index
      %362 = memref.load %arg3[%c7_157, %c1_158] : memref<16x16xf32, #tpu.memory_space<smem>>
      %363 = vector.broadcast %362 : f32 to vector<8x128xf32>
      %364 = arith.mulf %363, %128 : vector<8x128xf32>
      %365 = arith.addf %357, %364 : vector<8x128xf32>
      %c8_159 = arith.constant 8 : index
      %c1_160 = arith.constant 1 : index
      %366 = memref.load %arg3[%c8_159, %c1_160] : memref<16x16xf32, #tpu.memory_space<smem>>
      %367 = vector.broadcast %366 : f32 to vector<8x128xf32>
      %368 = arith.mulf %367, %143 : vector<8x128xf32>
      %369 = arith.addf %361, %368 : vector<8x128xf32>
      %c9_161 = arith.constant 9 : index
      %c1_162 = arith.constant 1 : index
      %370 = memref.load %arg3[%c9_161, %c1_162] : memref<16x16xf32, #tpu.memory_space<smem>>
      %371 = vector.broadcast %370 : f32 to vector<8x128xf32>
      %372 = arith.mulf %371, %158 : vector<8x128xf32>
      %373 = arith.addf %365, %372 : vector<8x128xf32>
      %c10_163 = arith.constant 10 : index
      %c1_164 = arith.constant 1 : index
      %374 = memref.load %arg3[%c10_163, %c1_164] : memref<16x16xf32, #tpu.memory_space<smem>>
      %375 = vector.broadcast %374 : f32 to vector<8x128xf32>
      %376 = arith.mulf %375, %173 : vector<8x128xf32>
      %377 = arith.addf %369, %376 : vector<8x128xf32>
      %c11_165 = arith.constant 11 : index
      %c1_166 = arith.constant 1 : index
      %378 = memref.load %arg3[%c11_165, %c1_166] : memref<16x16xf32, #tpu.memory_space<smem>>
      %379 = vector.broadcast %378 : f32 to vector<8x128xf32>
      %380 = arith.mulf %379, %188 : vector<8x128xf32>
      %381 = arith.addf %373, %380 : vector<8x128xf32>
      %c12_167 = arith.constant 12 : index
      %c1_168 = arith.constant 1 : index
      %382 = memref.load %arg3[%c12_167, %c1_168] : memref<16x16xf32, #tpu.memory_space<smem>>
      %383 = vector.broadcast %382 : f32 to vector<8x128xf32>
      %384 = arith.mulf %383, %203 : vector<8x128xf32>
      %385 = arith.addf %377, %384 : vector<8x128xf32>
      %c13_169 = arith.constant 13 : index
      %c1_170 = arith.constant 1 : index
      %386 = memref.load %arg3[%c13_169, %c1_170] : memref<16x16xf32, #tpu.memory_space<smem>>
      %387 = vector.broadcast %386 : f32 to vector<8x128xf32>
      %388 = arith.mulf %387, %218 : vector<8x128xf32>
      %389 = arith.addf %381, %388 : vector<8x128xf32>
      %c14_171 = arith.constant 14 : index
      %c1_172 = arith.constant 1 : index
      %390 = memref.load %arg3[%c14_171, %c1_172] : memref<16x16xf32, #tpu.memory_space<smem>>
      %391 = vector.broadcast %390 : f32 to vector<8x128xf32>
      %392 = arith.mulf %391, %233 : vector<8x128xf32>
      %393 = arith.addf %385, %392 : vector<8x128xf32>
      %c15_173 = arith.constant 15 : index
      %c1_174 = arith.constant 1 : index
      %394 = memref.load %arg3[%c15_173, %c1_174] : memref<16x16xf32, #tpu.memory_space<smem>>
      %395 = vector.broadcast %394 : f32 to vector<8x128xf32>
      %396 = arith.mulf %395, %248 : vector<8x128xf32>
      %397 = arith.addf %389, %396 : vector<8x128xf32>
      %398 = arith.addf %393, %397 : vector<8x128xf32>
      %cst_175 = arith.constant 0.000000e+00 : f32
      %399 = vector.broadcast %cst_175 : f32 to vector<8x128xf32>
      %400 = arith.maximumf %398, %399 : vector<8x128xf32>
      %cst_176 = arith.constant 0.00999999977 : f32
      %401 = vector.broadcast %cst_176 : f32 to vector<8x128xf32>
      %402 = arith.cmpf oge, %400, %401 : vector<8x128xf32>
      %403 = arith.mulf %400, %400 : vector<8x128xf32>
      %cst_177 = arith.constant 5.000000e+01 : f32
      %404 = vector.broadcast %cst_177 : f32 to vector<8x128xf32>
      %405 = arith.mulf %403, %404 : vector<8x128xf32>
      %406 = arith.select %402, %400, %405 : vector<8x128xi1>, vector<8x128xf32>
      %c0_178 = arith.constant 0 : index
      %c2_179 = arith.constant 2 : index
      %407 = memref.load %arg2[%c0_178, %c2_179] : memref<2x16xf32, #tpu.memory_space<smem>>
      %408 = vector.broadcast %407 : f32 to vector<8x128xf32>
      %409 = arith.mulf %408, %5 : vector<8x128xf32>
      %c1_180 = arith.constant 1 : index
      %c2_181 = arith.constant 2 : index
      %410 = memref.load %arg2[%c1_180, %c2_181] : memref<2x16xf32, #tpu.memory_space<smem>>
      %411 = vector.broadcast %410 : f32 to vector<8x128xf32>
      %412 = arith.mulf %411, %8 : vector<8x128xf32>
      %413 = arith.addf %409, %412 : vector<8x128xf32>
      %c0_182 = arith.constant 0 : index
      %c2_183 = arith.constant 2 : index
      %414 = memref.load %arg3[%c0_182, %c2_183] : memref<16x16xf32, #tpu.memory_space<smem>>
      %415 = vector.broadcast %414 : f32 to vector<8x128xf32>
      %416 = arith.mulf %415, %23 : vector<8x128xf32>
      %c1_184 = arith.constant 1 : index
      %c2_185 = arith.constant 2 : index
      %417 = memref.load %arg3[%c1_184, %c2_185] : memref<16x16xf32, #tpu.memory_space<smem>>
      %418 = vector.broadcast %417 : f32 to vector<8x128xf32>
      %419 = arith.mulf %418, %38 : vector<8x128xf32>
      %420 = arith.addf %416, %419 : vector<8x128xf32>
      %c2_186 = arith.constant 2 : index
      %c2_187 = arith.constant 2 : index
      %421 = memref.load %arg3[%c2_186, %c2_187] : memref<16x16xf32, #tpu.memory_space<smem>>
      %422 = vector.broadcast %421 : f32 to vector<8x128xf32>
      %423 = arith.mulf %422, %53 : vector<8x128xf32>
      %424 = arith.addf %413, %423 : vector<8x128xf32>
      %c3_188 = arith.constant 3 : index
      %c2_189 = arith.constant 2 : index
      %425 = memref.load %arg3[%c3_188, %c2_189] : memref<16x16xf32, #tpu.memory_space<smem>>
      %426 = vector.broadcast %425 : f32 to vector<8x128xf32>
      %427 = arith.mulf %426, %68 : vector<8x128xf32>
      %428 = arith.addf %420, %427 : vector<8x128xf32>
      %c4_190 = arith.constant 4 : index
      %c2_191 = arith.constant 2 : index
      %429 = memref.load %arg3[%c4_190, %c2_191] : memref<16x16xf32, #tpu.memory_space<smem>>
      %430 = vector.broadcast %429 : f32 to vector<8x128xf32>
      %431 = arith.mulf %430, %83 : vector<8x128xf32>
      %432 = arith.addf %424, %431 : vector<8x128xf32>
      %c5_192 = arith.constant 5 : index
      %c2_193 = arith.constant 2 : index
      %433 = memref.load %arg3[%c5_192, %c2_193] : memref<16x16xf32, #tpu.memory_space<smem>>
      %434 = vector.broadcast %433 : f32 to vector<8x128xf32>
      %435 = arith.mulf %434, %98 : vector<8x128xf32>
      %436 = arith.addf %428, %435 : vector<8x128xf32>
      %c6_194 = arith.constant 6 : index
      %c2_195 = arith.constant 2 : index
      %437 = memref.load %arg3[%c6_194, %c2_195] : memref<16x16xf32, #tpu.memory_space<smem>>
      %438 = vector.broadcast %437 : f32 to vector<8x128xf32>
      %439 = arith.mulf %438, %113 : vector<8x128xf32>
      %440 = arith.addf %432, %439 : vector<8x128xf32>
      %c7_196 = arith.constant 7 : index
      %c2_197 = arith.constant 2 : index
      %441 = memref.load %arg3[%c7_196, %c2_197] : memref<16x16xf32, #tpu.memory_space<smem>>
      %442 = vector.broadcast %441 : f32 to vector<8x128xf32>
      %443 = arith.mulf %442, %128 : vector<8x128xf32>
      %444 = arith.addf %436, %443 : vector<8x128xf32>
      %c8_198 = arith.constant 8 : index
      %c2_199 = arith.constant 2 : index
      %445 = memref.load %arg3[%c8_198, %c2_199] : memref<16x16xf32, #tpu.memory_space<smem>>
      %446 = vector.broadcast %445 : f32 to vector<8x128xf32>
      %447 = arith.mulf %446, %143 : vector<8x128xf32>
      %448 = arith.addf %440, %447 : vector<8x128xf32>
      %c9_200 = arith.constant 9 : index
      %c2_201 = arith.constant 2 : index
      %449 = memref.load %arg3[%c9_200, %c2_201] : memref<16x16xf32, #tpu.memory_space<smem>>
      %450 = vector.broadcast %449 : f32 to vector<8x128xf32>
      %451 = arith.mulf %450, %158 : vector<8x128xf32>
      %452 = arith.addf %444, %451 : vector<8x128xf32>
      %c10_202 = arith.constant 10 : index
      %c2_203 = arith.constant 2 : index
      %453 = memref.load %arg3[%c10_202, %c2_203] : memref<16x16xf32, #tpu.memory_space<smem>>
      %454 = vector.broadcast %453 : f32 to vector<8x128xf32>
      %455 = arith.mulf %454, %173 : vector<8x128xf32>
      %456 = arith.addf %448, %455 : vector<8x128xf32>
      %c11_204 = arith.constant 11 : index
      %c2_205 = arith.constant 2 : index
      %457 = memref.load %arg3[%c11_204, %c2_205] : memref<16x16xf32, #tpu.memory_space<smem>>
      %458 = vector.broadcast %457 : f32 to vector<8x128xf32>
      %459 = arith.mulf %458, %188 : vector<8x128xf32>
      %460 = arith.addf %452, %459 : vector<8x128xf32>
      %c12_206 = arith.constant 12 : index
      %c2_207 = arith.constant 2 : index
      %461 = memref.load %arg3[%c12_206, %c2_207] : memref<16x16xf32, #tpu.memory_space<smem>>
      %462 = vector.broadcast %461 : f32 to vector<8x128xf32>
      %463 = arith.mulf %462, %203 : vector<8x128xf32>
      %464 = arith.addf %456, %463 : vector<8x128xf32>
      %c13_208 = arith.constant 13 : index
      %c2_209 = arith.constant 2 : index
      %465 = memref.load %arg3[%c13_208, %c2_209] : memref<16x16xf32, #tpu.memory_space<smem>>
      %466 = vector.broadcast %465 : f32 to vector<8x128xf32>
      %467 = arith.mulf %466, %218 : vector<8x128xf32>
      %468 = arith.addf %460, %467 : vector<8x128xf32>
      %c14_210 = arith.constant 14 : index
      %c2_211 = arith.constant 2 : index
      %469 = memref.load %arg3[%c14_210, %c2_211] : memref<16x16xf32, #tpu.memory_space<smem>>
      %470 = vector.broadcast %469 : f32 to vector<8x128xf32>
      %471 = arith.mulf %470, %233 : vector<8x128xf32>
      %472 = arith.addf %464, %471 : vector<8x128xf32>
      %c15_212 = arith.constant 15 : index
      %c2_213 = arith.constant 2 : index
      %473 = memref.load %arg3[%c15_212, %c2_213] : memref<16x16xf32, #tpu.memory_space<smem>>
      %474 = vector.broadcast %473 : f32 to vector<8x128xf32>
      %475 = arith.mulf %474, %248 : vector<8x128xf32>
      %476 = arith.addf %468, %475 : vector<8x128xf32>
      %477 = arith.addf %472, %476 : vector<8x128xf32>
      %cst_214 = arith.constant 0.000000e+00 : f32
      %478 = vector.broadcast %cst_214 : f32 to vector<8x128xf32>
      %479 = arith.maximumf %477, %478 : vector<8x128xf32>
      %cst_215 = arith.constant 0.00999999977 : f32
      %480 = vector.broadcast %cst_215 : f32 to vector<8x128xf32>
      %481 = arith.cmpf oge, %479, %480 : vector<8x128xf32>
      %482 = arith.mulf %479, %479 : vector<8x128xf32>
      %cst_216 = arith.constant 5.000000e+01 : f32
      %483 = vector.broadcast %cst_216 : f32 to vector<8x128xf32>
      %484 = arith.mulf %482, %483 : vector<8x128xf32>
      %485 = arith.select %481, %479, %484 : vector<8x128xi1>, vector<8x128xf32>
      %c0_217 = arith.constant 0 : index
      %c3_218 = arith.constant 3 : index
      %486 = memref.load %arg2[%c0_217, %c3_218] : memref<2x16xf32, #tpu.memory_space<smem>>
      %487 = vector.broadcast %486 : f32 to vector<8x128xf32>
      %488 = arith.mulf %487, %5 : vector<8x128xf32>
      %c1_219 = arith.constant 1 : index
      %c3_220 = arith.constant 3 : index
      %489 = memref.load %arg2[%c1_219, %c3_220] : memref<2x16xf32, #tpu.memory_space<smem>>
      %490 = vector.broadcast %489 : f32 to vector<8x128xf32>
      %491 = arith.mulf %490, %8 : vector<8x128xf32>
      %492 = arith.addf %488, %491 : vector<8x128xf32>
      %c0_221 = arith.constant 0 : index
      %c3_222 = arith.constant 3 : index
      %493 = memref.load %arg3[%c0_221, %c3_222] : memref<16x16xf32, #tpu.memory_space<smem>>
      %494 = vector.broadcast %493 : f32 to vector<8x128xf32>
      %495 = arith.mulf %494, %23 : vector<8x128xf32>
      %c1_223 = arith.constant 1 : index
      %c3_224 = arith.constant 3 : index
      %496 = memref.load %arg3[%c1_223, %c3_224] : memref<16x16xf32, #tpu.memory_space<smem>>
      %497 = vector.broadcast %496 : f32 to vector<8x128xf32>
      %498 = arith.mulf %497, %38 : vector<8x128xf32>
      %499 = arith.addf %495, %498 : vector<8x128xf32>
      %c2_225 = arith.constant 2 : index
      %c3_226 = arith.constant 3 : index
      %500 = memref.load %arg3[%c2_225, %c3_226] : memref<16x16xf32, #tpu.memory_space<smem>>
      %501 = vector.broadcast %500 : f32 to vector<8x128xf32>
      %502 = arith.mulf %501, %53 : vector<8x128xf32>
      %503 = arith.addf %492, %502 : vector<8x128xf32>
      %c3_227 = arith.constant 3 : index
      %c3_228 = arith.constant 3 : index
      %504 = memref.load %arg3[%c3_227, %c3_228] : memref<16x16xf32, #tpu.memory_space<smem>>
      %505 = vector.broadcast %504 : f32 to vector<8x128xf32>
      %506 = arith.mulf %505, %68 : vector<8x128xf32>
      %507 = arith.addf %499, %506 : vector<8x128xf32>
      %c4_229 = arith.constant 4 : index
      %c3_230 = arith.constant 3 : index
      %508 = memref.load %arg3[%c4_229, %c3_230] : memref<16x16xf32, #tpu.memory_space<smem>>
      %509 = vector.broadcast %508 : f32 to vector<8x128xf32>
      %510 = arith.mulf %509, %83 : vector<8x128xf32>
      %511 = arith.addf %503, %510 : vector<8x128xf32>
      %c5_231 = arith.constant 5 : index
      %c3_232 = arith.constant 3 : index
      %512 = memref.load %arg3[%c5_231, %c3_232] : memref<16x16xf32, #tpu.memory_space<smem>>
      %513 = vector.broadcast %512 : f32 to vector<8x128xf32>
      %514 = arith.mulf %513, %98 : vector<8x128xf32>
      %515 = arith.addf %507, %514 : vector<8x128xf32>
      %c6_233 = arith.constant 6 : index
      %c3_234 = arith.constant 3 : index
      %516 = memref.load %arg3[%c6_233, %c3_234] : memref<16x16xf32, #tpu.memory_space<smem>>
      %517 = vector.broadcast %516 : f32 to vector<8x128xf32>
      %518 = arith.mulf %517, %113 : vector<8x128xf32>
      %519 = arith.addf %511, %518 : vector<8x128xf32>
      %c7_235 = arith.constant 7 : index
      %c3_236 = arith.constant 3 : index
      %520 = memref.load %arg3[%c7_235, %c3_236] : memref<16x16xf32, #tpu.memory_space<smem>>
      %521 = vector.broadcast %520 : f32 to vector<8x128xf32>
      %522 = arith.mulf %521, %128 : vector<8x128xf32>
      %523 = arith.addf %515, %522 : vector<8x128xf32>
      %c8_237 = arith.constant 8 : index
      %c3_238 = arith.constant 3 : index
      %524 = memref.load %arg3[%c8_237, %c3_238] : memref<16x16xf32, #tpu.memory_space<smem>>
      %525 = vector.broadcast %524 : f32 to vector<8x128xf32>
      %526 = arith.mulf %525, %143 : vector<8x128xf32>
      %527 = arith.addf %519, %526 : vector<8x128xf32>
      %c9_239 = arith.constant 9 : index
      %c3_240 = arith.constant 3 : index
      %528 = memref.load %arg3[%c9_239, %c3_240] : memref<16x16xf32, #tpu.memory_space<smem>>
      %529 = vector.broadcast %528 : f32 to vector<8x128xf32>
      %530 = arith.mulf %529, %158 : vector<8x128xf32>
      %531 = arith.addf %523, %530 : vector<8x128xf32>
      %c10_241 = arith.constant 10 : index
      %c3_242 = arith.constant 3 : index
      %532 = memref.load %arg3[%c10_241, %c3_242] : memref<16x16xf32, #tpu.memory_space<smem>>
      %533 = vector.broadcast %532 : f32 to vector<8x128xf32>
      %534 = arith.mulf %533, %173 : vector<8x128xf32>
      %535 = arith.addf %527, %534 : vector<8x128xf32>
      %c11_243 = arith.constant 11 : index
      %c3_244 = arith.constant 3 : index
      %536 = memref.load %arg3[%c11_243, %c3_244] : memref<16x16xf32, #tpu.memory_space<smem>>
      %537 = vector.broadcast %536 : f32 to vector<8x128xf32>
      %538 = arith.mulf %537, %188 : vector<8x128xf32>
      %539 = arith.addf %531, %538 : vector<8x128xf32>
      %c12_245 = arith.constant 12 : index
      %c3_246 = arith.constant 3 : index
      %540 = memref.load %arg3[%c12_245, %c3_246] : memref<16x16xf32, #tpu.memory_space<smem>>
      %541 = vector.broadcast %540 : f32 to vector<8x128xf32>
      %542 = arith.mulf %541, %203 : vector<8x128xf32>
      %543 = arith.addf %535, %542 : vector<8x128xf32>
      %c13_247 = arith.constant 13 : index
      %c3_248 = arith.constant 3 : index
      %544 = memref.load %arg3[%c13_247, %c3_248] : memref<16x16xf32, #tpu.memory_space<smem>>
      %545 = vector.broadcast %544 : f32 to vector<8x128xf32>
      %546 = arith.mulf %545, %218 : vector<8x128xf32>
      %547 = arith.addf %539, %546 : vector<8x128xf32>
      %c14_249 = arith.constant 14 : index
      %c3_250 = arith.constant 3 : index
      %548 = memref.load %arg3[%c14_249, %c3_250] : memref<16x16xf32, #tpu.memory_space<smem>>
      %549 = vector.broadcast %548 : f32 to vector<8x128xf32>
      %550 = arith.mulf %549, %233 : vector<8x128xf32>
      %551 = arith.addf %543, %550 : vector<8x128xf32>
      %c15_251 = arith.constant 15 : index
      %c3_252 = arith.constant 3 : index
      %552 = memref.load %arg3[%c15_251, %c3_252] : memref<16x16xf32, #tpu.memory_space<smem>>
      %553 = vector.broadcast %552 : f32 to vector<8x128xf32>
      %554 = arith.mulf %553, %248 : vector<8x128xf32>
      %555 = arith.addf %547, %554 : vector<8x128xf32>
      %556 = arith.addf %551, %555 : vector<8x128xf32>
      %cst_253 = arith.constant 0.000000e+00 : f32
      %557 = vector.broadcast %cst_253 : f32 to vector<8x128xf32>
      %558 = arith.maximumf %556, %557 : vector<8x128xf32>
      %cst_254 = arith.constant 0.00999999977 : f32
      %559 = vector.broadcast %cst_254 : f32 to vector<8x128xf32>
      %560 = arith.cmpf oge, %558, %559 : vector<8x128xf32>
      %561 = arith.mulf %558, %558 : vector<8x128xf32>
      %cst_255 = arith.constant 5.000000e+01 : f32
      %562 = vector.broadcast %cst_255 : f32 to vector<8x128xf32>
      %563 = arith.mulf %561, %562 : vector<8x128xf32>
      %564 = arith.select %560, %558, %563 : vector<8x128xi1>, vector<8x128xf32>
      %c0_256 = arith.constant 0 : index
      %c4_257 = arith.constant 4 : index
      %565 = memref.load %arg2[%c0_256, %c4_257] : memref<2x16xf32, #tpu.memory_space<smem>>
      %566 = vector.broadcast %565 : f32 to vector<8x128xf32>
      %567 = arith.mulf %566, %5 : vector<8x128xf32>
      %c1_258 = arith.constant 1 : index
      %c4_259 = arith.constant 4 : index
      %568 = memref.load %arg2[%c1_258, %c4_259] : memref<2x16xf32, #tpu.memory_space<smem>>
      %569 = vector.broadcast %568 : f32 to vector<8x128xf32>
      %570 = arith.mulf %569, %8 : vector<8x128xf32>
      %571 = arith.addf %567, %570 : vector<8x128xf32>
      %c0_260 = arith.constant 0 : index
      %c4_261 = arith.constant 4 : index
      %572 = memref.load %arg3[%c0_260, %c4_261] : memref<16x16xf32, #tpu.memory_space<smem>>
      %573 = vector.broadcast %572 : f32 to vector<8x128xf32>
      %574 = arith.mulf %573, %23 : vector<8x128xf32>
      %c1_262 = arith.constant 1 : index
      %c4_263 = arith.constant 4 : index
      %575 = memref.load %arg3[%c1_262, %c4_263] : memref<16x16xf32, #tpu.memory_space<smem>>
      %576 = vector.broadcast %575 : f32 to vector<8x128xf32>
      %577 = arith.mulf %576, %38 : vector<8x128xf32>
      %578 = arith.addf %574, %577 : vector<8x128xf32>
      %c2_264 = arith.constant 2 : index
      %c4_265 = arith.constant 4 : index
      %579 = memref.load %arg3[%c2_264, %c4_265] : memref<16x16xf32, #tpu.memory_space<smem>>
      %580 = vector.broadcast %579 : f32 to vector<8x128xf32>
      %581 = arith.mulf %580, %53 : vector<8x128xf32>
      %582 = arith.addf %571, %581 : vector<8x128xf32>
      %c3_266 = arith.constant 3 : index
      %c4_267 = arith.constant 4 : index
      %583 = memref.load %arg3[%c3_266, %c4_267] : memref<16x16xf32, #tpu.memory_space<smem>>
      %584 = vector.broadcast %583 : f32 to vector<8x128xf32>
      %585 = arith.mulf %584, %68 : vector<8x128xf32>
      %586 = arith.addf %578, %585 : vector<8x128xf32>
      %c4_268 = arith.constant 4 : index
      %c4_269 = arith.constant 4 : index
      %587 = memref.load %arg3[%c4_268, %c4_269] : memref<16x16xf32, #tpu.memory_space<smem>>
      %588 = vector.broadcast %587 : f32 to vector<8x128xf32>
      %589 = arith.mulf %588, %83 : vector<8x128xf32>
      %590 = arith.addf %582, %589 : vector<8x128xf32>
      %c5_270 = arith.constant 5 : index
      %c4_271 = arith.constant 4 : index
      %591 = memref.load %arg3[%c5_270, %c4_271] : memref<16x16xf32, #tpu.memory_space<smem>>
      %592 = vector.broadcast %591 : f32 to vector<8x128xf32>
      %593 = arith.mulf %592, %98 : vector<8x128xf32>
      %594 = arith.addf %586, %593 : vector<8x128xf32>
      %c6_272 = arith.constant 6 : index
      %c4_273 = arith.constant 4 : index
      %595 = memref.load %arg3[%c6_272, %c4_273] : memref<16x16xf32, #tpu.memory_space<smem>>
      %596 = vector.broadcast %595 : f32 to vector<8x128xf32>
      %597 = arith.mulf %596, %113 : vector<8x128xf32>
      %598 = arith.addf %590, %597 : vector<8x128xf32>
      %c7_274 = arith.constant 7 : index
      %c4_275 = arith.constant 4 : index
      %599 = memref.load %arg3[%c7_274, %c4_275] : memref<16x16xf32, #tpu.memory_space<smem>>
      %600 = vector.broadcast %599 : f32 to vector<8x128xf32>
      %601 = arith.mulf %600, %128 : vector<8x128xf32>
      %602 = arith.addf %594, %601 : vector<8x128xf32>
      %c8_276 = arith.constant 8 : index
      %c4_277 = arith.constant 4 : index
      %603 = memref.load %arg3[%c8_276, %c4_277] : memref<16x16xf32, #tpu.memory_space<smem>>
      %604 = vector.broadcast %603 : f32 to vector<8x128xf32>
      %605 = arith.mulf %604, %143 : vector<8x128xf32>
      %606 = arith.addf %598, %605 : vector<8x128xf32>
      %c9_278 = arith.constant 9 : index
      %c4_279 = arith.constant 4 : index
      %607 = memref.load %arg3[%c9_278, %c4_279] : memref<16x16xf32, #tpu.memory_space<smem>>
      %608 = vector.broadcast %607 : f32 to vector<8x128xf32>
      %609 = arith.mulf %608, %158 : vector<8x128xf32>
      %610 = arith.addf %602, %609 : vector<8x128xf32>
      %c10_280 = arith.constant 10 : index
      %c4_281 = arith.constant 4 : index
      %611 = memref.load %arg3[%c10_280, %c4_281] : memref<16x16xf32, #tpu.memory_space<smem>>
      %612 = vector.broadcast %611 : f32 to vector<8x128xf32>
      %613 = arith.mulf %612, %173 : vector<8x128xf32>
      %614 = arith.addf %606, %613 : vector<8x128xf32>
      %c11_282 = arith.constant 11 : index
      %c4_283 = arith.constant 4 : index
      %615 = memref.load %arg3[%c11_282, %c4_283] : memref<16x16xf32, #tpu.memory_space<smem>>
      %616 = vector.broadcast %615 : f32 to vector<8x128xf32>
      %617 = arith.mulf %616, %188 : vector<8x128xf32>
      %618 = arith.addf %610, %617 : vector<8x128xf32>
      %c12_284 = arith.constant 12 : index
      %c4_285 = arith.constant 4 : index
      %619 = memref.load %arg3[%c12_284, %c4_285] : memref<16x16xf32, #tpu.memory_space<smem>>
      %620 = vector.broadcast %619 : f32 to vector<8x128xf32>
      %621 = arith.mulf %620, %203 : vector<8x128xf32>
      %622 = arith.addf %614, %621 : vector<8x128xf32>
      %c13_286 = arith.constant 13 : index
      %c4_287 = arith.constant 4 : index
      %623 = memref.load %arg3[%c13_286, %c4_287] : memref<16x16xf32, #tpu.memory_space<smem>>
      %624 = vector.broadcast %623 : f32 to vector<8x128xf32>
      %625 = arith.mulf %624, %218 : vector<8x128xf32>
      %626 = arith.addf %618, %625 : vector<8x128xf32>
      %c14_288 = arith.constant 14 : index
      %c4_289 = arith.constant 4 : index
      %627 = memref.load %arg3[%c14_288, %c4_289] : memref<16x16xf32, #tpu.memory_space<smem>>
      %628 = vector.broadcast %627 : f32 to vector<8x128xf32>
      %629 = arith.mulf %628, %233 : vector<8x128xf32>
      %630 = arith.addf %622, %629 : vector<8x128xf32>
      %c15_290 = arith.constant 15 : index
      %c4_291 = arith.constant 4 : index
      %631 = memref.load %arg3[%c15_290, %c4_291] : memref<16x16xf32, #tpu.memory_space<smem>>
      %632 = vector.broadcast %631 : f32 to vector<8x128xf32>
      %633 = arith.mulf %632, %248 : vector<8x128xf32>
      %634 = arith.addf %626, %633 : vector<8x128xf32>
      %635 = arith.addf %630, %634 : vector<8x128xf32>
      %cst_292 = arith.constant 0.000000e+00 : f32
      %636 = vector.broadcast %cst_292 : f32 to vector<8x128xf32>
      %637 = arith.maximumf %635, %636 : vector<8x128xf32>
      %cst_293 = arith.constant 0.00999999977 : f32
      %638 = vector.broadcast %cst_293 : f32 to vector<8x128xf32>
      %639 = arith.cmpf oge, %637, %638 : vector<8x128xf32>
      %640 = arith.mulf %637, %637 : vector<8x128xf32>
      %cst_294 = arith.constant 5.000000e+01 : f32
      %641 = vector.broadcast %cst_294 : f32 to vector<8x128xf32>
      %642 = arith.mulf %640, %641 : vector<8x128xf32>
      %643 = arith.select %639, %637, %642 : vector<8x128xi1>, vector<8x128xf32>
      %c0_295 = arith.constant 0 : index
      %c5_296 = arith.constant 5 : index
      %644 = memref.load %arg2[%c0_295, %c5_296] : memref<2x16xf32, #tpu.memory_space<smem>>
      %645 = vector.broadcast %644 : f32 to vector<8x128xf32>
      %646 = arith.mulf %645, %5 : vector<8x128xf32>
      %c1_297 = arith.constant 1 : index
      %c5_298 = arith.constant 5 : index
      %647 = memref.load %arg2[%c1_297, %c5_298] : memref<2x16xf32, #tpu.memory_space<smem>>
      %648 = vector.broadcast %647 : f32 to vector<8x128xf32>
      %649 = arith.mulf %648, %8 : vector<8x128xf32>
      %650 = arith.addf %646, %649 : vector<8x128xf32>
      %c0_299 = arith.constant 0 : index
      %c5_300 = arith.constant 5 : index
      %651 = memref.load %arg3[%c0_299, %c5_300] : memref<16x16xf32, #tpu.memory_space<smem>>
      %652 = vector.broadcast %651 : f32 to vector<8x128xf32>
      %653 = arith.mulf %652, %23 : vector<8x128xf32>
      %c1_301 = arith.constant 1 : index
      %c5_302 = arith.constant 5 : index
      %654 = memref.load %arg3[%c1_301, %c5_302] : memref<16x16xf32, #tpu.memory_space<smem>>
      %655 = vector.broadcast %654 : f32 to vector<8x128xf32>
      %656 = arith.mulf %655, %38 : vector<8x128xf32>
      %657 = arith.addf %653, %656 : vector<8x128xf32>
      %c2_303 = arith.constant 2 : index
      %c5_304 = arith.constant 5 : index
      %658 = memref.load %arg3[%c2_303, %c5_304] : memref<16x16xf32, #tpu.memory_space<smem>>
      %659 = vector.broadcast %658 : f32 to vector<8x128xf32>
      %660 = arith.mulf %659, %53 : vector<8x128xf32>
      %661 = arith.addf %650, %660 : vector<8x128xf32>
      %c3_305 = arith.constant 3 : index
      %c5_306 = arith.constant 5 : index
      %662 = memref.load %arg3[%c3_305, %c5_306] : memref<16x16xf32, #tpu.memory_space<smem>>
      %663 = vector.broadcast %662 : f32 to vector<8x128xf32>
      %664 = arith.mulf %663, %68 : vector<8x128xf32>
      %665 = arith.addf %657, %664 : vector<8x128xf32>
      %c4_307 = arith.constant 4 : index
      %c5_308 = arith.constant 5 : index
      %666 = memref.load %arg3[%c4_307, %c5_308] : memref<16x16xf32, #tpu.memory_space<smem>>
      %667 = vector.broadcast %666 : f32 to vector<8x128xf32>
      %668 = arith.mulf %667, %83 : vector<8x128xf32>
      %669 = arith.addf %661, %668 : vector<8x128xf32>
      %c5_309 = arith.constant 5 : index
      %c5_310 = arith.constant 5 : index
      %670 = memref.load %arg3[%c5_309, %c5_310] : memref<16x16xf32, #tpu.memory_space<smem>>
      %671 = vector.broadcast %670 : f32 to vector<8x128xf32>
      %672 = arith.mulf %671, %98 : vector<8x128xf32>
      %673 = arith.addf %665, %672 : vector<8x128xf32>
      %c6_311 = arith.constant 6 : index
      %c5_312 = arith.constant 5 : index
      %674 = memref.load %arg3[%c6_311, %c5_312] : memref<16x16xf32, #tpu.memory_space<smem>>
      %675 = vector.broadcast %674 : f32 to vector<8x128xf32>
      %676 = arith.mulf %675, %113 : vector<8x128xf32>
      %677 = arith.addf %669, %676 : vector<8x128xf32>
      %c7_313 = arith.constant 7 : index
      %c5_314 = arith.constant 5 : index
      %678 = memref.load %arg3[%c7_313, %c5_314] : memref<16x16xf32, #tpu.memory_space<smem>>
      %679 = vector.broadcast %678 : f32 to vector<8x128xf32>
      %680 = arith.mulf %679, %128 : vector<8x128xf32>
      %681 = arith.addf %673, %680 : vector<8x128xf32>
      %c8_315 = arith.constant 8 : index
      %c5_316 = arith.constant 5 : index
      %682 = memref.load %arg3[%c8_315, %c5_316] : memref<16x16xf32, #tpu.memory_space<smem>>
      %683 = vector.broadcast %682 : f32 to vector<8x128xf32>
      %684 = arith.mulf %683, %143 : vector<8x128xf32>
      %685 = arith.addf %677, %684 : vector<8x128xf32>
      %c9_317 = arith.constant 9 : index
      %c5_318 = arith.constant 5 : index
      %686 = memref.load %arg3[%c9_317, %c5_318] : memref<16x16xf32, #tpu.memory_space<smem>>
      %687 = vector.broadcast %686 : f32 to vector<8x128xf32>
      %688 = arith.mulf %687, %158 : vector<8x128xf32>
      %689 = arith.addf %681, %688 : vector<8x128xf32>
      %c10_319 = arith.constant 10 : index
      %c5_320 = arith.constant 5 : index
      %690 = memref.load %arg3[%c10_319, %c5_320] : memref<16x16xf32, #tpu.memory_space<smem>>
      %691 = vector.broadcast %690 : f32 to vector<8x128xf32>
      %692 = arith.mulf %691, %173 : vector<8x128xf32>
      %693 = arith.addf %685, %692 : vector<8x128xf32>
      %c11_321 = arith.constant 11 : index
      %c5_322 = arith.constant 5 : index
      %694 = memref.load %arg3[%c11_321, %c5_322] : memref<16x16xf32, #tpu.memory_space<smem>>
      %695 = vector.broadcast %694 : f32 to vector<8x128xf32>
      %696 = arith.mulf %695, %188 : vector<8x128xf32>
      %697 = arith.addf %689, %696 : vector<8x128xf32>
      %c12_323 = arith.constant 12 : index
      %c5_324 = arith.constant 5 : index
      %698 = memref.load %arg3[%c12_323, %c5_324] : memref<16x16xf32, #tpu.memory_space<smem>>
      %699 = vector.broadcast %698 : f32 to vector<8x128xf32>
      %700 = arith.mulf %699, %203 : vector<8x128xf32>
      %701 = arith.addf %693, %700 : vector<8x128xf32>
      %c13_325 = arith.constant 13 : index
      %c5_326 = arith.constant 5 : index
      %702 = memref.load %arg3[%c13_325, %c5_326] : memref<16x16xf32, #tpu.memory_space<smem>>
      %703 = vector.broadcast %702 : f32 to vector<8x128xf32>
      %704 = arith.mulf %703, %218 : vector<8x128xf32>
      %705 = arith.addf %697, %704 : vector<8x128xf32>
      %c14_327 = arith.constant 14 : index
      %c5_328 = arith.constant 5 : index
      %706 = memref.load %arg3[%c14_327, %c5_328] : memref<16x16xf32, #tpu.memory_space<smem>>
      %707 = vector.broadcast %706 : f32 to vector<8x128xf32>
      %708 = arith.mulf %707, %233 : vector<8x128xf32>
      %709 = arith.addf %701, %708 : vector<8x128xf32>
      %c15_329 = arith.constant 15 : index
      %c5_330 = arith.constant 5 : index
      %710 = memref.load %arg3[%c15_329, %c5_330] : memref<16x16xf32, #tpu.memory_space<smem>>
      %711 = vector.broadcast %710 : f32 to vector<8x128xf32>
      %712 = arith.mulf %711, %248 : vector<8x128xf32>
      %713 = arith.addf %705, %712 : vector<8x128xf32>
      %714 = arith.addf %709, %713 : vector<8x128xf32>
      %cst_331 = arith.constant 0.000000e+00 : f32
      %715 = vector.broadcast %cst_331 : f32 to vector<8x128xf32>
      %716 = arith.maximumf %714, %715 : vector<8x128xf32>
      %cst_332 = arith.constant 0.00999999977 : f32
      %717 = vector.broadcast %cst_332 : f32 to vector<8x128xf32>
      %718 = arith.cmpf oge, %716, %717 : vector<8x128xf32>
      %719 = arith.mulf %716, %716 : vector<8x128xf32>
      %cst_333 = arith.constant 5.000000e+01 : f32
      %720 = vector.broadcast %cst_333 : f32 to vector<8x128xf32>
      %721 = arith.mulf %719, %720 : vector<8x128xf32>
      %722 = arith.select %718, %716, %721 : vector<8x128xi1>, vector<8x128xf32>
      %c0_334 = arith.constant 0 : index
      %c6_335 = arith.constant 6 : index
      %723 = memref.load %arg2[%c0_334, %c6_335] : memref<2x16xf32, #tpu.memory_space<smem>>
      %724 = vector.broadcast %723 : f32 to vector<8x128xf32>
      %725 = arith.mulf %724, %5 : vector<8x128xf32>
      %c1_336 = arith.constant 1 : index
      %c6_337 = arith.constant 6 : index
      %726 = memref.load %arg2[%c1_336, %c6_337] : memref<2x16xf32, #tpu.memory_space<smem>>
      %727 = vector.broadcast %726 : f32 to vector<8x128xf32>
      %728 = arith.mulf %727, %8 : vector<8x128xf32>
      %729 = arith.addf %725, %728 : vector<8x128xf32>
      %c0_338 = arith.constant 0 : index
      %c6_339 = arith.constant 6 : index
      %730 = memref.load %arg3[%c0_338, %c6_339] : memref<16x16xf32, #tpu.memory_space<smem>>
      %731 = vector.broadcast %730 : f32 to vector<8x128xf32>
      %732 = arith.mulf %731, %23 : vector<8x128xf32>
      %c1_340 = arith.constant 1 : index
      %c6_341 = arith.constant 6 : index
      %733 = memref.load %arg3[%c1_340, %c6_341] : memref<16x16xf32, #tpu.memory_space<smem>>
      %734 = vector.broadcast %733 : f32 to vector<8x128xf32>
      %735 = arith.mulf %734, %38 : vector<8x128xf32>
      %736 = arith.addf %732, %735 : vector<8x128xf32>
      %c2_342 = arith.constant 2 : index
      %c6_343 = arith.constant 6 : index
      %737 = memref.load %arg3[%c2_342, %c6_343] : memref<16x16xf32, #tpu.memory_space<smem>>
      %738 = vector.broadcast %737 : f32 to vector<8x128xf32>
      %739 = arith.mulf %738, %53 : vector<8x128xf32>
      %740 = arith.addf %729, %739 : vector<8x128xf32>
      %c3_344 = arith.constant 3 : index
      %c6_345 = arith.constant 6 : index
      %741 = memref.load %arg3[%c3_344, %c6_345] : memref<16x16xf32, #tpu.memory_space<smem>>
      %742 = vector.broadcast %741 : f32 to vector<8x128xf32>
      %743 = arith.mulf %742, %68 : vector<8x128xf32>
      %744 = arith.addf %736, %743 : vector<8x128xf32>
      %c4_346 = arith.constant 4 : index
      %c6_347 = arith.constant 6 : index
      %745 = memref.load %arg3[%c4_346, %c6_347] : memref<16x16xf32, #tpu.memory_space<smem>>
      %746 = vector.broadcast %745 : f32 to vector<8x128xf32>
      %747 = arith.mulf %746, %83 : vector<8x128xf32>
      %748 = arith.addf %740, %747 : vector<8x128xf32>
      %c5_348 = arith.constant 5 : index
      %c6_349 = arith.constant 6 : index
      %749 = memref.load %arg3[%c5_348, %c6_349] : memref<16x16xf32, #tpu.memory_space<smem>>
      %750 = vector.broadcast %749 : f32 to vector<8x128xf32>
      %751 = arith.mulf %750, %98 : vector<8x128xf32>
      %752 = arith.addf %744, %751 : vector<8x128xf32>
      %c6_350 = arith.constant 6 : index
      %c6_351 = arith.constant 6 : index
      %753 = memref.load %arg3[%c6_350, %c6_351] : memref<16x16xf32, #tpu.memory_space<smem>>
      %754 = vector.broadcast %753 : f32 to vector<8x128xf32>
      %755 = arith.mulf %754, %113 : vector<8x128xf32>
      %756 = arith.addf %748, %755 : vector<8x128xf32>
      %c7_352 = arith.constant 7 : index
      %c6_353 = arith.constant 6 : index
      %757 = memref.load %arg3[%c7_352, %c6_353] : memref<16x16xf32, #tpu.memory_space<smem>>
      %758 = vector.broadcast %757 : f32 to vector<8x128xf32>
      %759 = arith.mulf %758, %128 : vector<8x128xf32>
      %760 = arith.addf %752, %759 : vector<8x128xf32>
      %c8_354 = arith.constant 8 : index
      %c6_355 = arith.constant 6 : index
      %761 = memref.load %arg3[%c8_354, %c6_355] : memref<16x16xf32, #tpu.memory_space<smem>>
      %762 = vector.broadcast %761 : f32 to vector<8x128xf32>
      %763 = arith.mulf %762, %143 : vector<8x128xf32>
      %764 = arith.addf %756, %763 : vector<8x128xf32>
      %c9_356 = arith.constant 9 : index
      %c6_357 = arith.constant 6 : index
      %765 = memref.load %arg3[%c9_356, %c6_357] : memref<16x16xf32, #tpu.memory_space<smem>>
      %766 = vector.broadcast %765 : f32 to vector<8x128xf32>
      %767 = arith.mulf %766, %158 : vector<8x128xf32>
      %768 = arith.addf %760, %767 : vector<8x128xf32>
      %c10_358 = arith.constant 10 : index
      %c6_359 = arith.constant 6 : index
      %769 = memref.load %arg3[%c10_358, %c6_359] : memref<16x16xf32, #tpu.memory_space<smem>>
      %770 = vector.broadcast %769 : f32 to vector<8x128xf32>
      %771 = arith.mulf %770, %173 : vector<8x128xf32>
      %772 = arith.addf %764, %771 : vector<8x128xf32>
      %c11_360 = arith.constant 11 : index
      %c6_361 = arith.constant 6 : index
      %773 = memref.load %arg3[%c11_360, %c6_361] : memref<16x16xf32, #tpu.memory_space<smem>>
      %774 = vector.broadcast %773 : f32 to vector<8x128xf32>
      %775 = arith.mulf %774, %188 : vector<8x128xf32>
      %776 = arith.addf %768, %775 : vector<8x128xf32>
      %c12_362 = arith.constant 12 : index
      %c6_363 = arith.constant 6 : index
      %777 = memref.load %arg3[%c12_362, %c6_363] : memref<16x16xf32, #tpu.memory_space<smem>>
      %778 = vector.broadcast %777 : f32 to vector<8x128xf32>
      %779 = arith.mulf %778, %203 : vector<8x128xf32>
      %780 = arith.addf %772, %779 : vector<8x128xf32>
      %c13_364 = arith.constant 13 : index
      %c6_365 = arith.constant 6 : index
      %781 = memref.load %arg3[%c13_364, %c6_365] : memref<16x16xf32, #tpu.memory_space<smem>>
      %782 = vector.broadcast %781 : f32 to vector<8x128xf32>
      %783 = arith.mulf %782, %218 : vector<8x128xf32>
      %784 = arith.addf %776, %783 : vector<8x128xf32>
      %c14_366 = arith.constant 14 : index
      %c6_367 = arith.constant 6 : index
      %785 = memref.load %arg3[%c14_366, %c6_367] : memref<16x16xf32, #tpu.memory_space<smem>>
      %786 = vector.broadcast %785 : f32 to vector<8x128xf32>
      %787 = arith.mulf %786, %233 : vector<8x128xf32>
      %788 = arith.addf %780, %787 : vector<8x128xf32>
      %c15_368 = arith.constant 15 : index
      %c6_369 = arith.constant 6 : index
      %789 = memref.load %arg3[%c15_368, %c6_369] : memref<16x16xf32, #tpu.memory_space<smem>>
      %790 = vector.broadcast %789 : f32 to vector<8x128xf32>
      %791 = arith.mulf %790, %248 : vector<8x128xf32>
      %792 = arith.addf %784, %791 : vector<8x128xf32>
      %793 = arith.addf %788, %792 : vector<8x128xf32>
      %cst_370 = arith.constant 0.000000e+00 : f32
      %794 = vector.broadcast %cst_370 : f32 to vector<8x128xf32>
      %795 = arith.maximumf %793, %794 : vector<8x128xf32>
      %cst_371 = arith.constant 0.00999999977 : f32
      %796 = vector.broadcast %cst_371 : f32 to vector<8x128xf32>
      %797 = arith.cmpf oge, %795, %796 : vector<8x128xf32>
      %798 = arith.mulf %795, %795 : vector<8x128xf32>
      %cst_372 = arith.constant 5.000000e+01 : f32
      %799 = vector.broadcast %cst_372 : f32 to vector<8x128xf32>
      %800 = arith.mulf %798, %799 : vector<8x128xf32>
      %801 = arith.select %797, %795, %800 : vector<8x128xi1>, vector<8x128xf32>
      %c0_373 = arith.constant 0 : index
      %c7_374 = arith.constant 7 : index
      %802 = memref.load %arg2[%c0_373, %c7_374] : memref<2x16xf32, #tpu.memory_space<smem>>
      %803 = vector.broadcast %802 : f32 to vector<8x128xf32>
      %804 = arith.mulf %803, %5 : vector<8x128xf32>
      %c1_375 = arith.constant 1 : index
      %c7_376 = arith.constant 7 : index
      %805 = memref.load %arg2[%c1_375, %c7_376] : memref<2x16xf32, #tpu.memory_space<smem>>
      %806 = vector.broadcast %805 : f32 to vector<8x128xf32>
      %807 = arith.mulf %806, %8 : vector<8x128xf32>
      %808 = arith.addf %804, %807 : vector<8x128xf32>
      %c0_377 = arith.constant 0 : index
      %c7_378 = arith.constant 7 : index
      %809 = memref.load %arg3[%c0_377, %c7_378] : memref<16x16xf32, #tpu.memory_space<smem>>
      %810 = vector.broadcast %809 : f32 to vector<8x128xf32>
      %811 = arith.mulf %810, %23 : vector<8x128xf32>
      %c1_379 = arith.constant 1 : index
      %c7_380 = arith.constant 7 : index
      %812 = memref.load %arg3[%c1_379, %c7_380] : memref<16x16xf32, #tpu.memory_space<smem>>
      %813 = vector.broadcast %812 : f32 to vector<8x128xf32>
      %814 = arith.mulf %813, %38 : vector<8x128xf32>
      %815 = arith.addf %811, %814 : vector<8x128xf32>
      %c2_381 = arith.constant 2 : index
      %c7_382 = arith.constant 7 : index
      %816 = memref.load %arg3[%c2_381, %c7_382] : memref<16x16xf32, #tpu.memory_space<smem>>
      %817 = vector.broadcast %816 : f32 to vector<8x128xf32>
      %818 = arith.mulf %817, %53 : vector<8x128xf32>
      %819 = arith.addf %808, %818 : vector<8x128xf32>
      %c3_383 = arith.constant 3 : index
      %c7_384 = arith.constant 7 : index
      %820 = memref.load %arg3[%c3_383, %c7_384] : memref<16x16xf32, #tpu.memory_space<smem>>
      %821 = vector.broadcast %820 : f32 to vector<8x128xf32>
      %822 = arith.mulf %821, %68 : vector<8x128xf32>
      %823 = arith.addf %815, %822 : vector<8x128xf32>
      %c4_385 = arith.constant 4 : index
      %c7_386 = arith.constant 7 : index
      %824 = memref.load %arg3[%c4_385, %c7_386] : memref<16x16xf32, #tpu.memory_space<smem>>
      %825 = vector.broadcast %824 : f32 to vector<8x128xf32>
      %826 = arith.mulf %825, %83 : vector<8x128xf32>
      %827 = arith.addf %819, %826 : vector<8x128xf32>
      %c5_387 = arith.constant 5 : index
      %c7_388 = arith.constant 7 : index
      %828 = memref.load %arg3[%c5_387, %c7_388] : memref<16x16xf32, #tpu.memory_space<smem>>
      %829 = vector.broadcast %828 : f32 to vector<8x128xf32>
      %830 = arith.mulf %829, %98 : vector<8x128xf32>
      %831 = arith.addf %823, %830 : vector<8x128xf32>
      %c6_389 = arith.constant 6 : index
      %c7_390 = arith.constant 7 : index
      %832 = memref.load %arg3[%c6_389, %c7_390] : memref<16x16xf32, #tpu.memory_space<smem>>
      %833 = vector.broadcast %832 : f32 to vector<8x128xf32>
      %834 = arith.mulf %833, %113 : vector<8x128xf32>
      %835 = arith.addf %827, %834 : vector<8x128xf32>
      %c7_391 = arith.constant 7 : index
      %c7_392 = arith.constant 7 : index
      %836 = memref.load %arg3[%c7_391, %c7_392] : memref<16x16xf32, #tpu.memory_space<smem>>
      %837 = vector.broadcast %836 : f32 to vector<8x128xf32>
      %838 = arith.mulf %837, %128 : vector<8x128xf32>
      %839 = arith.addf %831, %838 : vector<8x128xf32>
      %c8_393 = arith.constant 8 : index
      %c7_394 = arith.constant 7 : index
      %840 = memref.load %arg3[%c8_393, %c7_394] : memref<16x16xf32, #tpu.memory_space<smem>>
      %841 = vector.broadcast %840 : f32 to vector<8x128xf32>
      %842 = arith.mulf %841, %143 : vector<8x128xf32>
      %843 = arith.addf %835, %842 : vector<8x128xf32>
      %c9_395 = arith.constant 9 : index
      %c7_396 = arith.constant 7 : index
      %844 = memref.load %arg3[%c9_395, %c7_396] : memref<16x16xf32, #tpu.memory_space<smem>>
      %845 = vector.broadcast %844 : f32 to vector<8x128xf32>
      %846 = arith.mulf %845, %158 : vector<8x128xf32>
      %847 = arith.addf %839, %846 : vector<8x128xf32>
      %c10_397 = arith.constant 10 : index
      %c7_398 = arith.constant 7 : index
      %848 = memref.load %arg3[%c10_397, %c7_398] : memref<16x16xf32, #tpu.memory_space<smem>>
      %849 = vector.broadcast %848 : f32 to vector<8x128xf32>
      %850 = arith.mulf %849, %173 : vector<8x128xf32>
      %851 = arith.addf %843, %850 : vector<8x128xf32>
      %c11_399 = arith.constant 11 : index
      %c7_400 = arith.constant 7 : index
      %852 = memref.load %arg3[%c11_399, %c7_400] : memref<16x16xf32, #tpu.memory_space<smem>>
      %853 = vector.broadcast %852 : f32 to vector<8x128xf32>
      %854 = arith.mulf %853, %188 : vector<8x128xf32>
      %855 = arith.addf %847, %854 : vector<8x128xf32>
      %c12_401 = arith.constant 12 : index
      %c7_402 = arith.constant 7 : index
      %856 = memref.load %arg3[%c12_401, %c7_402] : memref<16x16xf32, #tpu.memory_space<smem>>
      %857 = vector.broadcast %856 : f32 to vector<8x128xf32>
      %858 = arith.mulf %857, %203 : vector<8x128xf32>
      %859 = arith.addf %851, %858 : vector<8x128xf32>
      %c13_403 = arith.constant 13 : index
      %c7_404 = arith.constant 7 : index
      %860 = memref.load %arg3[%c13_403, %c7_404] : memref<16x16xf32, #tpu.memory_space<smem>>
      %861 = vector.broadcast %860 : f32 to vector<8x128xf32>
      %862 = arith.mulf %861, %218 : vector<8x128xf32>
      %863 = arith.addf %855, %862 : vector<8x128xf32>
      %c14_405 = arith.constant 14 : index
      %c7_406 = arith.constant 7 : index
      %864 = memref.load %arg3[%c14_405, %c7_406] : memref<16x16xf32, #tpu.memory_space<smem>>
      %865 = vector.broadcast %864 : f32 to vector<8x128xf32>
      %866 = arith.mulf %865, %233 : vector<8x128xf32>
      %867 = arith.addf %859, %866 : vector<8x128xf32>
      %c15_407 = arith.constant 15 : index
      %c7_408 = arith.constant 7 : index
      %868 = memref.load %arg3[%c15_407, %c7_408] : memref<16x16xf32, #tpu.memory_space<smem>>
      %869 = vector.broadcast %868 : f32 to vector<8x128xf32>
      %870 = arith.mulf %869, %248 : vector<8x128xf32>
      %871 = arith.addf %863, %870 : vector<8x128xf32>
      %872 = arith.addf %867, %871 : vector<8x128xf32>
      %cst_409 = arith.constant 0.000000e+00 : f32
      %873 = vector.broadcast %cst_409 : f32 to vector<8x128xf32>
      %874 = arith.maximumf %872, %873 : vector<8x128xf32>
      %cst_410 = arith.constant 0.00999999977 : f32
      %875 = vector.broadcast %cst_410 : f32 to vector<8x128xf32>
      %876 = arith.cmpf oge, %874, %875 : vector<8x128xf32>
      %877 = arith.mulf %874, %874 : vector<8x128xf32>
      %cst_411 = arith.constant 5.000000e+01 : f32
      %878 = vector.broadcast %cst_411 : f32 to vector<8x128xf32>
      %879 = arith.mulf %877, %878 : vector<8x128xf32>
      %880 = arith.select %876, %874, %879 : vector<8x128xi1>, vector<8x128xf32>
      %c0_412 = arith.constant 0 : index
      %c8_413 = arith.constant 8 : index
      %881 = memref.load %arg2[%c0_412, %c8_413] : memref<2x16xf32, #tpu.memory_space<smem>>
      %882 = vector.broadcast %881 : f32 to vector<8x128xf32>
      %883 = arith.mulf %882, %5 : vector<8x128xf32>
      %c1_414 = arith.constant 1 : index
      %c8_415 = arith.constant 8 : index
      %884 = memref.load %arg2[%c1_414, %c8_415] : memref<2x16xf32, #tpu.memory_space<smem>>
      %885 = vector.broadcast %884 : f32 to vector<8x128xf32>
      %886 = arith.mulf %885, %8 : vector<8x128xf32>
      %887 = arith.addf %883, %886 : vector<8x128xf32>
      %c0_416 = arith.constant 0 : index
      %c8_417 = arith.constant 8 : index
      %888 = memref.load %arg3[%c0_416, %c8_417] : memref<16x16xf32, #tpu.memory_space<smem>>
      %889 = vector.broadcast %888 : f32 to vector<8x128xf32>
      %890 = arith.mulf %889, %23 : vector<8x128xf32>
      %c1_418 = arith.constant 1 : index
      %c8_419 = arith.constant 8 : index
      %891 = memref.load %arg3[%c1_418, %c8_419] : memref<16x16xf32, #tpu.memory_space<smem>>
      %892 = vector.broadcast %891 : f32 to vector<8x128xf32>
      %893 = arith.mulf %892, %38 : vector<8x128xf32>
      %894 = arith.addf %890, %893 : vector<8x128xf32>
      %c2_420 = arith.constant 2 : index
      %c8_421 = arith.constant 8 : index
      %895 = memref.load %arg3[%c2_420, %c8_421] : memref<16x16xf32, #tpu.memory_space<smem>>
      %896 = vector.broadcast %895 : f32 to vector<8x128xf32>
      %897 = arith.mulf %896, %53 : vector<8x128xf32>
      %898 = arith.addf %887, %897 : vector<8x128xf32>
      %c3_422 = arith.constant 3 : index
      %c8_423 = arith.constant 8 : index
      %899 = memref.load %arg3[%c3_422, %c8_423] : memref<16x16xf32, #tpu.memory_space<smem>>
      %900 = vector.broadcast %899 : f32 to vector<8x128xf32>
      %901 = arith.mulf %900, %68 : vector<8x128xf32>
      %902 = arith.addf %894, %901 : vector<8x128xf32>
      %c4_424 = arith.constant 4 : index
      %c8_425 = arith.constant 8 : index
      %903 = memref.load %arg3[%c4_424, %c8_425] : memref<16x16xf32, #tpu.memory_space<smem>>
      %904 = vector.broadcast %903 : f32 to vector<8x128xf32>
      %905 = arith.mulf %904, %83 : vector<8x128xf32>
      %906 = arith.addf %898, %905 : vector<8x128xf32>
      %c5_426 = arith.constant 5 : index
      %c8_427 = arith.constant 8 : index
      %907 = memref.load %arg3[%c5_426, %c8_427] : memref<16x16xf32, #tpu.memory_space<smem>>
      %908 = vector.broadcast %907 : f32 to vector<8x128xf32>
      %909 = arith.mulf %908, %98 : vector<8x128xf32>
      %910 = arith.addf %902, %909 : vector<8x128xf32>
      %c6_428 = arith.constant 6 : index
      %c8_429 = arith.constant 8 : index
      %911 = memref.load %arg3[%c6_428, %c8_429] : memref<16x16xf32, #tpu.memory_space<smem>>
      %912 = vector.broadcast %911 : f32 to vector<8x128xf32>
      %913 = arith.mulf %912, %113 : vector<8x128xf32>
      %914 = arith.addf %906, %913 : vector<8x128xf32>
      %c7_430 = arith.constant 7 : index
      %c8_431 = arith.constant 8 : index
      %915 = memref.load %arg3[%c7_430, %c8_431] : memref<16x16xf32, #tpu.memory_space<smem>>
      %916 = vector.broadcast %915 : f32 to vector<8x128xf32>
      %917 = arith.mulf %916, %128 : vector<8x128xf32>
      %918 = arith.addf %910, %917 : vector<8x128xf32>
      %c8_432 = arith.constant 8 : index
      %c8_433 = arith.constant 8 : index
      %919 = memref.load %arg3[%c8_432, %c8_433] : memref<16x16xf32, #tpu.memory_space<smem>>
      %920 = vector.broadcast %919 : f32 to vector<8x128xf32>
      %921 = arith.mulf %920, %143 : vector<8x128xf32>
      %922 = arith.addf %914, %921 : vector<8x128xf32>
      %c9_434 = arith.constant 9 : index
      %c8_435 = arith.constant 8 : index
      %923 = memref.load %arg3[%c9_434, %c8_435] : memref<16x16xf32, #tpu.memory_space<smem>>
      %924 = vector.broadcast %923 : f32 to vector<8x128xf32>
      %925 = arith.mulf %924, %158 : vector<8x128xf32>
      %926 = arith.addf %918, %925 : vector<8x128xf32>
      %c10_436 = arith.constant 10 : index
      %c8_437 = arith.constant 8 : index
      %927 = memref.load %arg3[%c10_436, %c8_437] : memref<16x16xf32, #tpu.memory_space<smem>>
      %928 = vector.broadcast %927 : f32 to vector<8x128xf32>
      %929 = arith.mulf %928, %173 : vector<8x128xf32>
      %930 = arith.addf %922, %929 : vector<8x128xf32>
      %c11_438 = arith.constant 11 : index
      %c8_439 = arith.constant 8 : index
      %931 = memref.load %arg3[%c11_438, %c8_439] : memref<16x16xf32, #tpu.memory_space<smem>>
      %932 = vector.broadcast %931 : f32 to vector<8x128xf32>
      %933 = arith.mulf %932, %188 : vector<8x128xf32>
      %934 = arith.addf %926, %933 : vector<8x128xf32>
      %c12_440 = arith.constant 12 : index
      %c8_441 = arith.constant 8 : index
      %935 = memref.load %arg3[%c12_440, %c8_441] : memref<16x16xf32, #tpu.memory_space<smem>>
      %936 = vector.broadcast %935 : f32 to vector<8x128xf32>
      %937 = arith.mulf %936, %203 : vector<8x128xf32>
      %938 = arith.addf %930, %937 : vector<8x128xf32>
      %c13_442 = arith.constant 13 : index
      %c8_443 = arith.constant 8 : index
      %939 = memref.load %arg3[%c13_442, %c8_443] : memref<16x16xf32, #tpu.memory_space<smem>>
      %940 = vector.broadcast %939 : f32 to vector<8x128xf32>
      %941 = arith.mulf %940, %218 : vector<8x128xf32>
      %942 = arith.addf %934, %941 : vector<8x128xf32>
      %c14_444 = arith.constant 14 : index
      %c8_445 = arith.constant 8 : index
      %943 = memref.load %arg3[%c14_444, %c8_445] : memref<16x16xf32, #tpu.memory_space<smem>>
      %944 = vector.broadcast %943 : f32 to vector<8x128xf32>
      %945 = arith.mulf %944, %233 : vector<8x128xf32>
      %946 = arith.addf %938, %945 : vector<8x128xf32>
      %c15_446 = arith.constant 15 : index
      %c8_447 = arith.constant 8 : index
      %947 = memref.load %arg3[%c15_446, %c8_447] : memref<16x16xf32, #tpu.memory_space<smem>>
      %948 = vector.broadcast %947 : f32 to vector<8x128xf32>
      %949 = arith.mulf %948, %248 : vector<8x128xf32>
      %950 = arith.addf %942, %949 : vector<8x128xf32>
      %951 = arith.addf %946, %950 : vector<8x128xf32>
      %cst_448 = arith.constant 0.000000e+00 : f32
      %952 = vector.broadcast %cst_448 : f32 to vector<8x128xf32>
      %953 = arith.maximumf %951, %952 : vector<8x128xf32>
      %cst_449 = arith.constant 0.00999999977 : f32
      %954 = vector.broadcast %cst_449 : f32 to vector<8x128xf32>
      %955 = arith.cmpf oge, %953, %954 : vector<8x128xf32>
      %956 = arith.mulf %953, %953 : vector<8x128xf32>
      %cst_450 = arith.constant 5.000000e+01 : f32
      %957 = vector.broadcast %cst_450 : f32 to vector<8x128xf32>
      %958 = arith.mulf %956, %957 : vector<8x128xf32>
      %959 = arith.select %955, %953, %958 : vector<8x128xi1>, vector<8x128xf32>
      %c0_451 = arith.constant 0 : index
      %c9_452 = arith.constant 9 : index
      %960 = memref.load %arg2[%c0_451, %c9_452] : memref<2x16xf32, #tpu.memory_space<smem>>
      %961 = vector.broadcast %960 : f32 to vector<8x128xf32>
      %962 = arith.mulf %961, %5 : vector<8x128xf32>
      %c1_453 = arith.constant 1 : index
      %c9_454 = arith.constant 9 : index
      %963 = memref.load %arg2[%c1_453, %c9_454] : memref<2x16xf32, #tpu.memory_space<smem>>
      %964 = vector.broadcast %963 : f32 to vector<8x128xf32>
      %965 = arith.mulf %964, %8 : vector<8x128xf32>
      %966 = arith.addf %962, %965 : vector<8x128xf32>
      %c0_455 = arith.constant 0 : index
      %c9_456 = arith.constant 9 : index
      %967 = memref.load %arg3[%c0_455, %c9_456] : memref<16x16xf32, #tpu.memory_space<smem>>
      %968 = vector.broadcast %967 : f32 to vector<8x128xf32>
      %969 = arith.mulf %968, %23 : vector<8x128xf32>
      %c1_457 = arith.constant 1 : index
      %c9_458 = arith.constant 9 : index
      %970 = memref.load %arg3[%c1_457, %c9_458] : memref<16x16xf32, #tpu.memory_space<smem>>
      %971 = vector.broadcast %970 : f32 to vector<8x128xf32>
      %972 = arith.mulf %971, %38 : vector<8x128xf32>
      %973 = arith.addf %969, %972 : vector<8x128xf32>
      %c2_459 = arith.constant 2 : index
      %c9_460 = arith.constant 9 : index
      %974 = memref.load %arg3[%c2_459, %c9_460] : memref<16x16xf32, #tpu.memory_space<smem>>
      %975 = vector.broadcast %974 : f32 to vector<8x128xf32>
      %976 = arith.mulf %975, %53 : vector<8x128xf32>
      %977 = arith.addf %966, %976 : vector<8x128xf32>
      %c3_461 = arith.constant 3 : index
      %c9_462 = arith.constant 9 : index
      %978 = memref.load %arg3[%c3_461, %c9_462] : memref<16x16xf32, #tpu.memory_space<smem>>
      %979 = vector.broadcast %978 : f32 to vector<8x128xf32>
      %980 = arith.mulf %979, %68 : vector<8x128xf32>
      %981 = arith.addf %973, %980 : vector<8x128xf32>
      %c4_463 = arith.constant 4 : index
      %c9_464 = arith.constant 9 : index
      %982 = memref.load %arg3[%c4_463, %c9_464] : memref<16x16xf32, #tpu.memory_space<smem>>
      %983 = vector.broadcast %982 : f32 to vector<8x128xf32>
      %984 = arith.mulf %983, %83 : vector<8x128xf32>
      %985 = arith.addf %977, %984 : vector<8x128xf32>
      %c5_465 = arith.constant 5 : index
      %c9_466 = arith.constant 9 : index
      %986 = memref.load %arg3[%c5_465, %c9_466] : memref<16x16xf32, #tpu.memory_space<smem>>
      %987 = vector.broadcast %986 : f32 to vector<8x128xf32>
      %988 = arith.mulf %987, %98 : vector<8x128xf32>
      %989 = arith.addf %981, %988 : vector<8x128xf32>
      %c6_467 = arith.constant 6 : index
      %c9_468 = arith.constant 9 : index
      %990 = memref.load %arg3[%c6_467, %c9_468] : memref<16x16xf32, #tpu.memory_space<smem>>
      %991 = vector.broadcast %990 : f32 to vector<8x128xf32>
      %992 = arith.mulf %991, %113 : vector<8x128xf32>
      %993 = arith.addf %985, %992 : vector<8x128xf32>
      %c7_469 = arith.constant 7 : index
      %c9_470 = arith.constant 9 : index
      %994 = memref.load %arg3[%c7_469, %c9_470] : memref<16x16xf32, #tpu.memory_space<smem>>
      %995 = vector.broadcast %994 : f32 to vector<8x128xf32>
      %996 = arith.mulf %995, %128 : vector<8x128xf32>
      %997 = arith.addf %989, %996 : vector<8x128xf32>
      %c8_471 = arith.constant 8 : index
      %c9_472 = arith.constant 9 : index
      %998 = memref.load %arg3[%c8_471, %c9_472] : memref<16x16xf32, #tpu.memory_space<smem>>
      %999 = vector.broadcast %998 : f32 to vector<8x128xf32>
      %1000 = arith.mulf %999, %143 : vector<8x128xf32>
      %1001 = arith.addf %993, %1000 : vector<8x128xf32>
      %c9_473 = arith.constant 9 : index
      %c9_474 = arith.constant 9 : index
      %1002 = memref.load %arg3[%c9_473, %c9_474] : memref<16x16xf32, #tpu.memory_space<smem>>
      %1003 = vector.broadcast %1002 : f32 to vector<8x128xf32>
      %1004 = arith.mulf %1003, %158 : vector<8x128xf32>
      %1005 = arith.addf %997, %1004 : vector<8x128xf32>
      %c10_475 = arith.constant 10 : index
      %c9_476 = arith.constant 9 : index
      %1006 = memref.load %arg3[%c10_475, %c9_476] : memref<16x16xf32, #tpu.memory_space<smem>>
      %1007 = vector.broadcast %1006 : f32 to vector<8x128xf32>
      %1008 = arith.mulf %1007, %173 : vector<8x128xf32>
      %1009 = arith.addf %1001, %1008 : vector<8x128xf32>
      %c11_477 = arith.constant 11 : index
      %c9_478 = arith.constant 9 : index
      %1010 = memref.load %arg3[%c11_477, %c9_478] : memref<16x16xf32, #tpu.memory_space<smem>>
      %1011 = vector.broadcast %1010 : f32 to vector<8x128xf32>
      %1012 = arith.mulf %1011, %188 : vector<8x128xf32>
      %1013 = arith.addf %1005, %1012 : vector<8x128xf32>
      %c12_479 = arith.constant 12 : index
      %c9_480 = arith.constant 9 : index
      %1014 = memref.load %arg3[%c12_479, %c9_480] : memref<16x16xf32, #tpu.memory_space<smem>>
      %1015 = vector.broadcast %1014 : f32 to vector<8x128xf32>
      %1016 = arith.mulf %1015, %203 : vector<8x128xf32>
      %1017 = arith.addf %1009, %1016 : vector<8x128xf32>
      %c13_481 = arith.constant 13 : index
      %c9_482 = arith.constant 9 : index
      %1018 = memref.load %arg3[%c13_481, %c9_482] : memref<16x16xf32, #tpu.memory_space<smem>>
      %1019 = vector.broadcast %1018 : f32 to vector<8x128xf32>
      %1020 = arith.mulf %1019, %218 : vector<8x128xf32>
      %1021 = arith.addf %1013, %1020 : vector<8x128xf32>
      %c14_483 = arith.constant 14 : index
      %c9_484 = arith.constant 9 : index
      %1022 = memref.load %arg3[%c14_483, %c9_484] : memref<16x16xf32, #tpu.memory_space<smem>>
      %1023 = vector.broadcast %1022 : f32 to vector<8x128xf32>
      %1024 = arith.mulf %1023, %233 : vector<8x128xf32>
      %1025 = arith.addf %1017, %1024 : vector<8x128xf32>
      %c15_485 = arith.constant 15 : index
      %c9_486 = arith.constant 9 : index
      %1026 = memref.load %arg3[%c15_485, %c9_486] : memref<16x16xf32, #tpu.memory_space<smem>>
      %1027 = vector.broadcast %1026 : f32 to vector<8x128xf32>
      %1028 = arith.mulf %1027, %248 : vector<8x128xf32>
      %1029 = arith.addf %1021, %1028 : vector<8x128xf32>
      %1030 = arith.addf %1025, %1029 : vector<8x128xf32>
      %cst_487 = arith.constant 0.000000e+00 : f32
      %1031 = vector.broadcast %cst_487 : f32 to vector<8x128xf32>
      %1032 = arith.maximumf %1030, %1031 : vector<8x128xf32>
      %cst_488 = arith.constant 0.00999999977 : f32
      %1033 = vector.broadcast %cst_488 : f32 to vector<8x128xf32>
      %1034 = arith.cmpf oge, %1032, %1033 : vector<8x128xf32>
      %1035 = arith.mulf %1032, %1032 : vector<8x128xf32>
      %cst_489 = arith.constant 5.000000e+01 : f32
      %1036 = vector.broadcast %cst_489 : f32 to vector<8x128xf32>
      %1037 = arith.mulf %1035, %1036 : vector<8x128xf32>
      %1038 = arith.select %1034, %1032, %1037 : vector<8x128xi1>, vector<8x128xf32>
      %c0_490 = arith.constant 0 : index
      %c10_491 = arith.constant 10 : index
      %1039 = memref.load %arg2[%c0_490, %c10_491] : memref<2x16xf32, #tpu.memory_space<smem>>
      %1040 = vector.broadcast %1039 : f32 to vector<8x128xf32>
      %1041 = arith.mulf %1040, %5 : vector<8x128xf32>
      %c1_492 = arith.constant 1 : index
      %c10_493 = arith.constant 10 : index
      %1042 = memref.load %arg2[%c1_492, %c10_493] : memref<2x16xf32, #tpu.memory_space<smem>>
      %1043 = vector.broadcast %1042 : f32 to vector<8x128xf32>
      %1044 = arith.mulf %1043, %8 : vector<8x128xf32>
      %1045 = arith.addf %1041, %1044 : vector<8x128xf32>
      %c0_494 = arith.constant 0 : index
      %c10_495 = arith.constant 10 : index
      %1046 = memref.load %arg3[%c0_494, %c10_495] : memref<16x16xf32, #tpu.memory_space<smem>>
      %1047 = vector.broadcast %1046 : f32 to vector<8x128xf32>
      %1048 = arith.mulf %1047, %23 : vector<8x128xf32>
      %c1_496 = arith.constant 1 : index
      %c10_497 = arith.constant 10 : index
      %1049 = memref.load %arg3[%c1_496, %c10_497] : memref<16x16xf32, #tpu.memory_space<smem>>
      %1050 = vector.broadcast %1049 : f32 to vector<8x128xf32>
      %1051 = arith.mulf %1050, %38 : vector<8x128xf32>
      %1052 = arith.addf %1048, %1051 : vector<8x128xf32>
      %c2_498 = arith.constant 2 : index
      %c10_499 = arith.constant 10 : index
      %1053 = memref.load %arg3[%c2_498, %c10_499] : memref<16x16xf32, #tpu.memory_space<smem>>
      %1054 = vector.broadcast %1053 : f32 to vector<8x128xf32>
      %1055 = arith.mulf %1054, %53 : vector<8x128xf32>
      %1056 = arith.addf %1045, %1055 : vector<8x128xf32>
      %c3_500 = arith.constant 3 : index
      %c10_501 = arith.constant 10 : index
      %1057 = memref.load %arg3[%c3_500, %c10_501] : memref<16x16xf32, #tpu.memory_space<smem>>
      %1058 = vector.broadcast %1057 : f32 to vector<8x128xf32>
      %1059 = arith.mulf %1058, %68 : vector<8x128xf32>
      %1060 = arith.addf %1052, %1059 : vector<8x128xf32>
      %c4_502 = arith.constant 4 : index
      %c10_503 = arith.constant 10 : index
      %1061 = memref.load %arg3[%c4_502, %c10_503] : memref<16x16xf32, #tpu.memory_space<smem>>
      %1062 = vector.broadcast %1061 : f32 to vector<8x128xf32>
      %1063 = arith.mulf %1062, %83 : vector<8x128xf32>
      %1064 = arith.addf %1056, %1063 : vector<8x128xf32>
      %c5_504 = arith.constant 5 : index
      %c10_505 = arith.constant 10 : index
      %1065 = memref.load %arg3[%c5_504, %c10_505] : memref<16x16xf32, #tpu.memory_space<smem>>
      %1066 = vector.broadcast %1065 : f32 to vector<8x128xf32>
      %1067 = arith.mulf %1066, %98 : vector<8x128xf32>
      %1068 = arith.addf %1060, %1067 : vector<8x128xf32>
      %c6_506 = arith.constant 6 : index
      %c10_507 = arith.constant 10 : index
      %1069 = memref.load %arg3[%c6_506, %c10_507] : memref<16x16xf32, #tpu.memory_space<smem>>
      %1070 = vector.broadcast %1069 : f32 to vector<8x128xf32>
      %1071 = arith.mulf %1070, %113 : vector<8x128xf32>
      %1072 = arith.addf %1064, %1071 : vector<8x128xf32>
      %c7_508 = arith.constant 7 : index
      %c10_509 = arith.constant 10 : index
      %1073 = memref.load %arg3[%c7_508, %c10_509] : memref<16x16xf32, #tpu.memory_space<smem>>
      %1074 = vector.broadcast %1073 : f32 to vector<8x128xf32>
      %1075 = arith.mulf %1074, %128 : vector<8x128xf32>
      %1076 = arith.addf %1068, %1075 : vector<8x128xf32>
      %c8_510 = arith.constant 8 : index
      %c10_511 = arith.constant 10 : index
      %1077 = memref.load %arg3[%c8_510, %c10_511] : memref<16x16xf32, #tpu.memory_space<smem>>
      %1078 = vector.broadcast %1077 : f32 to vector<8x128xf32>
      %1079 = arith.mulf %1078, %143 : vector<8x128xf32>
      %1080 = arith.addf %1072, %1079 : vector<8x128xf32>
      %c9_512 = arith.constant 9 : index
      %c10_513 = arith.constant 10 : index
      %1081 = memref.load %arg3[%c9_512, %c10_513] : memref<16x16xf32, #tpu.memory_space<smem>>
      %1082 = vector.broadcast %1081 : f32 to vector<8x128xf32>
      %1083 = arith.mulf %1082, %158 : vector<8x128xf32>
      %1084 = arith.addf %1076, %1083 : vector<8x128xf32>
      %c10_514 = arith.constant 10 : index
      %c10_515 = arith.constant 10 : index
      %1085 = memref.load %arg3[%c10_514, %c10_515] : memref<16x16xf32, #tpu.memory_space<smem>>
      %1086 = vector.broadcast %1085 : f32 to vector<8x128xf32>
      %1087 = arith.mulf %1086, %173 : vector<8x128xf32>
      %1088 = arith.addf %1080, %1087 : vector<8x128xf32>
      %c11_516 = arith.constant 11 : index
      %c10_517 = arith.constant 10 : index
      %1089 = memref.load %arg3[%c11_516, %c10_517] : memref<16x16xf32, #tpu.memory_space<smem>>
      %1090 = vector.broadcast %1089 : f32 to vector<8x128xf32>
      %1091 = arith.mulf %1090, %188 : vector<8x128xf32>
      %1092 = arith.addf %1084, %1091 : vector<8x128xf32>
      %c12_518 = arith.constant 12 : index
      %c10_519 = arith.constant 10 : index
      %1093 = memref.load %arg3[%c12_518, %c10_519] : memref<16x16xf32, #tpu.memory_space<smem>>
      %1094 = vector.broadcast %1093 : f32 to vector<8x128xf32>
      %1095 = arith.mulf %1094, %203 : vector<8x128xf32>
      %1096 = arith.addf %1088, %1095 : vector<8x128xf32>
      %c13_520 = arith.constant 13 : index
      %c10_521 = arith.constant 10 : index
      %1097 = memref.load %arg3[%c13_520, %c10_521] : memref<16x16xf32, #tpu.memory_space<smem>>
      %1098 = vector.broadcast %1097 : f32 to vector<8x128xf32>
      %1099 = arith.mulf %1098, %218 : vector<8x128xf32>
      %1100 = arith.addf %1092, %1099 : vector<8x128xf32>
      %c14_522 = arith.constant 14 : index
      %c10_523 = arith.constant 10 : index
      %1101 = memref.load %arg3[%c14_522, %c10_523] : memref<16x16xf32, #tpu.memory_space<smem>>
      %1102 = vector.broadcast %1101 : f32 to vector<8x128xf32>
      %1103 = arith.mulf %1102, %233 : vector<8x128xf32>
      %1104 = arith.addf %1096, %1103 : vector<8x128xf32>
      %c15_524 = arith.constant 15 : index
      %c10_525 = arith.constant 10 : index
      %1105 = memref.load %arg3[%c15_524, %c10_525] : memref<16x16xf32, #tpu.memory_space<smem>>
      %1106 = vector.broadcast %1105 : f32 to vector<8x128xf32>
      %1107 = arith.mulf %1106, %248 : vector<8x128xf32>
      %1108 = arith.addf %1100, %1107 : vector<8x128xf32>
      %1109 = arith.addf %1104, %1108 : vector<8x128xf32>
      %cst_526 = arith.constant 0.000000e+00 : f32
      %1110 = vector.broadcast %cst_526 : f32 to vector<8x128xf32>
      %1111 = arith.maximumf %1109, %1110 : vector<8x128xf32>
      %cst_527 = arith.constant 0.00999999977 : f32
      %1112 = vector.broadcast %cst_527 : f32 to vector<8x128xf32>
      %1113 = arith.cmpf oge, %1111, %1112 : vector<8x128xf32>
      %1114 = arith.mulf %1111, %1111 : vector<8x128xf32>
      %cst_528 = arith.constant 5.000000e+01 : f32
      %1115 = vector.broadcast %cst_528 : f32 to vector<8x128xf32>
      %1116 = arith.mulf %1114, %1115 : vector<8x128xf32>
      %1117 = arith.select %1113, %1111, %1116 : vector<8x128xi1>, vector<8x128xf32>
      %c0_529 = arith.constant 0 : index
      %c11_530 = arith.constant 11 : index
      %1118 = memref.load %arg2[%c0_529, %c11_530] : memref<2x16xf32, #tpu.memory_space<smem>>
      %1119 = vector.broadcast %1118 : f32 to vector<8x128xf32>
      %1120 = arith.mulf %1119, %5 : vector<8x128xf32>
      %c1_531 = arith.constant 1 : index
      %c11_532 = arith.constant 11 : index
      %1121 = memref.load %arg2[%c1_531, %c11_532] : memref<2x16xf32, #tpu.memory_space<smem>>
      %1122 = vector.broadcast %1121 : f32 to vector<8x128xf32>
      %1123 = arith.mulf %1122, %8 : vector<8x128xf32>
      %1124 = arith.addf %1120, %1123 : vector<8x128xf32>
      %c0_533 = arith.constant 0 : index
      %c11_534 = arith.constant 11 : index
      %1125 = memref.load %arg3[%c0_533, %c11_534] : memref<16x16xf32, #tpu.memory_space<smem>>
      %1126 = vector.broadcast %1125 : f32 to vector<8x128xf32>
      %1127 = arith.mulf %1126, %23 : vector<8x128xf32>
      %c1_535 = arith.constant 1 : index
      %c11_536 = arith.constant 11 : index
      %1128 = memref.load %arg3[%c1_535, %c11_536] : memref<16x16xf32, #tpu.memory_space<smem>>
      %1129 = vector.broadcast %1128 : f32 to vector<8x128xf32>
      %1130 = arith.mulf %1129, %38 : vector<8x128xf32>
      %1131 = arith.addf %1127, %1130 : vector<8x128xf32>
      %c2_537 = arith.constant 2 : index
      %c11_538 = arith.constant 11 : index
      %1132 = memref.load %arg3[%c2_537, %c11_538] : memref<16x16xf32, #tpu.memory_space<smem>>
      %1133 = vector.broadcast %1132 : f32 to vector<8x128xf32>
      %1134 = arith.mulf %1133, %53 : vector<8x128xf32>
      %1135 = arith.addf %1124, %1134 : vector<8x128xf32>
      %c3_539 = arith.constant 3 : index
      %c11_540 = arith.constant 11 : index
      %1136 = memref.load %arg3[%c3_539, %c11_540] : memref<16x16xf32, #tpu.memory_space<smem>>
      %1137 = vector.broadcast %1136 : f32 to vector<8x128xf32>
      %1138 = arith.mulf %1137, %68 : vector<8x128xf32>
      %1139 = arith.addf %1131, %1138 : vector<8x128xf32>
      %c4_541 = arith.constant 4 : index
      %c11_542 = arith.constant 11 : index
      %1140 = memref.load %arg3[%c4_541, %c11_542] : memref<16x16xf32, #tpu.memory_space<smem>>
      %1141 = vector.broadcast %1140 : f32 to vector<8x128xf32>
      %1142 = arith.mulf %1141, %83 : vector<8x128xf32>
      %1143 = arith.addf %1135, %1142 : vector<8x128xf32>
      %c5_543 = arith.constant 5 : index
      %c11_544 = arith.constant 11 : index
      %1144 = memref.load %arg3[%c5_543, %c11_544] : memref<16x16xf32, #tpu.memory_space<smem>>
      %1145 = vector.broadcast %1144 : f32 to vector<8x128xf32>
      %1146 = arith.mulf %1145, %98 : vector<8x128xf32>
      %1147 = arith.addf %1139, %1146 : vector<8x128xf32>
      %c6_545 = arith.constant 6 : index
      %c11_546 = arith.constant 11 : index
      %1148 = memref.load %arg3[%c6_545, %c11_546] : memref<16x16xf32, #tpu.memory_space<smem>>
      %1149 = vector.broadcast %1148 : f32 to vector<8x128xf32>
      %1150 = arith.mulf %1149, %113 : vector<8x128xf32>
      %1151 = arith.addf %1143, %1150 : vector<8x128xf32>
      %c7_547 = arith.constant 7 : index
      %c11_548 = arith.constant 11 : index
      %1152 = memref.load %arg3[%c7_547, %c11_548] : memref<16x16xf32, #tpu.memory_space<smem>>
      %1153 = vector.broadcast %1152 : f32 to vector<8x128xf32>
      %1154 = arith.mulf %1153, %128 : vector<8x128xf32>
      %1155 = arith.addf %1147, %1154 : vector<8x128xf32>
      %c8_549 = arith.constant 8 : index
      %c11_550 = arith.constant 11 : index
      %1156 = memref.load %arg3[%c8_549, %c11_550] : memref<16x16xf32, #tpu.memory_space<smem>>
      %1157 = vector.broadcast %1156 : f32 to vector<8x128xf32>
      %1158 = arith.mulf %1157, %143 : vector<8x128xf32>
      %1159 = arith.addf %1151, %1158 : vector<8x128xf32>
      %c9_551 = arith.constant 9 : index
      %c11_552 = arith.constant 11 : index
      %1160 = memref.load %arg3[%c9_551, %c11_552] : memref<16x16xf32, #tpu.memory_space<smem>>
      %1161 = vector.broadcast %1160 : f32 to vector<8x128xf32>
      %1162 = arith.mulf %1161, %158 : vector<8x128xf32>
      %1163 = arith.addf %1155, %1162 : vector<8x128xf32>
      %c10_553 = arith.constant 10 : index
      %c11_554 = arith.constant 11 : index
      %1164 = memref.load %arg3[%c10_553, %c11_554] : memref<16x16xf32, #tpu.memory_space<smem>>
      %1165 = vector.broadcast %1164 : f32 to vector<8x128xf32>
      %1166 = arith.mulf %1165, %173 : vector<8x128xf32>
      %1167 = arith.addf %1159, %1166 : vector<8x128xf32>
      %c11_555 = arith.constant 11 : index
      %c11_556 = arith.constant 11 : index
      %1168 = memref.load %arg3[%c11_555, %c11_556] : memref<16x16xf32, #tpu.memory_space<smem>>
      %1169 = vector.broadcast %1168 : f32 to vector<8x128xf32>
      %1170 = arith.mulf %1169, %188 : vector<8x128xf32>
      %1171 = arith.addf %1163, %1170 : vector<8x128xf32>
      %c12_557 = arith.constant 12 : index
      %c11_558 = arith.constant 11 : index
      %1172 = memref.load %arg3[%c12_557, %c11_558] : memref<16x16xf32, #tpu.memory_space<smem>>
      %1173 = vector.broadcast %1172 : f32 to vector<8x128xf32>
      %1174 = arith.mulf %1173, %203 : vector<8x128xf32>
      %1175 = arith.addf %1167, %1174 : vector<8x128xf32>
      %c13_559 = arith.constant 13 : index
      %c11_560 = arith.constant 11 : index
      %1176 = memref.load %arg3[%c13_559, %c11_560] : memref<16x16xf32, #tpu.memory_space<smem>>
      %1177 = vector.broadcast %1176 : f32 to vector<8x128xf32>
      %1178 = arith.mulf %1177, %218 : vector<8x128xf32>
      %1179 = arith.addf %1171, %1178 : vector<8x128xf32>
      %c14_561 = arith.constant 14 : index
      %c11_562 = arith.constant 11 : index
      %1180 = memref.load %arg3[%c14_561, %c11_562] : memref<16x16xf32, #tpu.memory_space<smem>>
      %1181 = vector.broadcast %1180 : f32 to vector<8x128xf32>
      %1182 = arith.mulf %1181, %233 : vector<8x128xf32>
      %1183 = arith.addf %1175, %1182 : vector<8x128xf32>
      %c15_563 = arith.constant 15 : index
      %c11_564 = arith.constant 11 : index
      %1184 = memref.load %arg3[%c15_563, %c11_564] : memref<16x16xf32, #tpu.memory_space<smem>>
      %1185 = vector.broadcast %1184 : f32 to vector<8x128xf32>
      %1186 = arith.mulf %1185, %248 : vector<8x128xf32>
      %1187 = arith.addf %1179, %1186 : vector<8x128xf32>
      %1188 = arith.addf %1183, %1187 : vector<8x128xf32>
      %cst_565 = arith.constant 0.000000e+00 : f32
      %1189 = vector.broadcast %cst_565 : f32 to vector<8x128xf32>
      %1190 = arith.maximumf %1188, %1189 : vector<8x128xf32>
      %cst_566 = arith.constant 0.00999999977 : f32
      %1191 = vector.broadcast %cst_566 : f32 to vector<8x128xf32>
      %1192 = arith.cmpf oge, %1190, %1191 : vector<8x128xf32>
      %1193 = arith.mulf %1190, %1190 : vector<8x128xf32>
      %cst_567 = arith.constant 5.000000e+01 : f32
      %1194 = vector.broadcast %cst_567 : f32 to vector<8x128xf32>
      %1195 = arith.mulf %1193, %1194 : vector<8x128xf32>
      %1196 = arith.select %1192, %1190, %1195 : vector<8x128xi1>, vector<8x128xf32>
      %c0_568 = arith.constant 0 : index
      %c12_569 = arith.constant 12 : index
      %1197 = memref.load %arg2[%c0_568, %c12_569] : memref<2x16xf32, #tpu.memory_space<smem>>
      %1198 = vector.broadcast %1197 : f32 to vector<8x128xf32>
      %1199 = arith.mulf %1198, %5 : vector<8x128xf32>
      %c1_570 = arith.constant 1 : index
      %c12_571 = arith.constant 12 : index
      %1200 = memref.load %arg2[%c1_570, %c12_571] : memref<2x16xf32, #tpu.memory_space<smem>>
      %1201 = vector.broadcast %1200 : f32 to vector<8x128xf32>
      %1202 = arith.mulf %1201, %8 : vector<8x128xf32>
      %1203 = arith.addf %1199, %1202 : vector<8x128xf32>
      %c0_572 = arith.constant 0 : index
      %c12_573 = arith.constant 12 : index
      %1204 = memref.load %arg3[%c0_572, %c12_573] : memref<16x16xf32, #tpu.memory_space<smem>>
      %1205 = vector.broadcast %1204 : f32 to vector<8x128xf32>
      %1206 = arith.mulf %1205, %23 : vector<8x128xf32>
      %c1_574 = arith.constant 1 : index
      %c12_575 = arith.constant 12 : index
      %1207 = memref.load %arg3[%c1_574, %c12_575] : memref<16x16xf32, #tpu.memory_space<smem>>
      %1208 = vector.broadcast %1207 : f32 to vector<8x128xf32>
      %1209 = arith.mulf %1208, %38 : vector<8x128xf32>
      %1210 = arith.addf %1206, %1209 : vector<8x128xf32>
      %c2_576 = arith.constant 2 : index
      %c12_577 = arith.constant 12 : index
      %1211 = memref.load %arg3[%c2_576, %c12_577] : memref<16x16xf32, #tpu.memory_space<smem>>
      %1212 = vector.broadcast %1211 : f32 to vector<8x128xf32>
      %1213 = arith.mulf %1212, %53 : vector<8x128xf32>
      %1214 = arith.addf %1203, %1213 : vector<8x128xf32>
      %c3_578 = arith.constant 3 : index
      %c12_579 = arith.constant 12 : index
      %1215 = memref.load %arg3[%c3_578, %c12_579] : memref<16x16xf32, #tpu.memory_space<smem>>
      %1216 = vector.broadcast %1215 : f32 to vector<8x128xf32>
      %1217 = arith.mulf %1216, %68 : vector<8x128xf32>
      %1218 = arith.addf %1210, %1217 : vector<8x128xf32>
      %c4_580 = arith.constant 4 : index
      %c12_581 = arith.constant 12 : index
      %1219 = memref.load %arg3[%c4_580, %c12_581] : memref<16x16xf32, #tpu.memory_space<smem>>
      %1220 = vector.broadcast %1219 : f32 to vector<8x128xf32>
      %1221 = arith.mulf %1220, %83 : vector<8x128xf32>
      %1222 = arith.addf %1214, %1221 : vector<8x128xf32>
      %c5_582 = arith.constant 5 : index
      %c12_583 = arith.constant 12 : index
      %1223 = memref.load %arg3[%c5_582, %c12_583] : memref<16x16xf32, #tpu.memory_space<smem>>
      %1224 = vector.broadcast %1223 : f32 to vector<8x128xf32>
      %1225 = arith.mulf %1224, %98 : vector<8x128xf32>
      %1226 = arith.addf %1218, %1225 : vector<8x128xf32>
      %c6_584 = arith.constant 6 : index
      %c12_585 = arith.constant 12 : index
      %1227 = memref.load %arg3[%c6_584, %c12_585] : memref<16x16xf32, #tpu.memory_space<smem>>
      %1228 = vector.broadcast %1227 : f32 to vector<8x128xf32>
      %1229 = arith.mulf %1228, %113 : vector<8x128xf32>
      %1230 = arith.addf %1222, %1229 : vector<8x128xf32>
      %c7_586 = arith.constant 7 : index
      %c12_587 = arith.constant 12 : index
      %1231 = memref.load %arg3[%c7_586, %c12_587] : memref<16x16xf32, #tpu.memory_space<smem>>
      %1232 = vector.broadcast %1231 : f32 to vector<8x128xf32>
      %1233 = arith.mulf %1232, %128 : vector<8x128xf32>
      %1234 = arith.addf %1226, %1233 : vector<8x128xf32>
      %c8_588 = arith.constant 8 : index
      %c12_589 = arith.constant 12 : index
      %1235 = memref.load %arg3[%c8_588, %c12_589] : memref<16x16xf32, #tpu.memory_space<smem>>
      %1236 = vector.broadcast %1235 : f32 to vector<8x128xf32>
      %1237 = arith.mulf %1236, %143 : vector<8x128xf32>
      %1238 = arith.addf %1230, %1237 : vector<8x128xf32>
      %c9_590 = arith.constant 9 : index
      %c12_591 = arith.constant 12 : index
      %1239 = memref.load %arg3[%c9_590, %c12_591] : memref<16x16xf32, #tpu.memory_space<smem>>
      %1240 = vector.broadcast %1239 : f32 to vector<8x128xf32>
      %1241 = arith.mulf %1240, %158 : vector<8x128xf32>
      %1242 = arith.addf %1234, %1241 : vector<8x128xf32>
      %c10_592 = arith.constant 10 : index
      %c12_593 = arith.constant 12 : index
      %1243 = memref.load %arg3[%c10_592, %c12_593] : memref<16x16xf32, #tpu.memory_space<smem>>
      %1244 = vector.broadcast %1243 : f32 to vector<8x128xf32>
      %1245 = arith.mulf %1244, %173 : vector<8x128xf32>
      %1246 = arith.addf %1238, %1245 : vector<8x128xf32>
      %c11_594 = arith.constant 11 : index
      %c12_595 = arith.constant 12 : index
      %1247 = memref.load %arg3[%c11_594, %c12_595] : memref<16x16xf32, #tpu.memory_space<smem>>
      %1248 = vector.broadcast %1247 : f32 to vector<8x128xf32>
      %1249 = arith.mulf %1248, %188 : vector<8x128xf32>
      %1250 = arith.addf %1242, %1249 : vector<8x128xf32>
      %c12_596 = arith.constant 12 : index
      %c12_597 = arith.constant 12 : index
      %1251 = memref.load %arg3[%c12_596, %c12_597] : memref<16x16xf32, #tpu.memory_space<smem>>
      %1252 = vector.broadcast %1251 : f32 to vector<8x128xf32>
      %1253 = arith.mulf %1252, %203 : vector<8x128xf32>
      %1254 = arith.addf %1246, %1253 : vector<8x128xf32>
      %c13_598 = arith.constant 13 : index
      %c12_599 = arith.constant 12 : index
      %1255 = memref.load %arg3[%c13_598, %c12_599] : memref<16x16xf32, #tpu.memory_space<smem>>
      %1256 = vector.broadcast %1255 : f32 to vector<8x128xf32>
      %1257 = arith.mulf %1256, %218 : vector<8x128xf32>
      %1258 = arith.addf %1250, %1257 : vector<8x128xf32>
      %c14_600 = arith.constant 14 : index
      %c12_601 = arith.constant 12 : index
      %1259 = memref.load %arg3[%c14_600, %c12_601] : memref<16x16xf32, #tpu.memory_space<smem>>
      %1260 = vector.broadcast %1259 : f32 to vector<8x128xf32>
      %1261 = arith.mulf %1260, %233 : vector<8x128xf32>
      %1262 = arith.addf %1254, %1261 : vector<8x128xf32>
      %c15_602 = arith.constant 15 : index
      %c12_603 = arith.constant 12 : index
      %1263 = memref.load %arg3[%c15_602, %c12_603] : memref<16x16xf32, #tpu.memory_space<smem>>
      %1264 = vector.broadcast %1263 : f32 to vector<8x128xf32>
      %1265 = arith.mulf %1264, %248 : vector<8x128xf32>
      %1266 = arith.addf %1258, %1265 : vector<8x128xf32>
      %1267 = arith.addf %1262, %1266 : vector<8x128xf32>
      %cst_604 = arith.constant 0.000000e+00 : f32
      %1268 = vector.broadcast %cst_604 : f32 to vector<8x128xf32>
      %1269 = arith.maximumf %1267, %1268 : vector<8x128xf32>
      %cst_605 = arith.constant 0.00999999977 : f32
      %1270 = vector.broadcast %cst_605 : f32 to vector<8x128xf32>
      %1271 = arith.cmpf oge, %1269, %1270 : vector<8x128xf32>
      %1272 = arith.mulf %1269, %1269 : vector<8x128xf32>
      %cst_606 = arith.constant 5.000000e+01 : f32
      %1273 = vector.broadcast %cst_606 : f32 to vector<8x128xf32>
      %1274 = arith.mulf %1272, %1273 : vector<8x128xf32>
      %1275 = arith.select %1271, %1269, %1274 : vector<8x128xi1>, vector<8x128xf32>
      %c0_607 = arith.constant 0 : index
      %c13_608 = arith.constant 13 : index
      %1276 = memref.load %arg2[%c0_607, %c13_608] : memref<2x16xf32, #tpu.memory_space<smem>>
      %1277 = vector.broadcast %1276 : f32 to vector<8x128xf32>
      %1278 = arith.mulf %1277, %5 : vector<8x128xf32>
      %c1_609 = arith.constant 1 : index
      %c13_610 = arith.constant 13 : index
      %1279 = memref.load %arg2[%c1_609, %c13_610] : memref<2x16xf32, #tpu.memory_space<smem>>
      %1280 = vector.broadcast %1279 : f32 to vector<8x128xf32>
      %1281 = arith.mulf %1280, %8 : vector<8x128xf32>
      %1282 = arith.addf %1278, %1281 : vector<8x128xf32>
      %c0_611 = arith.constant 0 : index
      %c13_612 = arith.constant 13 : index
      %1283 = memref.load %arg3[%c0_611, %c13_612] : memref<16x16xf32, #tpu.memory_space<smem>>
      %1284 = vector.broadcast %1283 : f32 to vector<8x128xf32>
      %1285 = arith.mulf %1284, %23 : vector<8x128xf32>
      %c1_613 = arith.constant 1 : index
      %c13_614 = arith.constant 13 : index
      %1286 = memref.load %arg3[%c1_613, %c13_614] : memref<16x16xf32, #tpu.memory_space<smem>>
      %1287 = vector.broadcast %1286 : f32 to vector<8x128xf32>
      %1288 = arith.mulf %1287, %38 : vector<8x128xf32>
      %1289 = arith.addf %1285, %1288 : vector<8x128xf32>
      %c2_615 = arith.constant 2 : index
      %c13_616 = arith.constant 13 : index
      %1290 = memref.load %arg3[%c2_615, %c13_616] : memref<16x16xf32, #tpu.memory_space<smem>>
      %1291 = vector.broadcast %1290 : f32 to vector<8x128xf32>
      %1292 = arith.mulf %1291, %53 : vector<8x128xf32>
      %1293 = arith.addf %1282, %1292 : vector<8x128xf32>
      %c3_617 = arith.constant 3 : index
      %c13_618 = arith.constant 13 : index
      %1294 = memref.load %arg3[%c3_617, %c13_618] : memref<16x16xf32, #tpu.memory_space<smem>>
      %1295 = vector.broadcast %1294 : f32 to vector<8x128xf32>
      %1296 = arith.mulf %1295, %68 : vector<8x128xf32>
      %1297 = arith.addf %1289, %1296 : vector<8x128xf32>
      %c4_619 = arith.constant 4 : index
      %c13_620 = arith.constant 13 : index
      %1298 = memref.load %arg3[%c4_619, %c13_620] : memref<16x16xf32, #tpu.memory_space<smem>>
      %1299 = vector.broadcast %1298 : f32 to vector<8x128xf32>
      %1300 = arith.mulf %1299, %83 : vector<8x128xf32>
      %1301 = arith.addf %1293, %1300 : vector<8x128xf32>
      %c5_621 = arith.constant 5 : index
      %c13_622 = arith.constant 13 : index
      %1302 = memref.load %arg3[%c5_621, %c13_622] : memref<16x16xf32, #tpu.memory_space<smem>>
      %1303 = vector.broadcast %1302 : f32 to vector<8x128xf32>
      %1304 = arith.mulf %1303, %98 : vector<8x128xf32>
      %1305 = arith.addf %1297, %1304 : vector<8x128xf32>
      %c6_623 = arith.constant 6 : index
      %c13_624 = arith.constant 13 : index
      %1306 = memref.load %arg3[%c6_623, %c13_624] : memref<16x16xf32, #tpu.memory_space<smem>>
      %1307 = vector.broadcast %1306 : f32 to vector<8x128xf32>
      %1308 = arith.mulf %1307, %113 : vector<8x128xf32>
      %1309 = arith.addf %1301, %1308 : vector<8x128xf32>
      %c7_625 = arith.constant 7 : index
      %c13_626 = arith.constant 13 : index
      %1310 = memref.load %arg3[%c7_625, %c13_626] : memref<16x16xf32, #tpu.memory_space<smem>>
      %1311 = vector.broadcast %1310 : f32 to vector<8x128xf32>
      %1312 = arith.mulf %1311, %128 : vector<8x128xf32>
      %1313 = arith.addf %1305, %1312 : vector<8x128xf32>
      %c8_627 = arith.constant 8 : index
      %c13_628 = arith.constant 13 : index
      %1314 = memref.load %arg3[%c8_627, %c13_628] : memref<16x16xf32, #tpu.memory_space<smem>>
      %1315 = vector.broadcast %1314 : f32 to vector<8x128xf32>
      %1316 = arith.mulf %1315, %143 : vector<8x128xf32>
      %1317 = arith.addf %1309, %1316 : vector<8x128xf32>
      %c9_629 = arith.constant 9 : index
      %c13_630 = arith.constant 13 : index
      %1318 = memref.load %arg3[%c9_629, %c13_630] : memref<16x16xf32, #tpu.memory_space<smem>>
      %1319 = vector.broadcast %1318 : f32 to vector<8x128xf32>
      %1320 = arith.mulf %1319, %158 : vector<8x128xf32>
      %1321 = arith.addf %1313, %1320 : vector<8x128xf32>
      %c10_631 = arith.constant 10 : index
      %c13_632 = arith.constant 13 : index
      %1322 = memref.load %arg3[%c10_631, %c13_632] : memref<16x16xf32, #tpu.memory_space<smem>>
      %1323 = vector.broadcast %1322 : f32 to vector<8x128xf32>
      %1324 = arith.mulf %1323, %173 : vector<8x128xf32>
      %1325 = arith.addf %1317, %1324 : vector<8x128xf32>
      %c11_633 = arith.constant 11 : index
      %c13_634 = arith.constant 13 : index
      %1326 = memref.load %arg3[%c11_633, %c13_634] : memref<16x16xf32, #tpu.memory_space<smem>>
      %1327 = vector.broadcast %1326 : f32 to vector<8x128xf32>
      %1328 = arith.mulf %1327, %188 : vector<8x128xf32>
      %1329 = arith.addf %1321, %1328 : vector<8x128xf32>
      %c12_635 = arith.constant 12 : index
      %c13_636 = arith.constant 13 : index
      %1330 = memref.load %arg3[%c12_635, %c13_636] : memref<16x16xf32, #tpu.memory_space<smem>>
      %1331 = vector.broadcast %1330 : f32 to vector<8x128xf32>
      %1332 = arith.mulf %1331, %203 : vector<8x128xf32>
      %1333 = arith.addf %1325, %1332 : vector<8x128xf32>
      %c13_637 = arith.constant 13 : index
      %c13_638 = arith.constant 13 : index
      %1334 = memref.load %arg3[%c13_637, %c13_638] : memref<16x16xf32, #tpu.memory_space<smem>>
      %1335 = vector.broadcast %1334 : f32 to vector<8x128xf32>
      %1336 = arith.mulf %1335, %218 : vector<8x128xf32>
      %1337 = arith.addf %1329, %1336 : vector<8x128xf32>
      %c14_639 = arith.constant 14 : index
      %c13_640 = arith.constant 13 : index
      %1338 = memref.load %arg3[%c14_639, %c13_640] : memref<16x16xf32, #tpu.memory_space<smem>>
      %1339 = vector.broadcast %1338 : f32 to vector<8x128xf32>
      %1340 = arith.mulf %1339, %233 : vector<8x128xf32>
      %1341 = arith.addf %1333, %1340 : vector<8x128xf32>
      %c15_641 = arith.constant 15 : index
      %c13_642 = arith.constant 13 : index
      %1342 = memref.load %arg3[%c15_641, %c13_642] : memref<16x16xf32, #tpu.memory_space<smem>>
      %1343 = vector.broadcast %1342 : f32 to vector<8x128xf32>
      %1344 = arith.mulf %1343, %248 : vector<8x128xf32>
      %1345 = arith.addf %1337, %1344 : vector<8x128xf32>
      %1346 = arith.addf %1341, %1345 : vector<8x128xf32>
      %cst_643 = arith.constant 0.000000e+00 : f32
      %1347 = vector.broadcast %cst_643 : f32 to vector<8x128xf32>
      %1348 = arith.maximumf %1346, %1347 : vector<8x128xf32>
      %cst_644 = arith.constant 0.00999999977 : f32
      %1349 = vector.broadcast %cst_644 : f32 to vector<8x128xf32>
      %1350 = arith.cmpf oge, %1348, %1349 : vector<8x128xf32>
      %1351 = arith.mulf %1348, %1348 : vector<8x128xf32>
      %cst_645 = arith.constant 5.000000e+01 : f32
      %1352 = vector.broadcast %cst_645 : f32 to vector<8x128xf32>
      %1353 = arith.mulf %1351, %1352 : vector<8x128xf32>
      %1354 = arith.select %1350, %1348, %1353 : vector<8x128xi1>, vector<8x128xf32>
      %c0_646 = arith.constant 0 : index
      %c14_647 = arith.constant 14 : index
      %1355 = memref.load %arg2[%c0_646, %c14_647] : memref<2x16xf32, #tpu.memory_space<smem>>
      %1356 = vector.broadcast %1355 : f32 to vector<8x128xf32>
      %1357 = arith.mulf %1356, %5 : vector<8x128xf32>
      %c1_648 = arith.constant 1 : index
      %c14_649 = arith.constant 14 : index
      %1358 = memref.load %arg2[%c1_648, %c14_649] : memref<2x16xf32, #tpu.memory_space<smem>>
      %1359 = vector.broadcast %1358 : f32 to vector<8x128xf32>
      %1360 = arith.mulf %1359, %8 : vector<8x128xf32>
      %1361 = arith.addf %1357, %1360 : vector<8x128xf32>
      %c0_650 = arith.constant 0 : index
      %c14_651 = arith.constant 14 : index
      %1362 = memref.load %arg3[%c0_650, %c14_651] : memref<16x16xf32, #tpu.memory_space<smem>>
      %1363 = vector.broadcast %1362 : f32 to vector<8x128xf32>
      %1364 = arith.mulf %1363, %23 : vector<8x128xf32>
      %c1_652 = arith.constant 1 : index
      %c14_653 = arith.constant 14 : index
      %1365 = memref.load %arg3[%c1_652, %c14_653] : memref<16x16xf32, #tpu.memory_space<smem>>
      %1366 = vector.broadcast %1365 : f32 to vector<8x128xf32>
      %1367 = arith.mulf %1366, %38 : vector<8x128xf32>
      %1368 = arith.addf %1364, %1367 : vector<8x128xf32>
      %c2_654 = arith.constant 2 : index
      %c14_655 = arith.constant 14 : index
      %1369 = memref.load %arg3[%c2_654, %c14_655] : memref<16x16xf32, #tpu.memory_space<smem>>
      %1370 = vector.broadcast %1369 : f32 to vector<8x128xf32>
      %1371 = arith.mulf %1370, %53 : vector<8x128xf32>
      %1372 = arith.addf %1361, %1371 : vector<8x128xf32>
      %c3_656 = arith.constant 3 : index
      %c14_657 = arith.constant 14 : index
      %1373 = memref.load %arg3[%c3_656, %c14_657] : memref<16x16xf32, #tpu.memory_space<smem>>
      %1374 = vector.broadcast %1373 : f32 to vector<8x128xf32>
      %1375 = arith.mulf %1374, %68 : vector<8x128xf32>
      %1376 = arith.addf %1368, %1375 : vector<8x128xf32>
      %c4_658 = arith.constant 4 : index
      %c14_659 = arith.constant 14 : index
      %1377 = memref.load %arg3[%c4_658, %c14_659] : memref<16x16xf32, #tpu.memory_space<smem>>
      %1378 = vector.broadcast %1377 : f32 to vector<8x128xf32>
      %1379 = arith.mulf %1378, %83 : vector<8x128xf32>
      %1380 = arith.addf %1372, %1379 : vector<8x128xf32>
      %c5_660 = arith.constant 5 : index
      %c14_661 = arith.constant 14 : index
      %1381 = memref.load %arg3[%c5_660, %c14_661] : memref<16x16xf32, #tpu.memory_space<smem>>
      %1382 = vector.broadcast %1381 : f32 to vector<8x128xf32>
      %1383 = arith.mulf %1382, %98 : vector<8x128xf32>
      %1384 = arith.addf %1376, %1383 : vector<8x128xf32>
      %c6_662 = arith.constant 6 : index
      %c14_663 = arith.constant 14 : index
      %1385 = memref.load %arg3[%c6_662, %c14_663] : memref<16x16xf32, #tpu.memory_space<smem>>
      %1386 = vector.broadcast %1385 : f32 to vector<8x128xf32>
      %1387 = arith.mulf %1386, %113 : vector<8x128xf32>
      %1388 = arith.addf %1380, %1387 : vector<8x128xf32>
      %c7_664 = arith.constant 7 : index
      %c14_665 = arith.constant 14 : index
      %1389 = memref.load %arg3[%c7_664, %c14_665] : memref<16x16xf32, #tpu.memory_space<smem>>
      %1390 = vector.broadcast %1389 : f32 to vector<8x128xf32>
      %1391 = arith.mulf %1390, %128 : vector<8x128xf32>
      %1392 = arith.addf %1384, %1391 : vector<8x128xf32>
      %c8_666 = arith.constant 8 : index
      %c14_667 = arith.constant 14 : index
      %1393 = memref.load %arg3[%c8_666, %c14_667] : memref<16x16xf32, #tpu.memory_space<smem>>
      %1394 = vector.broadcast %1393 : f32 to vector<8x128xf32>
      %1395 = arith.mulf %1394, %143 : vector<8x128xf32>
      %1396 = arith.addf %1388, %1395 : vector<8x128xf32>
      %c9_668 = arith.constant 9 : index
      %c14_669 = arith.constant 14 : index
      %1397 = memref.load %arg3[%c9_668, %c14_669] : memref<16x16xf32, #tpu.memory_space<smem>>
      %1398 = vector.broadcast %1397 : f32 to vector<8x128xf32>
      %1399 = arith.mulf %1398, %158 : vector<8x128xf32>
      %1400 = arith.addf %1392, %1399 : vector<8x128xf32>
      %c10_670 = arith.constant 10 : index
      %c14_671 = arith.constant 14 : index
      %1401 = memref.load %arg3[%c10_670, %c14_671] : memref<16x16xf32, #tpu.memory_space<smem>>
      %1402 = vector.broadcast %1401 : f32 to vector<8x128xf32>
      %1403 = arith.mulf %1402, %173 : vector<8x128xf32>
      %1404 = arith.addf %1396, %1403 : vector<8x128xf32>
      %c11_672 = arith.constant 11 : index
      %c14_673 = arith.constant 14 : index
      %1405 = memref.load %arg3[%c11_672, %c14_673] : memref<16x16xf32, #tpu.memory_space<smem>>
      %1406 = vector.broadcast %1405 : f32 to vector<8x128xf32>
      %1407 = arith.mulf %1406, %188 : vector<8x128xf32>
      %1408 = arith.addf %1400, %1407 : vector<8x128xf32>
      %c12_674 = arith.constant 12 : index
      %c14_675 = arith.constant 14 : index
      %1409 = memref.load %arg3[%c12_674, %c14_675] : memref<16x16xf32, #tpu.memory_space<smem>>
      %1410 = vector.broadcast %1409 : f32 to vector<8x128xf32>
      %1411 = arith.mulf %1410, %203 : vector<8x128xf32>
      %1412 = arith.addf %1404, %1411 : vector<8x128xf32>
      %c13_676 = arith.constant 13 : index
      %c14_677 = arith.constant 14 : index
      %1413 = memref.load %arg3[%c13_676, %c14_677] : memref<16x16xf32, #tpu.memory_space<smem>>
      %1414 = vector.broadcast %1413 : f32 to vector<8x128xf32>
      %1415 = arith.mulf %1414, %218 : vector<8x128xf32>
      %1416 = arith.addf %1408, %1415 : vector<8x128xf32>
      %c14_678 = arith.constant 14 : index
      %c14_679 = arith.constant 14 : index
      %1417 = memref.load %arg3[%c14_678, %c14_679] : memref<16x16xf32, #tpu.memory_space<smem>>
      %1418 = vector.broadcast %1417 : f32 to vector<8x128xf32>
      %1419 = arith.mulf %1418, %233 : vector<8x128xf32>
      %1420 = arith.addf %1412, %1419 : vector<8x128xf32>
      %c15_680 = arith.constant 15 : index
      %c14_681 = arith.constant 14 : index
      %1421 = memref.load %arg3[%c15_680, %c14_681] : memref<16x16xf32, #tpu.memory_space<smem>>
      %1422 = vector.broadcast %1421 : f32 to vector<8x128xf32>
      %1423 = arith.mulf %1422, %248 : vector<8x128xf32>
      %1424 = arith.addf %1416, %1423 : vector<8x128xf32>
      %1425 = arith.addf %1420, %1424 : vector<8x128xf32>
      %cst_682 = arith.constant 0.000000e+00 : f32
      %1426 = vector.broadcast %cst_682 : f32 to vector<8x128xf32>
      %1427 = arith.maximumf %1425, %1426 : vector<8x128xf32>
      %cst_683 = arith.constant 0.00999999977 : f32
      %1428 = vector.broadcast %cst_683 : f32 to vector<8x128xf32>
      %1429 = arith.cmpf oge, %1427, %1428 : vector<8x128xf32>
      %1430 = arith.mulf %1427, %1427 : vector<8x128xf32>
      %cst_684 = arith.constant 5.000000e+01 : f32
      %1431 = vector.broadcast %cst_684 : f32 to vector<8x128xf32>
      %1432 = arith.mulf %1430, %1431 : vector<8x128xf32>
      %1433 = arith.select %1429, %1427, %1432 : vector<8x128xi1>, vector<8x128xf32>
      %c0_685 = arith.constant 0 : index
      %c15_686 = arith.constant 15 : index
      %1434 = memref.load %arg2[%c0_685, %c15_686] : memref<2x16xf32, #tpu.memory_space<smem>>
      %1435 = vector.broadcast %1434 : f32 to vector<8x128xf32>
      %1436 = arith.mulf %1435, %5 : vector<8x128xf32>
      %c1_687 = arith.constant 1 : index
      %c15_688 = arith.constant 15 : index
      %1437 = memref.load %arg2[%c1_687, %c15_688] : memref<2x16xf32, #tpu.memory_space<smem>>
      %1438 = vector.broadcast %1437 : f32 to vector<8x128xf32>
      %1439 = arith.mulf %1438, %8 : vector<8x128xf32>
      %1440 = arith.addf %1436, %1439 : vector<8x128xf32>
      %c0_689 = arith.constant 0 : index
      %c15_690 = arith.constant 15 : index
      %1441 = memref.load %arg3[%c0_689, %c15_690] : memref<16x16xf32, #tpu.memory_space<smem>>
      %1442 = vector.broadcast %1441 : f32 to vector<8x128xf32>
      %1443 = arith.mulf %1442, %23 : vector<8x128xf32>
      %c1_691 = arith.constant 1 : index
      %c15_692 = arith.constant 15 : index
      %1444 = memref.load %arg3[%c1_691, %c15_692] : memref<16x16xf32, #tpu.memory_space<smem>>
      %1445 = vector.broadcast %1444 : f32 to vector<8x128xf32>
      %1446 = arith.mulf %1445, %38 : vector<8x128xf32>
      %1447 = arith.addf %1443, %1446 : vector<8x128xf32>
      %c2_693 = arith.constant 2 : index
      %c15_694 = arith.constant 15 : index
      %1448 = memref.load %arg3[%c2_693, %c15_694] : memref<16x16xf32, #tpu.memory_space<smem>>
      %1449 = vector.broadcast %1448 : f32 to vector<8x128xf32>
      %1450 = arith.mulf %1449, %53 : vector<8x128xf32>
      %1451 = arith.addf %1440, %1450 : vector<8x128xf32>
      %c3_695 = arith.constant 3 : index
      %c15_696 = arith.constant 15 : index
      %1452 = memref.load %arg3[%c3_695, %c15_696] : memref<16x16xf32, #tpu.memory_space<smem>>
      %1453 = vector.broadcast %1452 : f32 to vector<8x128xf32>
      %1454 = arith.mulf %1453, %68 : vector<8x128xf32>
      %1455 = arith.addf %1447, %1454 : vector<8x128xf32>
      %c4_697 = arith.constant 4 : index
      %c15_698 = arith.constant 15 : index
      %1456 = memref.load %arg3[%c4_697, %c15_698] : memref<16x16xf32, #tpu.memory_space<smem>>
      %1457 = vector.broadcast %1456 : f32 to vector<8x128xf32>
      %1458 = arith.mulf %1457, %83 : vector<8x128xf32>
      %1459 = arith.addf %1451, %1458 : vector<8x128xf32>
      %c5_699 = arith.constant 5 : index
      %c15_700 = arith.constant 15 : index
      %1460 = memref.load %arg3[%c5_699, %c15_700] : memref<16x16xf32, #tpu.memory_space<smem>>
      %1461 = vector.broadcast %1460 : f32 to vector<8x128xf32>
      %1462 = arith.mulf %1461, %98 : vector<8x128xf32>
      %1463 = arith.addf %1455, %1462 : vector<8x128xf32>
      %c6_701 = arith.constant 6 : index
      %c15_702 = arith.constant 15 : index
      %1464 = memref.load %arg3[%c6_701, %c15_702] : memref<16x16xf32, #tpu.memory_space<smem>>
      %1465 = vector.broadcast %1464 : f32 to vector<8x128xf32>
      %1466 = arith.mulf %1465, %113 : vector<8x128xf32>
      %1467 = arith.addf %1459, %1466 : vector<8x128xf32>
      %c7_703 = arith.constant 7 : index
      %c15_704 = arith.constant 15 : index
      %1468 = memref.load %arg3[%c7_703, %c15_704] : memref<16x16xf32, #tpu.memory_space<smem>>
      %1469 = vector.broadcast %1468 : f32 to vector<8x128xf32>
      %1470 = arith.mulf %1469, %128 : vector<8x128xf32>
      %1471 = arith.addf %1463, %1470 : vector<8x128xf32>
      %c8_705 = arith.constant 8 : index
      %c15_706 = arith.constant 15 : index
      %1472 = memref.load %arg3[%c8_705, %c15_706] : memref<16x16xf32, #tpu.memory_space<smem>>
      %1473 = vector.broadcast %1472 : f32 to vector<8x128xf32>
      %1474 = arith.mulf %1473, %143 : vector<8x128xf32>
      %1475 = arith.addf %1467, %1474 : vector<8x128xf32>
      %c9_707 = arith.constant 9 : index
      %c15_708 = arith.constant 15 : index
      %1476 = memref.load %arg3[%c9_707, %c15_708] : memref<16x16xf32, #tpu.memory_space<smem>>
      %1477 = vector.broadcast %1476 : f32 to vector<8x128xf32>
      %1478 = arith.mulf %1477, %158 : vector<8x128xf32>
      %1479 = arith.addf %1471, %1478 : vector<8x128xf32>
      %c10_709 = arith.constant 10 : index
      %c15_710 = arith.constant 15 : index
      %1480 = memref.load %arg3[%c10_709, %c15_710] : memref<16x16xf32, #tpu.memory_space<smem>>
      %1481 = vector.broadcast %1480 : f32 to vector<8x128xf32>
      %1482 = arith.mulf %1481, %173 : vector<8x128xf32>
      %1483 = arith.addf %1475, %1482 : vector<8x128xf32>
      %c11_711 = arith.constant 11 : index
      %c15_712 = arith.constant 15 : index
      %1484 = memref.load %arg3[%c11_711, %c15_712] : memref<16x16xf32, #tpu.memory_space<smem>>
      %1485 = vector.broadcast %1484 : f32 to vector<8x128xf32>
      %1486 = arith.mulf %1485, %188 : vector<8x128xf32>
      %1487 = arith.addf %1479, %1486 : vector<8x128xf32>
      %c12_713 = arith.constant 12 : index
      %c15_714 = arith.constant 15 : index
      %1488 = memref.load %arg3[%c12_713, %c15_714] : memref<16x16xf32, #tpu.memory_space<smem>>
      %1489 = vector.broadcast %1488 : f32 to vector<8x128xf32>
      %1490 = arith.mulf %1489, %203 : vector<8x128xf32>
      %1491 = arith.addf %1483, %1490 : vector<8x128xf32>
      %c13_715 = arith.constant 13 : index
      %c15_716 = arith.constant 15 : index
      %1492 = memref.load %arg3[%c13_715, %c15_716] : memref<16x16xf32, #tpu.memory_space<smem>>
      %1493 = vector.broadcast %1492 : f32 to vector<8x128xf32>
      %1494 = arith.mulf %1493, %218 : vector<8x128xf32>
      %1495 = arith.addf %1487, %1494 : vector<8x128xf32>
      %c14_717 = arith.constant 14 : index
      %c15_718 = arith.constant 15 : index
      %1496 = memref.load %arg3[%c14_717, %c15_718] : memref<16x16xf32, #tpu.memory_space<smem>>
      %1497 = vector.broadcast %1496 : f32 to vector<8x128xf32>
      %1498 = arith.mulf %1497, %233 : vector<8x128xf32>
      %1499 = arith.addf %1491, %1498 : vector<8x128xf32>
      %c15_719 = arith.constant 15 : index
      %c15_720 = arith.constant 15 : index
      %1500 = memref.load %arg3[%c15_719, %c15_720] : memref<16x16xf32, #tpu.memory_space<smem>>
      %1501 = vector.broadcast %1500 : f32 to vector<8x128xf32>
      %1502 = arith.mulf %1501, %248 : vector<8x128xf32>
      %1503 = arith.addf %1495, %1502 : vector<8x128xf32>
      %1504 = arith.addf %1499, %1503 : vector<8x128xf32>
      %cst_721 = arith.constant 0.000000e+00 : f32
      %1505 = vector.broadcast %cst_721 : f32 to vector<8x128xf32>
      %1506 = arith.maximumf %1504, %1505 : vector<8x128xf32>
      %cst_722 = arith.constant 0.00999999977 : f32
      %1507 = vector.broadcast %cst_722 : f32 to vector<8x128xf32>
      %1508 = arith.cmpf oge, %1506, %1507 : vector<8x128xf32>
      %1509 = arith.mulf %1506, %1506 : vector<8x128xf32>
      %cst_723 = arith.constant 5.000000e+01 : f32
      %1510 = vector.broadcast %cst_723 : f32 to vector<8x128xf32>
      %1511 = arith.mulf %1509, %1510 : vector<8x128xf32>
      %1512 = arith.select %1508, %1506, %1511 : vector<8x128xi1>, vector<8x128xf32>
      %c0_724 = arith.constant 0 : index
      %1513 = memref.load %arg5[%c0_724] : memref<2xf32, #tpu.memory_space<smem>>
      %1514 = vector.broadcast %1513 : f32 to vector<8x128xf32>
      %1515 = arith.mulf %1514, %5 : vector<8x128xf32>
      %c1_725 = arith.constant 1 : index
      %1516 = memref.load %arg5[%c1_725] : memref<2xf32, #tpu.memory_space<smem>>
      %1517 = vector.broadcast %1516 : f32 to vector<8x128xf32>
      %1518 = arith.mulf %1517, %8 : vector<8x128xf32>
      %1519 = arith.addf %1515, %1518 : vector<8x128xf32>
      %c0_726 = arith.constant 0 : index
      %1520 = memref.load %arg4[%c0_726] : memref<16xf32, #tpu.memory_space<smem>>
      %1521 = vector.broadcast %1520 : f32 to vector<8x128xf32>
      %1522 = arith.mulf %1521, %327 : vector<8x128xf32>
      %c1_727 = arith.constant 1 : index
      %1523 = memref.load %arg4[%c1_727] : memref<16xf32, #tpu.memory_space<smem>>
      %1524 = vector.broadcast %1523 : f32 to vector<8x128xf32>
      %1525 = arith.mulf %1524, %406 : vector<8x128xf32>
      %1526 = arith.addf %1522, %1525 : vector<8x128xf32>
      %c2_728 = arith.constant 2 : index
      %1527 = memref.load %arg4[%c2_728] : memref<16xf32, #tpu.memory_space<smem>>
      %1528 = vector.broadcast %1527 : f32 to vector<8x128xf32>
      %1529 = arith.mulf %1528, %485 : vector<8x128xf32>
      %1530 = arith.addf %1519, %1529 : vector<8x128xf32>
      %c3_729 = arith.constant 3 : index
      %1531 = memref.load %arg4[%c3_729] : memref<16xf32, #tpu.memory_space<smem>>
      %1532 = vector.broadcast %1531 : f32 to vector<8x128xf32>
      %1533 = arith.mulf %1532, %564 : vector<8x128xf32>
      %1534 = arith.addf %1526, %1533 : vector<8x128xf32>
      %c4_730 = arith.constant 4 : index
      %1535 = memref.load %arg4[%c4_730] : memref<16xf32, #tpu.memory_space<smem>>
      %1536 = vector.broadcast %1535 : f32 to vector<8x128xf32>
      %1537 = arith.mulf %1536, %643 : vector<8x128xf32>
      %1538 = arith.addf %1530, %1537 : vector<8x128xf32>
      %c5_731 = arith.constant 5 : index
      %1539 = memref.load %arg4[%c5_731] : memref<16xf32, #tpu.memory_space<smem>>
      %1540 = vector.broadcast %1539 : f32 to vector<8x128xf32>
      %1541 = arith.mulf %1540, %722 : vector<8x128xf32>
      %1542 = arith.addf %1534, %1541 : vector<8x128xf32>
      %c6_732 = arith.constant 6 : index
      %1543 = memref.load %arg4[%c6_732] : memref<16xf32, #tpu.memory_space<smem>>
      %1544 = vector.broadcast %1543 : f32 to vector<8x128xf32>
      %1545 = arith.mulf %1544, %801 : vector<8x128xf32>
      %1546 = arith.addf %1538, %1545 : vector<8x128xf32>
      %c7_733 = arith.constant 7 : index
      %1547 = memref.load %arg4[%c7_733] : memref<16xf32, #tpu.memory_space<smem>>
      %1548 = vector.broadcast %1547 : f32 to vector<8x128xf32>
      %1549 = arith.mulf %1548, %880 : vector<8x128xf32>
      %1550 = arith.addf %1542, %1549 : vector<8x128xf32>
      %c8_734 = arith.constant 8 : index
      %1551 = memref.load %arg4[%c8_734] : memref<16xf32, #tpu.memory_space<smem>>
      %1552 = vector.broadcast %1551 : f32 to vector<8x128xf32>
      %1553 = arith.mulf %1552, %959 : vector<8x128xf32>
      %1554 = arith.addf %1546, %1553 : vector<8x128xf32>
      %c9_735 = arith.constant 9 : index
      %1555 = memref.load %arg4[%c9_735] : memref<16xf32, #tpu.memory_space<smem>>
      %1556 = vector.broadcast %1555 : f32 to vector<8x128xf32>
      %1557 = arith.mulf %1556, %1038 : vector<8x128xf32>
      %1558 = arith.addf %1550, %1557 : vector<8x128xf32>
      %c10_736 = arith.constant 10 : index
      %1559 = memref.load %arg4[%c10_736] : memref<16xf32, #tpu.memory_space<smem>>
      %1560 = vector.broadcast %1559 : f32 to vector<8x128xf32>
      %1561 = arith.mulf %1560, %1117 : vector<8x128xf32>
      %1562 = arith.addf %1554, %1561 : vector<8x128xf32>
      %c11_737 = arith.constant 11 : index
      %1563 = memref.load %arg4[%c11_737] : memref<16xf32, #tpu.memory_space<smem>>
      %1564 = vector.broadcast %1563 : f32 to vector<8x128xf32>
      %1565 = arith.mulf %1564, %1196 : vector<8x128xf32>
      %1566 = arith.addf %1558, %1565 : vector<8x128xf32>
      %c12_738 = arith.constant 12 : index
      %1567 = memref.load %arg4[%c12_738] : memref<16xf32, #tpu.memory_space<smem>>
      %1568 = vector.broadcast %1567 : f32 to vector<8x128xf32>
      %1569 = arith.mulf %1568, %1275 : vector<8x128xf32>
      %1570 = arith.addf %1562, %1569 : vector<8x128xf32>
      %c13_739 = arith.constant 13 : index
      %1571 = memref.load %arg4[%c13_739] : memref<16xf32, #tpu.memory_space<smem>>
      %1572 = vector.broadcast %1571 : f32 to vector<8x128xf32>
      %1573 = arith.mulf %1572, %1354 : vector<8x128xf32>
      %1574 = arith.addf %1566, %1573 : vector<8x128xf32>
      %c14_740 = arith.constant 14 : index
      %1575 = memref.load %arg4[%c14_740] : memref<16xf32, #tpu.memory_space<smem>>
      %1576 = vector.broadcast %1575 : f32 to vector<8x128xf32>
      %1577 = arith.mulf %1576, %1433 : vector<8x128xf32>
      %1578 = arith.addf %1570, %1577 : vector<8x128xf32>
      %c15_741 = arith.constant 15 : index
      %1579 = memref.load %arg4[%c15_741] : memref<16xf32, #tpu.memory_space<smem>>
      %1580 = vector.broadcast %1579 : f32 to vector<8x128xf32>
      %1581 = arith.mulf %1580, %1512 : vector<8x128xf32>
      %1582 = arith.addf %1574, %1581 : vector<8x128xf32>
      %1583 = arith.addf %1578, %1582 : vector<8x128xf32>
      %cst_742 = arith.constant 0.000000e+00 : f32
      %1584 = vector.broadcast %cst_742 : f32 to vector<8x128xf32>
      %1585 = arith.maximumf %1583, %1584 : vector<8x128xf32>
      %cst_743 = arith.constant 0.00999999977 : f32
      %1586 = vector.broadcast %cst_743 : f32 to vector<8x128xf32>
      %1587 = arith.cmpf oge, %1585, %1586 : vector<8x128xf32>
      %1588 = arith.mulf %1585, %1585 : vector<8x128xf32>
      %cst_744 = arith.constant 5.000000e+01 : f32
      %1589 = vector.broadcast %cst_744 : f32 to vector<8x128xf32>
      %1590 = arith.mulf %1588, %1589 : vector<8x128xf32>
      %1591 = arith.select %1587, %1585, %1590 : vector<8x128xi1>, vector<8x128xf32>
      %1592 = arith.index_cast %2 : i32 to index
      %c0_745 = arith.constant 0 : index
      %1593 = vector.load %arg7[%1592, %c0_745] : memref<16x128xf32, #tpu.memory_space<vmem>>, vector<8x128xf32>
      tpu.vector_store %arg7[%1592, %c0_745], %1591 {strides = array<i32>} : memref<16x128xf32, #tpu.memory_space<vmem>>, vector<8x128xf32>,
    }
    %c2_i32_0 = arith.constant 2 : i32
    return
  }
  func.func @transform_0(%arg0: i32) -> (i32, i32) {
    %c0_i32 = arith.constant 0 : i32
    %c0_i32_0 = arith.constant 0 : i32
    %c0_i32_1 = arith.constant 0 : i32
    return %c0_i32, %c0_i32_0 : i32, i32
  }
  func.func @transform_1(%arg0: i32) -> (i32, i32) {
    %c0_i32 = arith.constant 0 : i32
    %c0_i32_0 = arith.constant 0 : i32
    %c0_i32_1 = arith.constant 0 : i32
    return %c0_i32, %c0_i32_0 : i32, i32
  }
  func.func @transform_2(%arg0: i32) -> (i32, i32) {
    %c0_i32 = arith.constant 0 : i32
    %c0_i32_0 = arith.constant 0 : i32
    %c0_i32_1 = arith.constant 0 : i32
    return %c0_i32, %c0_i32_0 : i32, i32
  }
  func.func @transform_3(%arg0: i32) -> i32 {
    %c0_i32 = arith.constant 0 : i32
    %c0_i32_0 = arith.constant 0 : i32
    return %c0_i32 : i32
  }
  func.func @transform_4(%arg0: i32) -> i32 {
    %c0_i32 = arith.constant 0 : i32
    %c0_i32_0 = arith.constant 0 : i32
    return %c0_i32 : i32
  }
  func.func @transform_5(%arg0: i32) -> (i32, i32, i32) {
    %c0_i32 = arith.constant 0 : i32
    %c0_i32_0 = arith.constant 0 : i32
    %c0_i32_1 = arith.constant 0 : i32
    return %c0_i32, %arg0, %c0_i32_0 : i32, i32, i32
  }
  func.func @transform_6(%arg0: i32) -> (i32, i32) {
    %c0_i32 = arith.constant 0 : i32
    %c0_i32_0 = arith.constant 0 : i32
    return %arg0, %c0_i32 : i32, i32
  }
}

</mosaic_0001>

<llo_original>
// kernel: _lambda_.1
$region0: #{_lambda_.1}
  #allocation0 [shape = 'u32[]', space=smem, size = 0x4, offset = 0x4, fixed_abs, tag = 'smem constant byte address 0x4 - core index']
  #allocation1 [shape = 'u32[144,128]{1,0:T(1,128)}', space=vmem, size = 0x12000, scoped, tag = 'internal scratch']
  %s0 = inlined_call_operand.vmem [shape: f32[2,16], index: 0, kind: input, shape index: {}]
  %s1 = inlined_call_operand.vmem [shape: f32[2,16], index: 1, kind: input, shape index: {}]
  %s2 = inlined_call_operand.vmem [shape: f32[16,16], index: 2, kind: input, shape index: {}]
  %s3 = inlined_call_operand.vmem [shape: f32[16], index: 3, kind: input, shape index: {}]
  %s4 = inlined_call_operand.vmem [shape: f32[2], index: 4, kind: input, shape index: {}]
  %s5 = inlined_call_operand.vmem [shape: f32[2,32,128], index: 5, kind: input, shape index: {}]
  %s6 = inlined_call_operand.vmem [shape: f32[32,128], index: 6, kind: output, shape index: {}]
  %s7 = sld [smem:[#allocation0]]
  $region122: #{_lambda_.1} parent=0
    _
  %s9 = ssub.s32 1, %s7
  %s10 = scalar_select 0, %s9, %s7
  $region1: #{_lambda_.1} parent=0
    #allocation2 [shape = 'u8[1024]{0}', space=smem, size = 0x400, scoped, tag = 'input window, operand 0, single buffered']
    #allocation3 [shape = 's32[2]{0}', space=sflag, size = 0x8, scoped, tag = 'scoped memory for _lambda_.1']
    #allocation4 [shape = 'u8[1024]{0}', space=smem, size = 0x400, scoped, tag = 'input window, operand 1, single buffered']
    #allocation5 [shape = 's32[1]{0}', space=sflag, size = 0x4, scoped, tag = 'scoped memory for _lambda_.1']
    #allocation6 [shape = 'u8[8192]{0}', space=smem, size = 0x2000, scoped, tag = 'input window, operand 2, single buffered']
    #allocation7 [shape = 'u8[512]{0}', space=smem, size = 0x200, scoped, tag = 'input window, operand 3, single buffered']
    #allocation8 [shape = 's32[1]{0}', space=sflag, size = 0x4, scoped, tag = 'scoped memory for _lambda_.1']
    #allocation9 [shape = 'u8[512]{0}', space=smem, size = 0x200, scoped, tag = 'input window, operand 4, single buffered']
    #allocation10 [shape = 'u8[32768]{0}', space=vmem, size = 0x8000, scoped, tag = 'input window, operand 5']
    %11 = vsyncpa [#allocation3], 0
    %12 = vsyncpa [#allocation5], 0
    %13 = vsyncpa [#allocation8], 0
    loop: start=0, step=1, limit=4
    $region2: #{_lambda_.1} parent=1 // loop_pre_header
      _
    $region3: #{_lambda_.1} parent=1 // loop_header
      %s15 = sphi 0, %s19
      %p16 = scmp.ge.s32.totalorder %s15, 4
      %s23 = sphi 0, %s23
      %s25 = sphi 0, %s23
      %s26 = sphi 0, %s25
      %s40 = sphi 0, %s26
      %s44 = sphi 0, %s44
      %s46 = sphi 0, %s44
      %s47 = sphi 0, %s46
      %s61 = sphi 0, %s47
      %s65 = sphi 0, %s65
      %s67 = sphi 0, %s65
      %s68 = sphi 0, %s67
      %s82 = sphi 0, %s68
      %s86 = sphi 0, %s86
      %s88 = sphi 0, %s86
      %s89 = sphi 0, %s88
      %s103 = sphi 0, %s89
      %s107 = sphi 0, %s107
      %s109 = sphi 0, %s107
      %s110 = sphi 0, %s109
      %s124 = sphi 0, %s110
      %s130 = sphi 0, %s132
      %s133 = sphi 0, %s130
      %s134 = sphi 0, %s133
      %s150 = sphi 0, %s134
      %s156 = sphi 0, %s158
      %s159 = sphi 0, %s156
      %s160 = sphi 0, %s159
      %s176 = sphi 0, %s160
    $region4: #{_lambda_.1} parent=1 // loop_header_branch
      %18 = sbr.rel (%p16) target = $region8
    $region5: #{_lambda_.1} parent=1 // loop_body
      %s20 = ssub.s32 %s15, 1
      %s21 = ssub.s32 %s15, 2
      %s22 = sadd.s32 %s15, 1
      %s24 = sadd.s32 %s23, 1
      %p27 = scmp.eq.s32.totalorder %s15, 1
      %p28 = scmp.ne.s32.totalorder %s23, %s25
      %p29 = scmp.eq.s32.totalorder %s15, 0
      %p30 = por %p28, %p29
      %p31 = scmp.ne.s32.totalorder %s23, %s25
      %p32 = scmp.eq.s32.totalorder %s20, 1
      %p33 = por %p31, %p32
      %p34 = scmp.ne.s32.totalorder %s25, %s26
      %p35 = scmp.eq.s32.totalorder %s20, 0
      %p36 = por %p34, %p35
      %p37 = scmp.ne.s32.totalorder %s25, %s26
      %p38 = scmp.eq.s32.totalorder %s21, 1
      %p39 = por %p37, %p38
      %p41 = scmp.ne.s32.totalorder %s26, %s40
      %p42 = scmp.eq.s32.totalorder %s21, 0
      %p43 = por %p41, %p42
      %s45 = sadd.s32 %s44, 1
      %p48 = scmp.eq.s32.totalorder %s15, 1
      %p49 = scmp.ne.s32.totalorder %s44, %s46
      %p50 = scmp.eq.s32.totalorder %s15, 0
      %p51 = por %p49, %p50
      %p52 = scmp.ne.s32.totalorder %s44, %s46
      %p53 = scmp.eq.s32.totalorder %s20, 1
      %p54 = por %p52, %p53
      %p55 = scmp.ne.s32.totalorder %s46, %s47
      %p56 = scmp.eq.s32.totalorder %s20, 0
      %p57 = por %p55, %p56
      %p58 = scmp.ne.s32.totalorder %s46, %s47
      %p59 = scmp.eq.s32.totalorder %s21, 1
      %p60 = por %p58, %p59
      %p62 = scmp.ne.s32.totalorder %s47, %s61
      %p63 = scmp.eq.s32.totalorder %s21, 0
      %p64 = por %p62, %p63
      %s66 = sadd.s32 %s65, 1
      %p69 = scmp.eq.s32.totalorder %s15, 1
      %p70 = scmp.ne.s32.totalorder %s65, %s67
      %p71 = scmp.eq.s32.totalorder %s15, 0
      %p72 = por %p70, %p71
      %p73 = scmp.ne.s32.totalorder %s65, %s67
      %p74 = scmp.eq.s32.totalorder %s20, 1
      %p75 = por %p73, %p74
      %p76 = scmp.ne.s32.totalorder %s67, %s68
      %p77 = scmp.eq.s32.totalorder %s20, 0
      %p78 = por %p76, %p77
      %p79 = scmp.ne.s32.totalorder %s67, %s68
      %p80 = scmp.eq.s32.totalorder %s21, 1
      %p81 = por %p79, %p80
      %p83 = scmp.ne.s32.totalorder %s68, %s82
      %p84 = scmp.eq.s32.totalorder %s21, 0
      %p85 = por %p83, %p84
      %s87 = sadd.s32 %s86, 1
      %p90 = scmp.eq.s32.totalorder %s15, 1
      %p91 = scmp.ne.s32.totalorder %s86, %s88
      %p92 = scmp.eq.s32.totalorder %s15, 0
      %p93 = por %p91, %p92
      %p94 = scmp.ne.s32.totalorder %s86, %s88
      %p95 = scmp.eq.s32.totalorder %s20, 1
      %p96 = por %p94, %p95
      %p97 = scmp.ne.s32.totalorder %s88, %s89
      %p98 = scmp.eq.s32.totalorder %s20, 0
      %p99 = por %p97, %p98
      %p100 = scmp.ne.s32.totalorder %s88, %s89
      %p101 = scmp.eq.s32.totalorder %s21, 1
      %p102 = por %p100, %p101
      %p104 = scmp.ne.s32.totalorder %s89, %s103
      %p105 = scmp.eq.s32.totalorder %s21, 0
      %p106 = por %p104, %p105
      %s108 = sadd.s32 %s107, 1
      %p111 = scmp.eq.s32.totalorder %s15, 1
      %p112 = scmp.ne.s32.totalorder %s107, %s109
      %p113 = scmp.eq.s32.totalorder %s15, 0
      %p114 = por %p112, %p113
      %p115 = scmp.ne.s32.totalorder %s107, %s109
      %p116 = scmp.eq.s32.totalorder %s20, 1
      %p117 = por %p115, %p116
      %p118 = scmp.ne.s32.totalorder %s109, %s110
      %p119 = scmp.eq.s32.totalorder %s20, 0
      %p120 = por %p118, %p119
      %p121 = scmp.ne.s32.totalorder %s109, %s110
      %p122 = scmp.eq.s32.totalorder %s21, 1
      %p123 = por %p121, %p122
      %p125 = scmp.ne.s32.totalorder %s110, %s124
      %p126 = scmp.eq.s32.totalorder %s21, 0
      %p127 = por %p125, %p126
      %s128 = ssub.s32 %s15, %s22
      %p129 = scmp.eq.s32.totalorder %s128, 0
      %s131 = sadd.s32 %s130, 1
      %s132 = scalar_select %p129, %s130, %s131
      %p135 = pneg %p129
      %p136 = scmp.eq.s32.totalorder %s15, 1
      %p137 = por %p135, %p136
      %p138 = scmp.ne.s32.totalorder %s130, %s133
      %p139 = scmp.eq.s32.totalorder %s15, 0
      %p140 = por %p138, %p139
      %p141 = scmp.ne.s32.totalorder %s130, %s133
      %p142 = scmp.eq.s32.totalorder %s20, 1
      %p143 = por %p141, %p142
      %p144 = scmp.ne.s32.totalorder %s133, %s134
      %p145 = scmp.eq.s32.totalorder %s20, 0
      %p146 = por %p144, %p145
      %p147 = scmp.ne.s32.totalorder %s133, %s134
      %p148 = scmp.eq.s32.totalorder %s21, 1
      %p149 = por %p147, %p148
      %p151 = scmp.ne.s32.totalorder %s134, %s150
      %p152 = scmp.eq.s32.totalorder %s21, 0
      %p153 = por %p151, %p152
      %s154 = ssub.s32 %s15, %s22
      %p155 = scmp.eq.s32.totalorder %s154, 0
      %s157 = sadd.s32 %s156, 1
      %s158 = scalar_select %p155, %s156, %s157
      %p161 = pneg %p155
      %p162 = scmp.eq.s32.totalorder %s15, 1
      %p163 = por %p161, %p162
      %p164 = scmp.ne.s32.totalorder %s156, %s159
      %p165 = scmp.eq.s32.totalorder %s15, 0
      %p166 = por %p164, %p165
      %p167 = scmp.ne.s32.totalorder %s156, %s159
      %p168 = scmp.eq.s32.totalorder %s20, 1
      %p169 = por %p167, %p168
      %p170 = scmp.ne.s32.totalorder %s159, %s160
      %p171 = scmp.eq.s32.totalorder %s20, 0
      %p172 = por %p170, %p171
      %p173 = scmp.ne.s32.totalorder %s159, %s160
      %p174 = scmp.eq.s32.totalorder %s21, 1
      %p175 = por %p173, %p174
      %p177 = scmp.ne.s32.totalorder %s160, %s176
      %p178 = scmp.eq.s32.totalorder %s21, 0
      %p179 = por %p177, %p178
      %p180 = scmp.le.s32.totalorder 1, %s15
      %p181 = scmp.lt.s32.totalorder %s15, 3
      %p182 = pnand %p180, %p181
      %p183 = pneg %p182
      // Predicated region
      $region9: #{_lambda_.1} parent=5 // pred_check
        _
      $region10: #{_lambda_.1} parent=5 // pred_check_branch
        %185 = sbr.rel (%p182) target = $region12
      $region11: #{_lambda_.1} parent=5 // pred_region
        %s186 = ssub.s32 %s15, 1
        // Predicated region
        $region13: #{_lambda_.1} parent=11 // pred_check
          %p187 = pneg %p36
        $region14: #{_lambda_.1} parent=11 // pred_check_branch
          %189 = sbr.rel (%p187) target = $region16
        $region15: #{_lambda_.1} parent=11 // pred_region
          %s191 = ssub.s32 32, 32
          %192 = vsyncadd [#allocation3], %s191
          %s194 = sshll.u32 %s0, 4
          %s195 = int_to_ptr.vmem [resolvable:$true] %s194
          %197 = dma.vmem_to_smem %s195, 32, [#allocation2], [#allocation3]
        $region16: #{_lambda_.1} parent=11 // pred_fallthru
          _
        // Predicated region
        $region17: #{_lambda_.1} parent=11 // pred_check
          %p198 = pneg %p57
        $region18: #{_lambda_.1} parent=11 // pred_check_branch
          %200 = sbr.rel (%p198) target = $region20
        $region19: #{_lambda_.1} parent=11 // pred_region
          %s202 = ssub.s32 32, 32
          %203 = vsyncadd [#allocation5], %s202
          %s205 = sshll.u32 %s1, 4
          %s206 = int_to_ptr.vmem [resolvable:$true] %s205
          %208 = dma.vmem_to_smem %s206, 32, [#allocation4], [#allocation5]
        $region20: #{_lambda_.1} parent=11 // pred_fallthru
          _
        // Predicated region
        $region21: #{_lambda_.1} parent=11 // pred_check
          %p209 = pneg %p78
        $region22: #{_lambda_.1} parent=11 // pred_check_branch
          %211 = sbr.rel (%p209) target = $region24
        $region23: #{_lambda_.1} parent=11 // pred_region
          %s213 = ssub.s32 256, 256
          %214 = vsyncadd [#allocation5], %s213
          %s215 = sshll.u32 %s2, 4
          %s216 = int_to_ptr.vmem [resolvable:$true] %s215
          %221 = dma.vmem_to_smem %s216, 256, [#allocation6], [#allocation5], 128, 128, 8
        $region24: #{_lambda_.1} parent=11 // pred_fallthru
          _
        // Predicated region
        $region25: #{_lambda_.1} parent=11 // pred_check
          %p222 = pneg %p99
        $region26: #{_lambda_.1} parent=11 // pred_check_branch
          %224 = sbr.rel (%p222) target = $region28
        $region27: #{_lambda_.1} parent=11 // pred_region
          %s226 = ssub.s32 16, 16
          %227 = vsyncadd [#allocation8], %s226
          %s229 = sshll.u32 %s3, 4
          %s230 = int_to_ptr.vmem [resolvable:$true] %s229
          %232 = dma.vmem_to_smem %s230, 16, [#allocation7], [#allocation8]
        $region28: #{_lambda_.1} parent=11 // pred_fallthru
          _
        // Predicated region
        $region29: #{_lambda_.1} parent=11 // pred_check
          %p233 = pneg %p120
        $region30: #{_lambda_.1} parent=11 // pred_check_branch
          %235 = sbr.rel (%p233) target = $region32
        $region31: #{_lambda_.1} parent=11 // pred_region
          %s237 = ssub.s32 16, 16
          %238 = vsyncadd [#allocation8], %s237
          %s240 = sshll.u32 %s4, 4
          %s241 = int_to_ptr.vmem [resolvable:$true] %s240
          %243 = dma.vmem_to_smem %s241, 16, [#allocation9], [#allocation8]
        $region32: #{_lambda_.1} parent=11 // pred_fallthru
          _
      $region12: #{_lambda_.1} parent=5 // pred_fallthru
        _
      %p244 = scmp.lt.s32.totalorder %s15, 2
      // Predicated region
      $region33: #{_lambda_.1} parent=5 // pred_check
        %p245 = pneg %p244
      $region34: #{_lambda_.1} parent=5 // pred_check_branch
        %247 = sbr.rel (%p245) target = $region36
      $region35: #{_lambda_.1} parent=5 // pred_region
        // Predicated region
        $region37: #{_lambda_.1} parent=35 // pred_check
          %p248 = pneg %p140
        $region38: #{_lambda_.1} parent=35 // pred_check_branch
          %250 = sbr.rel (%p248) target = $region40
        $region39: #{_lambda_.1} parent=35 // pred_region
          %s251 = sand.u32 %s130, 1
          %s252 = sand.u32 %s130, 1
          %s253 = smul.addr %s252, 32
          %s254 = scalar_lea.vmem [#allocation10], %s253
          %s255 = smul.u32 2, %s15
          %s256 = smul.addr %s255, 8
          %s257 = scalar_lea.vmem %s5, %s256
          // Predicated region
          $region41: #{_lambda_.1} parent=39 // pred_check
            _
          $region42: #{_lambda_.1} parent=39 // pred_check_branch
            %259 = sbr.rel (0) target = $region44
          $region43: #{_lambda_.1} parent=39 // pred_region
            // Predicated region
            $region45: #{_lambda_.1} parent=43 // pred_check
              _
            $region46: #{_lambda_.1} parent=43 // pred_check_branch
              %261 = sbr.rel (0) target = $region48
            $region47: #{_lambda_.1} parent=43 // pred_region
              // Predicated region
              $region60: #{_lambda_.1} parent=47 // pred_check
                _
              $region61: #{_lambda_.1} parent=47 // pred_check_branch
                %283 = sbr.rel (0) target = $region63
              $region62: #{_lambda_.1} parent=47 // pred_region
                loop: start=0, step=1, limit=1
                $region64: #{_lambda_.1} parent=62 // loop_pre_header
                  _
                $region65: #{_lambda_.1} parent=62 // loop_header
                  %s285 = sphi 0, %s289
                  %p286 = scmp.ge.s32.totalorder %s285, 1
                  %s290 = sphi %s257, %s257
                  %s291 = sphi %s254, %s254
                $region66: #{_lambda_.1} parent=62 // loop_header_branch
                  %288 = sbr.rel (%p286) target = $region70
                $region67: #{_lambda_.1} parent=62 // loop_body
                  %v292 = vld [vmem:[%s290] sm:$0xff]
                  %293 = vst [vmem:[%s291] sm:$0xff] %v292
                  %v294 = vld [vmem:[%s290 + $0x8] sm:$0xff]
                  %295 = vst [vmem:[%s291 + $0x8] sm:$0xff] %v294
                  %v296 = vld [vmem:[%s290 + $0x20] sm:$0xff]
                  %297 = vst [vmem:[%s291 + $0x10] sm:$0xff] %v296
                  %v298 = vld [vmem:[%s290 + $0x28] sm:$0xff]
                  %299 = vst [vmem:[%s291 + $0x18] sm:$0xff] %v298
                $region68: #{_lambda_.1} parent=62 // loop_footer
                  %s289 = sadd.s32 1, %s285
                $region69: #{_lambda_.1} parent=62 // loop_footer_branch
                  %284 = sbr.rel target = $region65
                $region70: #{_lambda_.1} parent=62 // loop_exit
                  _
              $region63: #{_lambda_.1} parent=47 // pred_fallthru
                _
              // Predicated region
              $region71: #{_lambda_.1} parent=47 // pred_check
                _
              $region72: #{_lambda_.1} parent=47 // pred_check_branch
                %301 = sbr.rel target = $region74
              $region73: #{_lambda_.1} parent=47 // pred_region
                _
              $region74: #{_lambda_.1} parent=47 // pred_fallthru
                _
            $region48: #{_lambda_.1} parent=43 // pred_fallthru
              _
            // Predicated region
            $region49: #{_lambda_.1} parent=43 // pred_check
              _
            $region50: #{_lambda_.1} parent=43 // pred_check_branch
              %263 = sbr.rel target = $region52
            $region51: #{_lambda_.1} parent=43 // pred_region
              %s265 = ssub.s32 256, 1
              loop: start=0, step=1, limit=1
              $region53: #{_lambda_.1} parent=51 // loop_pre_header
                _
              $region54: #{_lambda_.1} parent=51 // loop_header
                %s267 = sphi 0, %s271
                %p268 = scmp.ge.s32.totalorder %s267, 1
                %s272 = sphi %s257, %s257
                %s273 = sphi %s254, %s254
              $region55: #{_lambda_.1} parent=51 // loop_header_branch
                %270 = sbr.rel (%p268) target = $region59
              $region56: #{_lambda_.1} parent=51 // loop_body
                %v274 = vld [vmem:[%s272] sm:%s265]
                %275 = vst [vmem:[%s273] sm:%s265] %v274
                %v276 = vld [vmem:[%s272 + $0x8] sm:%s265]
                %277 = vst [vmem:[%s273 + $0x8] sm:%s265] %v276
                %v278 = vld [vmem:[%s272 + $0x20] sm:%s265]
                %279 = vst [vmem:[%s273 + $0x10] sm:%s265] %v278
                %v280 = vld [vmem:[%s272 + $0x28] sm:%s265]
                %281 = vst [vmem:[%s273 + $0x18] sm:%s265] %v280
              $region57: #{_lambda_.1} parent=51 // loop_footer
                %s271 = sadd.s32 1, %s267
              $region58: #{_lambda_.1} parent=51 // loop_footer_branch
                %266 = sbr.rel target = $region54
              $region59: #{_lambda_.1} parent=51 // loop_exit
                _
            $region52: #{_lambda_.1} parent=43 // pred_fallthru
              _
          $region44: #{_lambda_.1} parent=39 // pred_fallthru
            _
          %302 = vnop
        $region40: #{_lambda_.1} parent=35 // pred_fallthru
          _
      $region36: #{_lambda_.1} parent=5 // pred_fallthru
        _
      %p303 = scmp.le.s32.totalorder 1, %s15
      %p304 = scmp.lt.s32.totalorder %s15, 3
      %p305 = pnand %p303, %p304
      %p306 = pneg %p305
      // Predicated region
      $region75: #{_lambda_.1} parent=5 // pred_check
        _
      $region76: #{_lambda_.1} parent=5 // pred_check_branch
        %308 = sbr.rel (%p305) target = $region78
      $region77: #{_lambda_.1} parent=5 // pred_region
        %s309 = ssub.s32 %s15, 1
        // Predicated region
        $region79: #{_lambda_.1} parent=77 // pred_check
          %p310 = pneg %p36
        $region80: #{_lambda_.1} parent=77 // pred_check_branch
          %312 = sbr.rel (%p310) target = $region82
        $region81: #{_lambda_.1} parent=77 // pred_region
          %313 = dma.done [#allocation3], 32
        $region82: #{_lambda_.1} parent=77 // pred_fallthru
          _
        // Predicated region
        $region83: #{_lambda_.1} parent=77 // pred_check
          %p314 = pneg %p57
        $region84: #{_lambda_.1} parent=77 // pred_check_branch
          %316 = sbr.rel (%p314) target = $region86
        $region85: #{_lambda_.1} parent=77 // pred_region
          %317 = dma.done [#allocation5], 32
        $region86: #{_lambda_.1} parent=77 // pred_fallthru
          _
        // Predicated region
        $region87: #{_lambda_.1} parent=77 // pred_check
          %p318 = pneg %p78
        $region88: #{_lambda_.1} parent=77 // pred_check_branch
          %320 = sbr.rel (%p318) target = $region90
        $region89: #{_lambda_.1} parent=77 // pred_region
          %321 = dma.done [#allocation5], 256
        $region90: #{_lambda_.1} parent=77 // pred_fallthru
          _
        // Predicated region
        $region91: #{_lambda_.1} parent=77 // pred_check
          %p322 = pneg %p99
        $region92: #{_lambda_.1} parent=77 // pred_check_branch
          %324 = sbr.rel (%p322) target = $region94
        $region93: #{_lambda_.1} parent=77 // pred_region
          %325 = dma.done [#allocation8], 16
        $region94: #{_lambda_.1} parent=77 // pred_fallthru
          _
        // Predicated region
        $region95: #{_lambda_.1} parent=77 // pred_check
          %p326 = pneg %p120
        $region96: #{_lambda_.1} parent=77 // pred_check_branch
          %328 = sbr.rel (%p326) target = $region98
        $region97: #{_lambda_.1} parent=77 // pred_region
          %329 = dma.done [#allocation8], 16
        $region98: #{_lambda_.1} parent=77 // pred_fallthru
          _
        %s330 = sand.u32 %s133, 1
        %s331 = sand.u32 %s133, 1
        %s332 = smul.addr %s331, 32
        %s333 = scalar_lea.vmem [#allocation10], %s332
        // Predicated region
        $region99: #{_lambda_.1} parent=77 // pred_check
          %p334 = pneg %p146
        $region100: #{_lambda_.1} parent=77 // pred_check_branch
          %336 = sbr.rel (%p334) target = $region102
        $region101: #{_lambda_.1} parent=77 // pred_region
          _
        $region102: #{_lambda_.1} parent=77 // pred_fallthru
          _
        %337 = sfence
        %p338 = pneg %p36
        %p339 = pneg %p33
        %p340 = pneg %p57
        %p341 = pneg %p54
        %p342 = pneg %p78
        %p343 = pneg %p75
        %p344 = pneg %p99
        %p345 = pneg %p96
        %p346 = pneg %p120
        %p347 = pneg %p117
        %s348 = sand.u32 %s133, 1
        %s349 = sand.u32 %s133, 1
        %s350 = smul.addr %s349, 32
        %s351 = scalar_lea.vmem [#allocation10], %s350
        %p352 = pneg %p146
        %p353 = pneg %p143
        %p354 = pneg %p172
        %p355 = pneg %p169
        %s356 = smul.u32 2, %s20
        %p357 = scmp.lt.s32.totalorder %s356, 3
        %s358 = scalar_select %p357, %s356, 3
        %s359 = smul.addr %s358, 8
        %s360 = scalar_lea.vmem %s6, %s359
        %s361 = smul.u32 2, %s20
        %s362 = smul.u32 2, %s20
        %p363 = scmp.lt.s32.totalorder %s362, 3
        %s364 = scalar_select %p363, %s362, 3
        %s365 = smul.addr %s364, 8
        %s366 = scalar_lea.vmem %s6, %s365
        %s367 = smul.u32 2, %s20
        loop: start=0, step=1, limit=2
        $region103: #{_lambda_.1} parent=77 // loop_pre_header
          _
        $region104: #{_lambda_.1} parent=77 // loop_header
          %s369 = sphi 0, %s373
          %p370 = scmp.ge.s32.totalorder %s369, 2
        $region105: #{_lambda_.1} parent=77 // loop_header_branch
          %372 = sbr.rel (%p370) target = $region109
        $region106: #{_lambda_.1} parent=77 // loop_body
          %s374 = smul.u32 %s369, 8
          %s375 = scalar_lea.vmem %s333, %s374 [#allocation10]
          %v376 = vld [vmem:[%s375] sm:$0xff]
          %s377 = sadd.s32 %s374, 16
          %s378 = scalar_lea.vmem %s333, %s377 [#allocation10]
          %v379 = vld [vmem:[%s378] sm:$0xff]
          %s380 = sld [smem:[#allocation2]]
          %v381 = vstv %s380
          %v382 = vmul.f32 %v381, %v376
          %s383 = sld [smem:[#allocation2 + $0x80]]
          %v384 = vstv %s383
          %v385 = vmul.f32 %v384, %v379
          %v386 = vadd.f32 %v382, %v385
          %v387 = vmax.f32 %v386, 0.0
          %vm388 = vcmp.ge.f32.partialorder %v387, 0.01
          %v389 = vmul.f32 %v387, %v387
          %v390 = vmul.f32 %v389, 50.0
          %v391 = vsel %vm388, %v387, %v390
          %s392 = sld [smem:[#allocation2 + $0x1]]
          %v393 = vstv %s392
          %v394 = vmul.f32 %v393, %v376
          %s395 = sld [smem:[#allocation2 + $0x81]]
          %v396 = vstv %s395
          %v397 = vmul.f32 %v396, %v379
          %v398 = vadd.f32 %v394, %v397
          %v399 = vmax.f32 %v398, 0.0
          %vm400 = vcmp.ge.f32.partialorder %v399, 0.01
          %v401 = vmul.f32 %v399, %v399
          %v402 = vmul.f32 %v401, 50.0
          %v403 = vsel %vm400, %v399, %v402
          %s404 = sld [smem:[#allocation2 + $0x2]]
          %v405 = vstv %s404
          %v406 = vmul.f32 %v405, %v376
          %s407 = sld [smem:[#allocation2 + $0x82]]
          %v408 = vstv %s407
          %v409 = vmul.f32 %v408, %v379
          %v410 = vadd.f32 %v406, %v409
          %v411 = vmax.f32 %v410, 0.0
          %vm412 = vcmp.ge.f32.partialorder %v411, 0.01
          %v413 = vmul.f32 %v411, %v411
          %v414 = vmul.f32 %v413, 50.0
          %v415 = vsel %vm412, %v411, %v414
          %s416 = sld [smem:[#allocation2 + $0x3]]
          %v417 = vstv %s416
          %v418 = vmul.f32 %v417, %v376
          %s419 = sld [smem:[#allocation2 + $0x83]]
          %v420 = vstv %s419
          %v421 = vmul.f32 %v420, %v379
          %v422 = vadd.f32 %v418, %v421
          %v423 = vmax.f32 %v422, 0.0
          %vm424 = vcmp.ge.f32.partialorder %v423, 0.01
          %v425 = vmul.f32 %v423, %v423
          %v426 = vmul.f32 %v425, 50.0
          %v427 = vsel %vm424, %v423, %v426
          %s428 = sld [smem:[#allocation2 + $0x4]]
          %v429 = vstv %s428
          %v430 = vmul.f32 %v429, %v376
          %s431 = sld [smem:[#allocation2 + $0x84]]
          %v432 = vstv %s431
          %v433 = vmul.f32 %v432, %v379
          %v434 = vadd.f32 %v430, %v433
          %v435 = vmax.f32 %v434, 0.0
          %vm436 = vcmp.ge.f32.partialorder %v435, 0.01
          %v437 = vmul.f32 %v435, %v435
          %v438 = vmul.f32 %v437, 50.0
          %v439 = vsel %vm436, %v435, %v438
          %s440 = sld [smem:[#allocation2 + $0x5]]
          %v441 = vstv %s440
          %v442 = vmul.f32 %v441, %v376
          %s443 = sld [smem:[#allocation2 + $0x85]]
          %v444 = vstv %s443
          %v445 = vmul.f32 %v444, %v379
          %v446 = vadd.f32 %v442, %v445
          %v447 = vmax.f32 %v446, 0.0
          %vm448 = vcmp.ge.f32.partialorder %v447, 0.01
          %v449 = vmul.f32 %v447, %v447
          %v450 = vmul.f32 %v449, 50.0
          %v451 = vsel %vm448, %v447, %v450
          %s452 = sld [smem:[#allocation2 + $0x6]]
          %v453 = vstv %s452
          %v454 = vmul.f32 %v453, %v376
          %s455 = sld [smem:[#allocation2 + $0x86]]
          %v456 = vstv %s455
          %v457 = vmul.f32 %v456, %v379
          %v458 = vadd.f32 %v454, %v457
          %v459 = vmax.f32 %v458, 0.0
          %vm460 = vcmp.ge.f32.partialorder %v459, 0.01
          %v461 = vmul.f32 %v459, %v459
          %v462 = vmul.f32 %v461, 50.0
          %v463 = vsel %vm460, %v459, %v462
          %s464 = sld [smem:[#allocation2 + $0x7]]
          %v465 = vstv %s464
          %v466 = vmul.f32 %v465, %v376
          %s467 = sld [smem:[#allocation2 + $0x87]]
          %v468 = vstv %s467
          %v469 = vmul.f32 %v468, %v379
          %v470 = vadd.f32 %v466, %v469
          %v471 = vmax.f32 %v470, 0.0
          %vm472 = vcmp.ge.f32.partialorder %v471, 0.01
          %v473 = vmul.f32 %v471, %v471
          %v474 = vmul.f32 %v473, 50.0
          %v475 = vsel %vm472, %v471, %v474
          %s476 = sld [smem:[#allocation2 + $0x8]]
          %v477 = vstv %s476
          %v478 = vmul.f32 %v477, %v376
          %s479 = sld [smem:[#allocation2 + $0x88]]
          %v480 = vstv %s479
          %v481 = vmul.f32 %v480, %v379
          %v482 = vadd.f32 %v478, %v481
          %v483 = vmax.f32 %v482, 0.0
          %vm484 = vcmp.ge.f32.partialorder %v483, 0.01
          %v485 = vmul.f32 %v483, %v483
          %v486 = vmul.f32 %v485, 50.0
          %v487 = vsel %vm484, %v483, %v486
          %s488 = sld [smem:[#allocation2 + $0x9]]
          %v489 = vstv %s488
          %v490 = vmul.f32 %v489, %v376
          %s491 = sld [smem:[#allocation2 + $0x89]]
          %v492 = vstv %s491
          %v493 = vmul.f32 %v492, %v379
          %v494 = vadd.f32 %v490, %v493
          %v495 = vmax.f32 %v494, 0.0
          %vm496 = vcmp.ge.f32.partialorder %v495, 0.01
          %v497 = vmul.f32 %v495, %v495
          %v498 = vmul.f32 %v497, 50.0
          %v499 = vsel %vm496, %v495, %v498
          %s500 = sld [smem:[#allocation2 + $0xa]]
          %v501 = vstv %s500
          %v502 = vmul.f32 %v501, %v376
          %s503 = sld [smem:[#allocation2 + $0x8a]]
          %v504 = vstv %s503
          %v505 = vmul.f32 %v504, %v379
          %v506 = vadd.f32 %v502, %v505
          %v507 = vmax.f32 %v506, 0.0
          %vm508 = vcmp.ge.f32.partialorder %v507, 0.01
          %v509 = vmul.f32 %v507, %v507
          %v510 = vmul.f32 %v509, 50.0
          %v511 = vsel %vm508, %v507, %v510
          %s512 = sld [smem:[#allocation2 + $0xb]]
          %v513 = vstv %s512
          %v514 = vmul.f32 %v513, %v376
          %s515 = sld [smem:[#allocation2 + $0x8b]]
          %v516 = vstv %s515
          %v517 = vmul.f32 %v516, %v379
          %v518 = vadd.f32 %v514, %v517
          %v519 = vmax.f32 %v518, 0.0
          %vm520 = vcmp.ge.f32.partialorder %v519, 0.01
          %v521 = vmul.f32 %v519, %v519
          %v522 = vmul.f32 %v521, 50.0
          %v523 = vsel %vm520, %v519, %v522
          %s524 = sld [smem:[#allocation2 + $0xc]]
          %v525 = vstv %s524
          %v526 = vmul.f32 %v525, %v376
          %s527 = sld [smem:[#allocation2 + $0x8c]]
          %v528 = vstv %s527
          %v529 = vmul.f32 %v528, %v379
          %v530 = vadd.f32 %v526, %v529
          %v531 = vmax.f32 %v530, 0.0
          %vm532 = vcmp.ge.f32.partialorder %v531, 0.01
          %v533 = vmul.f32 %v531, %v531
          %v534 = vmul.f32 %v533, 50.0
          %v535 = vsel %vm532, %v531, %v534
          %s536 = sld [smem:[#allocation2 + $0xd]]
          %v537 = vstv %s536
          %v538 = vmul.f32 %v537, %v376
          %s539 = sld [smem:[#allocation2 + $0x8d]]
          %v540 = vstv %s539
          %v541 = vmul.f32 %v540, %v379
          %v542 = vadd.f32 %v538, %v541
          %v543 = vmax.f32 %v542, 0.0
          %vm544 = vcmp.ge.f32.partialorder %v543, 0.01
          %v545 = vmul.f32 %v543, %v543
          %v546 = vmul.f32 %v545, 50.0
          %v547 = vsel %vm544, %v543, %v546
          %s548 = sld [smem:[#allocation2 + $0xe]]
          %v549 = vstv %s548
          %v550 = vmul.f32 %v549, %v376
          %s551 = sld [smem:[#allocation2 + $0x8e]]
          %v552 = vstv %s551
          %v553 = vmul.f32 %v552, %v379
          %v554 = vadd.f32 %v550, %v553
          %v555 = vmax.f32 %v554, 0.0
          %vm556 = vcmp.ge.f32.partialorder %v555, 0.01
          %v557 = vmul.f32 %v555, %v555
          %v558 = vmul.f32 %v557, 50.0
          %v559 = vsel %vm556, %v555, %v558
          %s560 = sld [smem:[#allocation2 + $0xf]]
          %v561 = vstv %s560
          %v562 = vmul.f32 %v561, %v376
          %s563 = sld [smem:[#allocation2 + $0x8f]]
          %v564 = vstv %s563
          %v565 = vmul.f32 %v564, %v379
          %v566 = vadd.f32 %v562, %v565
          %v567 = vmax.f32 %v566, 0.0
          %vm568 = vcmp.ge.f32.partialorder %v567, 0.01
          %v569 = vmul.f32 %v567, %v567
          %v570 = vmul.f32 %v569, 50.0
          %v571 = vsel %vm568, %v567, %v570
          %s572 = sld [smem:[#allocation4]]
          %v573 = vstv %s572
          %v574 = vmul.f32 %v573, %v376
          %s575 = sld [smem:[#allocation4 + $0x80]]
          %v576 = vstv %s575
          %v577 = vmul.f32 %v576, %v379
          %v578 = vadd.f32 %v574, %v577
          %s579 = sld [smem:[#allocation6]]
          %v580 = vstv %s579
          %v581 = vmul.f32 %v580, %v391
          %s582 = sld [smem:[#allocation6 + $0x80]]
          %v583 = vstv %s582
          %v584 = vmul.f32 %v583, %v403
          %v585 = vadd.f32 %v581, %v584
          %s586 = sld [smem:[#allocation6 + $0x100]]
          %v587 = vstv %s586
          %v588 = vmul.f32 %v587, %v415
          %v589 = vadd.f32 %v578, %v588
          %s590 = sld [smem:[#allocation6 + $0x180]]
          %v591 = vstv %s590
          %v592 = vmul.f32 %v591, %v427
          %v593 = vadd.f32 %v585, %v592
          %s594 = sld [smem:[#allocation6 + $0x200]]
          %v595 = vstv %s594
          %v596 = vmul.f32 %v595, %v439
          %v597 = vadd.f32 %v589, %v596
          %s598 = sld [smem:[#allocation6 + $0x280]]
          %v599 = vstv %s598
          %v600 = vmul.f32 %v599, %v451
          %v601 = vadd.f32 %v593, %v600
          %s602 = sld [smem:[#allocation6 + $0x300]]
          %v603 = vstv %s602
          %v604 = vmul.f32 %v603, %v463
          %v605 = vadd.f32 %v597, %v604
          %s606 = sld [smem:[#allocation6 + $0x380]]
          %v607 = vstv %s606
          %v608 = vmul.f32 %v607, %v475
          %v609 = vadd.f32 %v601, %v608
          %s610 = sld [smem:[#allocation6 + $0x400]]
          %v611 = vstv %s610
          %v612 = vmul.f32 %v611, %v487
          %v613 = vadd.f32 %v605, %v612
          %s614 = sld [smem:[#allocation6 + $0x480]]
          %v615 = vstv %s614
          %v616 = vmul.f32 %v615, %v499
          %v617 = vadd.f32 %v609, %v616
          %s618 = sld [smem:[#allocation6 + $0x500]]
          %v619 = vstv %s618
          %v620 = vmul.f32 %v619, %v511
          %v621 = vadd.f32 %v613, %v620
          %s622 = sld [smem:[#allocation6 + $0x580]]
          %v623 = vstv %s622
          %v624 = vmul.f32 %v623, %v523
          %v625 = vadd.f32 %v617, %v624
          %s626 = sld [smem:[#allocation6 + $0x600]]
          %v627 = vstv %s626
          %v628 = vmul.f32 %v627, %v535
          %v629 = vadd.f32 %v621, %v628
          %s630 = sld [smem:[#allocation6 + $0x680]]
          %v631 = vstv %s630
          %v632 = vmul.f32 %v631, %v547
          %v633 = vadd.f32 %v625, %v632
          %s634 = sld [smem:[#allocation6 + $0x700]]
          %v635 = vstv %s634
          %v636 = vmul.f32 %v635, %v559
          %v637 = vadd.f32 %v629, %v636
          %s638 = sld [smem:[#allocation6 + $0x780]]
          %v639 = vstv %s638
          %v640 = vmul.f32 %v639, %v571
          %v641 = vadd.f32 %v633, %v640
          %v642 = vadd.f32 %v637, %v641
          %v643 = vmax.f32 %v642, 0.0
          %vm644 = vcmp.ge.f32.partialorder %v643, 0.01
          %v645 = vmul.f32 %v643, %v643
          %v646 = vmul.f32 %v645, 50.0
          %v647 = vsel %vm644, %v643, %v646
          %s648 = sld [smem:[#allocation4 + $0x1]]
          %v649 = vstv %s648
          %v650 = vmul.f32 %v649, %v376
          %s651 = sld [smem:[#allocation4 + $0x81]]
          %v652 = vstv %s651
          %v653 = vmul.f32 %v652, %v379
          %v654 = vadd.f32 %v650, %v653
          %s655 = sld [smem:[#allocation6 + $0x1]]
          %v656 = vstv %s655
          %v657 = vmul.f32 %v656, %v391
          %s658 = sld [smem:[#allocation6 + $0x81]]
          %v659 = vstv %s658
          %v660 = vmul.f32 %v659, %v403
          %v661 = vadd.f32 %v657, %v660
          %s662 = sld [smem:[#allocation6 + $0x101]]
          %v663 = vstv %s662
          %v664 = vmul.f32 %v663, %v415
          %v665 = vadd.f32 %v654, %v664
          %s666 = sld [smem:[#allocation6 + $0x181]]
          %v667 = vstv %s666
          %v668 = vmul.f32 %v667, %v427
          %v669 = vadd.f32 %v661, %v668
          %s670 = sld [smem:[#allocation6 + $0x201]]
          %v671 = vstv %s670
          %v672 = vmul.f32 %v671, %v439
          %v673 = vadd.f32 %v665, %v672
          %s674 = sld [smem:[#allocation6 + $0x281]]
          %v675 = vstv %s674
          %v676 = vmul.f32 %v675, %v451
          %v677 = vadd.f32 %v669, %v676
          %s678 = sld [smem:[#allocation6 + $0x301]]
          %v679 = vstv %s678
          %v680 = vmul.f32 %v679, %v463
          %v681 = vadd.f32 %v673, %v680
          %s682 = sld [smem:[#allocation6 + $0x381]]
          %v683 = vstv %s682
          %v684 = vmul.f32 %v683, %v475
          %v685 = vadd.f32 %v677, %v684
          %s686 = sld [smem:[#allocation6 + $0x401]]
          %v687 = vstv %s686
          %v688 = vmul.f32 %v687, %v487
          %v689 = vadd.f32 %v681, %v688
          %s690 = sld [smem:[#allocation6 + $0x481]]
          %v691 = vstv %s690
          %v692 = vmul.f32 %v691, %v499
          %v693 = vadd.f32 %v685, %v692
          %s694 = sld [smem:[#allocation6 + $0x501]]
          %v695 = vstv %s694
          %v696 = vmul.f32 %v695, %v511
          %v697 = vadd.f32 %v689, %v696
          %s698 = sld [smem:[#allocation6 + $0x581]]
          %v699 = vstv %s698
          %v700 = vmul.f32 %v699, %v523
          %v701 = vadd.f32 %v693, %v700
          %s702 = sld [smem:[#allocation6 + $0x601]]
          %v703 = vstv %s702
          %v704 = vmul.f32 %v703, %v535
          %v705 = vadd.f32 %v697, %v704
          %s706 = sld [smem:[#allocation6 + $0x681]]
          %v707 = vstv %s706
          %v708 = vmul.f32 %v707, %v547
          %v709 = vadd.f32 %v701, %v708
          %s710 = sld [smem:[#allocation6 + $0x701]]
          %v711 = vstv %s710
          %v712 = vmul.f32 %v711, %v559
          %v713 = vadd.f32 %v705, %v712
          %s714 = sld [smem:[#allocation6 + $0x781]]
          %v715 = vstv %s714
          %v716 = vmul.f32 %v715, %v571
          %v717 = vadd.f32 %v709, %v716
          %v718 = vadd.f32 %v713, %v717
          %v719 = vmax.f32 %v718, 0.0
          %vm720 = vcmp.ge.f32.partialorder %v719, 0.01
          %v721 = vmul.f32 %v719, %v719
          %v722 = vmul.f32 %v721, 50.0
          %v723 = vsel %vm720, %v719, %v722
          %s724 = sld [smem:[#allocation4 + $0x2]]
          %v725 = vstv %s724
          %v726 = vmul.f32 %v725, %v376
          %s727 = sld [smem:[#allocation4 + $0x82]]
          %v728 = vstv %s727
          %v729 = vmul.f32 %v728, %v379
          %v730 = vadd.f32 %v726, %v729
          %s731 = sld [smem:[#allocation6 + $0x2]]
          %v732 = vstv %s731
          %v733 = vmul.f32 %v732, %v391
          %s734 = sld [smem:[#allocation6 + $0x82]]
          %v735 = vstv %s734
          %v736 = vmul.f32 %v735, %v403
          %v737 = vadd.f32 %v733, %v736
          %s738 = sld [smem:[#allocation6 + $0x102]]
          %v739 = vstv %s738
          %v740 = vmul.f32 %v739, %v415
          %v741 = vadd.f32 %v730, %v740
          %s742 = sld [smem:[#allocation6 + $0x182]]
          %v743 = vstv %s742
          %v744 = vmul.f32 %v743, %v427
          %v745 = vadd.f32 %v737, %v744
          %s746 = sld [smem:[#allocation6 + $0x202]]
          %v747 = vstv %s746
          %v748 = vmul.f32 %v747, %v439
          %v749 = vadd.f32 %v741, %v748
          %s750 = sld [smem:[#allocation6 + $0x282]]
          %v751 = vstv %s750
          %v752 = vmul.f32 %v751, %v451
          %v753 = vadd.f32 %v745, %v752
          %s754 = sld [smem:[#allocation6 + $0x302]]
          %v755 = vstv %s754
          %v756 = vmul.f32 %v755, %v463
          %v757 = vadd.f32 %v749, %v756
          %s758 = sld [smem:[#allocation6 + $0x382]]
          %v759 = vstv %s758
          %v760 = vmul.f32 %v759, %v475
          %v761 = vadd.f32 %v753, %v760
          %s762 = sld [smem:[#allocation6 + $0x402]]
          %v763 = vstv %s762
          %v764 = vmul.f32 %v763, %v487
          %v765 = vadd.f32 %v757, %v764
          %s766 = sld [smem:[#allocation6 + $0x482]]
          %v767 = vstv %s766
          %v768 = vmul.f32 %v767, %v499
          %v769 = vadd.f32 %v761, %v768
          %s770 = sld [smem:[#allocation6 + $0x502]]
          %v771 = vstv %s770
          %v772 = vmul.f32 %v771, %v511
          %v773 = vadd.f32 %v765, %v772
          %s774 = sld [smem:[#allocation6 + $0x582]]
          %v775 = vstv %s774
          %v776 = vmul.f32 %v775, %v523
          %v777 = vadd.f32 %v769, %v776
          %s778 = sld [smem:[#allocation6 + $0x602]]
          %v779 = vstv %s778
          %v780 = vmul.f32 %v779, %v535
          %v781 = vadd.f32 %v773, %v780
          %s782 = sld [smem:[#allocation6 + $0x682]]
          %v783 = vstv %s782
          %v784 = vmul.f32 %v783, %v547
          %v785 = vadd.f32 %v777, %v784
          %s786 = sld [smem:[#allocation6 + $0x702]]
          %v787 = vstv %s786
          %v788 = vmul.f32 %v787, %v559
          %v789 = vadd.f32 %v781, %v788
          %s790 = sld [smem:[#allocation6 + $0x782]]
          %v791 = vstv %s790
          %v792 = vmul.f32 %v791, %v571
          %v793 = vadd.f32 %v785, %v792
          %v794 = vadd.f32 %v789, %v793
          %v795 = vmax.f32 %v794, 0.0
          %vm796 = vcmp.ge.f32.partialorder %v795, 0.01
          %v797 = vmul.f32 %v795, %v795
          %v798 = vmul.f32 %v797, 50.0
          %v799 = vsel %vm796, %v795, %v798
          %s800 = sld [smem:[#allocation4 + $0x3]]
          %v801 = vstv %s800
          %v802 = vmul.f32 %v801, %v376
          %s803 = sld [smem:[#allocation4 + $0x83]]
          %v804 = vstv %s803
          %v805 = vmul.f32 %v804, %v379
          %v806 = vadd.f32 %v802, %v805
          %s807 = sld [smem:[#allocation6 + $0x3]]
          %v808 = vstv %s807
          %v809 = vmul.f32 %v808, %v391
          %s810 = sld [smem:[#allocation6 + $0x83]]
          %v811 = vstv %s810
          %v812 = vmul.f32 %v811, %v403
          %v813 = vadd.f32 %v809, %v812
          %s814 = sld [smem:[#allocation6 + $0x103]]
          %v815 = vstv %s814
          %v816 = vmul.f32 %v815, %v415
          %v817 = vadd.f32 %v806, %v816
          %s818 = sld [smem:[#allocation6 + $0x183]]
          %v819 = vstv %s818
          %v820 = vmul.f32 %v819, %v427
          %v821 = vadd.f32 %v813, %v820
          %s822 = sld [smem:[#allocation6 + $0x203]]
          %v823 = vstv %s822
          %v824 = vmul.f32 %v823, %v439
          %v825 = vadd.f32 %v817, %v824
          %s826 = sld [smem:[#allocation6 + $0x283]]
          %v827 = vstv %s826
          %v828 = vmul.f32 %v827, %v451
          %v829 = vadd.f32 %v821, %v828
          %s830 = sld [smem:[#allocation6 + $0x303]]
          %v831 = vstv %s830
          %v832 = vmul.f32 %v831, %v463
          %v833 = vadd.f32 %v825, %v832
          %s834 = sld [smem:[#allocation6 + $0x383]]
          %v835 = vstv %s834
          %v836 = vmul.f32 %v835, %v475
          %v837 = vadd.f32 %v829, %v836
          %s838 = sld [smem:[#allocation6 + $0x403]]
          %v839 = vstv %s838
          %v840 = vmul.f32 %v839, %v487
          %v841 = vadd.f32 %v833, %v840
          %s842 = sld [smem:[#allocation6 + $0x483]]
          %v843 = vstv %s842
          %v844 = vmul.f32 %v843, %v499
          %v845 = vadd.f32 %v837, %v844
          %s846 = sld [smem:[#allocation6 + $0x503]]
          %v847 = vstv %s846
          %v848 = vmul.f32 %v847, %v511
          %v849 = vadd.f32 %v841, %v848
          %s850 = sld [smem:[#allocation6 + $0x583]]
          %v851 = vstv %s850
          %v852 = vmul.f32 %v851, %v523
          %v853 = vadd.f32 %v845, %v852
          %s854 = sld [smem:[#allocation6 + $0x603]]
          %v855 = vstv %s854
          %v856 = vmul.f32 %v855, %v535
          %v857 = vadd.f32 %v849, %v856
          %s858 = sld [smem:[#allocation6 + $0x683]]
          %v859 = vstv %s858
          %v860 = vmul.f32 %v859, %v547
          %v861 = vadd.f32 %v853, %v860
          %s862 = sld [smem:[#allocation6 + $0x703]]
          %v863 = vstv %s862
          %v864 = vmul.f32 %v863, %v559
          %v865 = vadd.f32 %v857, %v864
          %s866 = sld [smem:[#allocation6 + $0x783]]
          %v867 = vstv %s866
          %v868 = vmul.f32 %v867, %v571
          %v869 = vadd.f32 %v861, %v868
          %v870 = vadd.f32 %v865, %v869
          %v871 = vmax.f32 %v870, 0.0
          %vm872 = vcmp.ge.f32.partialorder %v871, 0.01
          %v873 = vmul.f32 %v871, %v871
          %v874 = vmul.f32 %v873, 50.0
          %v875 = vsel %vm872, %v871, %v874
          %s876 = sld [smem:[#allocation4 + $0x4]]
          %v877 = vstv %s876
          %v878 = vmul.f32 %v877, %v376
          %s879 = sld [smem:[#allocation4 + $0x84]]
          %v880 = vstv %s879
          %v881 = vmul.f32 %v880, %v379
          %v882 = vadd.f32 %v878, %v881
          %s883 = sld [smem:[#allocation6 + $0x4]]
          %v884 = vstv %s883
          %v885 = vmul.f32 %v884, %v391
          %s886 = sld [smem:[#allocation6 + $0x84]]
          %v887 = vstv %s886
          %v888 = vmul.f32 %v887, %v403
          %v889 = vadd.f32 %v885, %v888
          %s890 = sld [smem:[#allocation6 + $0x104]]
          %v891 = vstv %s890
          %v892 = vmul.f32 %v891, %v415
          %v893 = vadd.f32 %v882, %v892
          %s894 = sld [smem:[#allocation6 + $0x184]]
          %v895 = vstv %s894
          %v896 = vmul.f32 %v895, %v427
          %v897 = vadd.f32 %v889, %v896
          %s898 = sld [smem:[#allocation6 + $0x204]]
          %v899 = vstv %s898
          %v900 = vmul.f32 %v899, %v439
          %v901 = vadd.f32 %v893, %v900
          %s902 = sld [smem:[#allocation6 + $0x284]]
          %v903 = vstv %s902
          %v904 = vmul.f32 %v903, %v451
          %v905 = vadd.f32 %v897, %v904
          %s906 = sld [smem:[#allocation6 + $0x304]]
          %v907 = vstv %s906
          %v908 = vmul.f32 %v907, %v463
          %v909 = vadd.f32 %v901, %v908
          %s910 = sld [smem:[#allocation6 + $0x384]]
          %v911 = vstv %s910
          %v912 = vmul.f32 %v911, %v475
          %v913 = vadd.f32 %v905, %v912
          %s914 = sld [smem:[#allocation6 + $0x404]]
          %v915 = vstv %s914
          %v916 = vmul.f32 %v915, %v487
          %v917 = vadd.f32 %v909, %v916
          %s918 = sld [smem:[#allocation6 + $0x484]]
          %v919 = vstv %s918
          %v920 = vmul.f32 %v919, %v499
          %v921 = vadd.f32 %v913, %v920
          %s922 = sld [smem:[#allocation6 + $0x504]]
          %v923 = vstv %s922
          %v924 = vmul.f32 %v923, %v511
          %v925 = vadd.f32 %v917, %v924
          %s926 = sld [smem:[#allocation6 + $0x584]]
          %v927 = vstv %s926
          %v928 = vmul.f32 %v927, %v523
          %v929 = vadd.f32 %v921, %v928
          %s930 = sld [smem:[#allocation6 + $0x604]]
          %v931 = vstv %s930
          %v932 = vmul.f32 %v931, %v535
          %v933 = vadd.f32 %v925, %v932
          %s934 = sld [smem:[#allocation6 + $0x684]]
          %v935 = vstv %s934
          %v936 = vmul.f32 %v935, %v547
          %v937 = vadd.f32 %v929, %v936
          %s938 = sld [smem:[#allocation6 + $0x704]]
          %v939 = vstv %s938
          %v940 = vmul.f32 %v939, %v559
          %v941 = vadd.f32 %v933, %v940
          %s942 = sld [smem:[#allocation6 + $0x784]]
          %v943 = vstv %s942
          %v944 = vmul.f32 %v943, %v571
          %v945 = vadd.f32 %v937, %v944
          %v946 = vadd.f32 %v941, %v945
          %v947 = vmax.f32 %v946, 0.0
          %vm948 = vcmp.ge.f32.partialorder %v947, 0.01
          %v949 = vmul.f32 %v947, %v947
          %v950 = vmul.f32 %v949, 50.0
          %v951 = vsel %vm948, %v947, %v950
          %s952 = sld [smem:[#allocation4 + $0x5]]
          %v953 = vstv %s952
          %v954 = vmul.f32 %v953, %v376
          %s955 = sld [smem:[#allocation4 + $0x85]]
          %v956 = vstv %s955
          %v957 = vmul.f32 %v956, %v379
          %v958 = vadd.f32 %v954, %v957
          %s959 = sld [smem:[#allocation6 + $0x5]]
          %v960 = vstv %s959
          %v961 = vmul.f32 %v960, %v391
          %s962 = sld [smem:[#allocation6 + $0x85]]
          %v963 = vstv %s962
          %v964 = vmul.f32 %v963, %v403
          %v965 = vadd.f32 %v961, %v964
          %s966 = sld [smem:[#allocation6 + $0x105]]
          %v967 = vstv %s966
          %v968 = vmul.f32 %v967, %v415
          %v969 = vadd.f32 %v958, %v968
          %s970 = sld [smem:[#allocation6 + $0x185]]
          %v971 = vstv %s970
          %v972 = vmul.f32 %v971, %v427
          %v973 = vadd.f32 %v965, %v972
          %s974 = sld [smem:[#allocation6 + $0x205]]
          %v975 = vstv %s974
          %v976 = vmul.f32 %v975, %v439
          %v977 = vadd.f32 %v969, %v976
          %s978 = sld [smem:[#allocation6 + $0x285]]
          %v979 = vstv %s978
          %v980 = vmul.f32 %v979, %v451
          %v981 = vadd.f32 %v973, %v980
          %s982 = sld [smem:[#allocation6 + $0x305]]
          %v983 = vstv %s982
          %v984 = vmul.f32 %v983, %v463
          %v985 = vadd.f32 %v977, %v984
          %s986 = sld [smem:[#allocation6 + $0x385]]
          %v987 = vstv %s986
          %v988 = vmul.f32 %v987, %v475
          %v989 = vadd.f32 %v981, %v988
          %s990 = sld [smem:[#allocation6 + $0x405]]
          %v991 = vstv %s990
          %v992 = vmul.f32 %v991, %v487
          %v993 = vadd.f32 %v985, %v992
          %s994 = sld [smem:[#allocation6 + $0x485]]
          %v995 = vstv %s994
          %v996 = vmul.f32 %v995, %v499
          %v997 = vadd.f32 %v989, %v996
          %s998 = sld [smem:[#allocation6 + $0x505]]
          %v999 = vstv %s998
          %v1000 = vmul.f32 %v999, %v511
          %v1001 = vadd.f32 %v993, %v1000
          %s1002 = sld [smem:[#allocation6 + $0x585]]
          %v1003 = vstv %s1002
          %v1004 = vmul.f32 %v1003, %v523
          %v1005 = vadd.f32 %v997, %v1004
          %s1006 = sld [smem:[#allocation6 + $0x605]]
          %v1007 = vstv %s1006
          %v1008 = vmul.f32 %v1007, %v535
          %v1009 = vadd.f32 %v1001, %v1008
          %s1010 = sld [smem:[#allocation6 + $0x685]]
          %v1011 = vstv %s1010
          %v1012 = vmul.f32 %v1011, %v547
          %v1013 = vadd.f32 %v1005, %v1012
          %s1014 = sld [smem:[#allocation6 + $0x705]]
          %v1015 = vstv %s1014
          %v1016 = vmul.f32 %v1015, %v559
          %v1017 = vadd.f32 %v1009, %v1016
          %s1018 = sld [smem:[#allocation6 + $0x785]]
          %v1019 = vstv %s1018
          %v1020 = vmul.f32 %v1019, %v571
          %v1021 = vadd.f32 %v1013, %v1020
          %v1022 = vadd.f32 %v1017, %v1021
          %v1023 = vmax.f32 %v1022, 0.0
          %vm1024 = vcmp.ge.f32.partialorder %v1023, 0.01
          %v1025 = vmul.f32 %v1023, %v1023
          %v1026 = vmul.f32 %v1025, 50.0
          %v1027 = vsel %vm1024, %v1023, %v1026
          %s1028 = sld [smem:[#allocation4 + $0x6]]
          %v1029 = vstv %s1028
          %v1030 = vmul.f32 %v1029, %v376
          %s1031 = sld [smem:[#allocation4 + $0x86]]
          %v1032 = vstv %s1031
          %v1033 = vmul.f32 %v1032, %v379
          %v1034 = vadd.f32 %v1030, %v1033
          %s1035 = sld [smem:[#allocation6 + $0x6]]
          %v1036 = vstv %s1035
          %v1037 = vmul.f32 %v1036, %v391
          %s1038 = sld [smem:[#allocation6 + $0x86]]
          %v1039 = vstv %s1038
          %v1040 = vmul.f32 %v1039, %v403
          %v1041 = vadd.f32 %v1037, %v1040
          %s1042 = sld [smem:[#allocation6 + $0x106]]
          %v1043 = vstv %s1042
          %v1044 = vmul.f32 %v1043, %v415
          %v1045 = vadd.f32 %v1034, %v1044
          %s1046 = sld [smem:[#allocation6 + $0x186]]
          %v1047 = vstv %s1046
          %v1048 = vmul.f32 %v1047, %v427
          %v1049 = vadd.f32 %v1041, %v1048
          %s1050 = sld [smem:[#allocation6 + $0x206]]
          %v1051 = vstv %s1050
          %v1052 = vmul.f32 %v1051, %v439
          %v1053 = vadd.f32 %v1045, %v1052
          %s1054 = sld [smem:[#allocation6 + $0x286]]
          %v1055 = vstv %s1054
          %v1056 = vmul.f32 %v1055, %v451
          %v1057 = vadd.f32 %v1049, %v1056
          %s1058 = sld [smem:[#allocation6 + $0x306]]
          %v1059 = vstv %s1058
          %v1060 = vmul.f32 %v1059, %v463
          %v1061 = vadd.f32 %v1053, %v1060
          %s1062 = sld [smem:[#allocation6 + $0x386]]
          %v1063 = vstv %s1062
          %v1064 = vmul.f32 %v1063, %v475
          %v1065 = vadd.f32 %v1057, %v1064
          %s1066 = sld [smem:[#allocation6 + $0x406]]
          %v1067 = vstv %s1066
          %v1068 = vmul.f32 %v1067, %v487
          %v1069 = vadd.f32 %v1061, %v1068
          %s1070 = sld [smem:[#allocation6 + $0x486]]
          %v1071 = vstv %s1070
          %v1072 = vmul.f32 %v1071, %v499
          %v1073 = vadd.f32 %v1065, %v1072
          %s1074 = sld [smem:[#allocation6 + $0x506]]
          %v1075 = vstv %s1074
          %v1076 = vmul.f32 %v1075, %v511
          %v1077 = vadd.f32 %v1069, %v1076
          %s1078 = sld [smem:[#allocation6 + $0x586]]
          %v1079 = vstv %s1078
          %v1080 = vmul.f32 %v1079, %v523
          %v1081 = vadd.f32 %v1073, %v1080
          %s1082 = sld [smem:[#allocation6 + $0x606]]
          %v1083 = vstv %s1082
          %v1084 = vmul.f32 %v1083, %v535
          %v1085 = vadd.f32 %v1077, %v1084
          %s1086 = sld [smem:[#allocation6 + $0x686]]
          %v1087 = vstv %s1086
          %v1088 = vmul.f32 %v1087, %v547
          %v1089 = vadd.f32 %v1081, %v1088
          %s1090 = sld [smem:[#allocation6 + $0x706]]
          %v1091 = vstv %s1090
          %v1092 = vmul.f32 %v1091, %v559
          %v1093 = vadd.f32 %v1085, %v1092
          %s1094 = sld [smem:[#allocation6 + $0x786]]
          %v1095 = vstv %s1094
          %v1096 = vmul.f32 %v1095, %v571
          %v1097 = vadd.f32 %v1089, %v1096
          %v1098 = vadd.f32 %v1093, %v1097
          %v1099 = vmax.f32 %v1098, 0.0
          %vm1100 = vcmp.ge.f32.partialorder %v1099, 0.01
          %v1101 = vmul.f32 %v1099, %v1099
          %v1102 = vmul.f32 %v1101, 50.0
          %v1103 = vsel %vm1100, %v1099, %v1102
          %s1104 = sld [smem:[#allocation4 + $0x7]]
          %v1105 = vstv %s1104
          %v1106 = vmul.f32 %v1105, %v376
          %s1107 = sld [smem:[#allocation4 + $0x87]]
          %v1108 = vstv %s1107
          %v1109 = vmul.f32 %v1108, %v379
          %v1110 = vadd.f32 %v1106, %v1109
          %s1111 = sld [smem:[#allocation6 + $0x7]]
          %v1112 = vstv %s1111
          %v1113 = vmul.f32 %v1112, %v391
          %s1114 = sld [smem:[#allocation6 + $0x87]]
          %v1115 = vstv %s1114
          %v1116 = vmul.f32 %v1115, %v403
          %v1117 = vadd.f32 %v1113, %v1116
          %s1118 = sld [smem:[#allocation6 + $0x107]]
          %v1119 = vstv %s1118
          %v1120 = vmul.f32 %v1119, %v415
          %v1121 = vadd.f32 %v1110, %v1120
          %s1122 = sld [smem:[#allocation6 + $0x187]]
          %v1123 = vstv %s1122
          %v1124 = vmul.f32 %v1123, %v427
          %v1125 = vadd.f32 %v1117, %v1124
          %s1126 = sld [smem:[#allocation6 + $0x207]]
          %v1127 = vstv %s1126
          %v1128 = vmul.f32 %v1127, %v439
          %v1129 = vadd.f32 %v1121, %v1128
          %s1130 = sld [smem:[#allocation6 + $0x287]]
          %v1131 = vstv %s1130
          %v1132 = vmul.f32 %v1131, %v451
          %v1133 = vadd.f32 %v1125, %v1132
          %s1134 = sld [smem:[#allocation6 + $0x307]]
          %v1135 = vstv %s1134
          %v1136 = vmul.f32 %v1135, %v463
          %v1137 = vadd.f32 %v1129, %v1136
          %s1138 = sld [smem:[#allocation6 + $0x387]]
          %v1139 = vstv %s1138
          %v1140 = vmul.f32 %v1139, %v475
          %v1141 = vadd.f32 %v1133, %v1140
          %s1142 = sld [smem:[#allocation6 + $0x407]]
          %v1143 = vstv %s1142
          %v1144 = vmul.f32 %v1143, %v487
          %v1145 = vadd.f32 %v1137, %v1144
          %s1146 = sld [smem:[#allocation6 + $0x487]]
          %v1147 = vstv %s1146
          %v1148 = vmul.f32 %v1147, %v499
          %v1149 = vadd.f32 %v1141, %v1148
          %s1150 = sld [smem:[#allocation6 + $0x507]]
          %v1151 = vstv %s1150
          %v1152 = vmul.f32 %v1151, %v511
          %v1153 = vadd.f32 %v1145, %v1152
          %s1154 = sld [smem:[#allocation6 + $0x587]]
          %v1155 = vstv %s1154
          %v1156 = vmul.f32 %v1155, %v523
          %v1157 = vadd.f32 %v1149, %v1156
          %s1158 = sld [smem:[#allocation6 + $0x607]]
          %v1159 = vstv %s1158
          %v1160 = vmul.f32 %v1159, %v535
          %v1161 = vadd.f32 %v1153, %v1160
          %s1162 = sld [smem:[#allocation6 + $0x687]]
          %v1163 = vstv %s1162
          %v1164 = vmul.f32 %v1163, %v547
          %v1165 = vadd.f32 %v1157, %v1164
          %s1166 = sld [smem:[#allocation6 + $0x707]]
          %v1167 = vstv %s1166
          %v1168 = vmul.f32 %v1167, %v559
          %v1169 = vadd.f32 %v1161, %v1168
          %s1170 = sld [smem:[#allocation6 + $0x787]]
          %v1171 = vstv %s1170
          %v1172 = vmul.f32 %v1171, %v571
          %v1173 = vadd.f32 %v1165, %v1172
          %v1174 = vadd.f32 %v1169, %v1173
          %v1175 = vmax.f32 %v1174, 0.0
          %vm1176 = vcmp.ge.f32.partialorder %v1175, 0.01
          %v1177 = vmul.f32 %v1175, %v1175
          %v1178 = vmul.f32 %v1177, 50.0
          %v1179 = vsel %vm1176, %v1175, %v1178
          %s1180 = sld [smem:[#allocation4 + $0x8]]
          %v1181 = vstv %s1180
          %v1182 = vmul.f32 %v1181, %v376
          %s1183 = sld [smem:[#allocation4 + $0x88]]
          %v1184 = vstv %s1183
          %v1185 = vmul.f32 %v1184, %v379
          %v1186 = vadd.f32 %v1182, %v1185
          %s1187 = sld [smem:[#allocation6 + $0x8]]
          %v1188 = vstv %s1187
          %v1189 = vmul.f32 %v1188, %v391
          %s1190 = sld [smem:[#allocation6 + $0x88]]
          %v1191 = vstv %s1190
          %v1192 = vmul.f32 %v1191, %v403
          %v1193 = vadd.f32 %v1189, %v1192
          %s1194 = sld [smem:[#allocation6 + $0x108]]
          %v1195 = vstv %s1194
          %v1196 = vmul.f32 %v1195, %v415
          %v1197 = vadd.f32 %v1186, %v1196
          %s1198 = sld [smem:[#allocation6 + $0x188]]
          %v1199 = vstv %s1198
          %v1200 = vmul.f32 %v1199, %v427
          %v1201 = vadd.f32 %v1193, %v1200
          %s1202 = sld [smem:[#allocation6 + $0x208]]
          %v1203 = vstv %s1202
          %v1204 = vmul.f32 %v1203, %v439
          %v1205 = vadd.f32 %v1197, %v1204
          %s1206 = sld [smem:[#allocation6 + $0x288]]
          %v1207 = vstv %s1206
          %v1208 = vmul.f32 %v1207, %v451
          %v1209 = vadd.f32 %v1201, %v1208
          %s1210 = sld [smem:[#allocation6 + $0x308]]
          %v1211 = vstv %s1210
          %v1212 = vmul.f32 %v1211, %v463
          %v1213 = vadd.f32 %v1205, %v1212
          %s1214 = sld [smem:[#allocation6 + $0x388]]
          %v1215 = vstv %s1214
          %v1216 = vmul.f32 %v1215, %v475
          %v1217 = vadd.f32 %v1209, %v1216
          %s1218 = sld [smem:[#allocation6 + $0x408]]
          %v1219 = vstv %s1218
          %v1220 = vmul.f32 %v1219, %v487
          %v1221 = vadd.f32 %v1213, %v1220
          %s1222 = sld [smem:[#allocation6 + $0x488]]
          %v1223 = vstv %s1222
          %v1224 = vmul.f32 %v1223, %v499
          %v1225 = vadd.f32 %v1217, %v1224
          %s1226 = sld [smem:[#allocation6 + $0x508]]
          %v1227 = vstv %s1226
          %v1228 = vmul.f32 %v1227, %v511
          %v1229 = vadd.f32 %v1221, %v1228
          %s1230 = sld [smem:[#allocation6 + $0x588]]
          %v1231 = vstv %s1230
          %v1232 = vmul.f32 %v1231, %v523
          %v1233 = vadd.f32 %v1225, %v1232
          %s1234 = sld [smem:[#allocation6 + $0x608]]
          %v1235 = vstv %s1234
          %v1236 = vmul.f32 %v1235, %v535
          %v1237 = vadd.f32 %v1229, %v1236
          %s1238 = sld [smem:[#allocation6 + $0x688]]
          %v1239 = vstv %s1238
          %v1240 = vmul.f32 %v1239, %v547
          %v1241 = vadd.f32 %v1233, %v1240
          %s1242 = sld [smem:[#allocation6 + $0x708]]
          %v1243 = vstv %s1242
          %v1244 = vmul.f32 %v1243, %v559
          %v1245 = vadd.f32 %v1237, %v1244
          %s1246 = sld [smem:[#allocation6 + $0x788]]
          %v1247 = vstv %s1246
          %v1248 = vmul.f32 %v1247, %v571
          %v1249 = vadd.f32 %v1241, %v1248
          %v1250 = vadd.f32 %v1245, %v1249
          %v1251 = vmax.f32 %v1250, 0.0
          %vm1252 = vcmp.ge.f32.partialorder %v1251, 0.01
          %v1253 = vmul.f32 %v1251, %v1251
          %v1254 = vmul.f32 %v1253, 50.0
          %v1255 = vsel %vm1252, %v1251, %v1254
          %s1256 = sld [smem:[#allocation4 + $0x9]]
          %v1257 = vstv %s1256
          %v1258 = vmul.f32 %v1257, %v376
          %s1259 = sld [smem:[#allocation4 + $0x89]]
          %v1260 = vstv %s1259
          %v1261 = vmul.f32 %v1260, %v379
          %v1262 = vadd.f32 %v1258, %v1261
          %s1263 = sld [smem:[#allocation6 + $0x9]]
          %v1264 = vstv %s1263
          %v1265 = vmul.f32 %v1264, %v391
          %s1266 = sld [smem:[#allocation6 + $0x89]]
          %v1267 = vstv %s1266
          %v1268 = vmul.f32 %v1267, %v403
          %v1269 = vadd.f32 %v1265, %v1268
          %s1270 = sld [smem:[#allocation6 + $0x109]]
          %v1271 = vstv %s1270
          %v1272 = vmul.f32 %v1271, %v415
          %v1273 = vadd.f32 %v1262, %v1272
          %s1274 = sld [smem:[#allocation6 + $0x189]]
          %v1275 = vstv %s1274
          %v1276 = vmul.f32 %v1275, %v427
          %v1277 = vadd.f32 %v1269, %v1276
          %s1278 = sld [smem:[#allocation6 + $0x209]]
          %v1279 = vstv %s1278
          %v1280 = vmul.f32 %v1279, %v439
          %v1281 = vadd.f32 %v1273, %v1280
          %s1282 = sld [smem:[#allocation6 + $0x289]]
          %v1283 = vstv %s1282
          %v1284 = vmul.f32 %v1283, %v451
          %v1285 = vadd.f32 %v1277, %v1284
          %s1286 = sld [smem:[#allocation6 + $0x309]]
          %v1287 = vstv %s1286
          %v1288 = vmul.f32 %v1287, %v463
          %v1289 = vadd.f32 %v1281, %v1288
          %s1290 = sld [smem:[#allocation6 + $0x389]]
          %v1291 = vstv %s1290
          %v1292 = vmul.f32 %v1291, %v475
          %v1293 = vadd.f32 %v1285, %v1292
          %s1294 = sld [smem:[#allocation6 + $0x409]]
          %v1295 = vstv %s1294
          %v1296 = vmul.f32 %v1295, %v487
          %v1297 = vadd.f32 %v1289, %v1296
          %s1298 = sld [smem:[#allocation6 + $0x489]]
          %v1299 = vstv %s1298
          %v1300 = vmul.f32 %v1299, %v499
          %v1301 = vadd.f32 %v1293, %v1300
          %s1302 = sld [smem:[#allocation6 + $0x509]]
          %v1303 = vstv %s1302
          %v1304 = vmul.f32 %v1303, %v511
          %v1305 = vadd.f32 %v1297, %v1304
          %s1306 = sld [smem:[#allocation6 + $0x589]]
          %v1307 = vstv %s1306
          %v1308 = vmul.f32 %v1307, %v523
          %v1309 = vadd.f32 %v1301, %v1308
          %s1310 = sld [smem:[#allocation6 + $0x609]]
          %v1311 = vstv %s1310
          %v1312 = vmul.f32 %v1311, %v535
          %v1313 = vadd.f32 %v1305, %v1312
          %s1314 = sld [smem:[#allocation6 + $0x689]]
          %v1315 = vstv %s1314
          %v1316 = vmul.f32 %v1315, %v547
          %v1317 = vadd.f32 %v1309, %v1316
          %s1318 = sld [smem:[#allocation6 + $0x709]]
          %v1319 = vstv %s1318
          %v1320 = vmul.f32 %v1319, %v559
          %v1321 = vadd.f32 %v1313, %v1320
          %s1322 = sld [smem:[#allocation6 + $0x789]]
          %v1323 = vstv %s1322
          %v1324 = vmul.f32 %v1323, %v571
          %v1325 = vadd.f32 %v1317, %v1324
          %v1326 = vadd.f32 %v1321, %v1325
          %v1327 = vmax.f32 %v1326, 0.0
          %vm1328 = vcmp.ge.f32.partialorder %v1327, 0.01
          %v1329 = vmul.f32 %v1327, %v1327
          %v1330 = vmul.f32 %v1329, 50.0
          %v1331 = vsel %vm1328, %v1327, %v1330
          %s1332 = sld [smem:[#allocation4 + $0xa]]
          %v1333 = vstv %s1332
          %v1334 = vmul.f32 %v1333, %v376
          %s1335 = sld [smem:[#allocation4 + $0x8a]]
          %v1336 = vstv %s1335
          %v1337 = vmul.f32 %v1336, %v379
          %v1338 = vadd.f32 %v1334, %v1337
          %s1339 = sld [smem:[#allocation6 + $0xa]]
          %v1340 = vstv %s1339
          %v1341 = vmul.f32 %v1340, %v391
          %s1342 = sld [smem:[#allocation6 + $0x8a]]
          %v1343 = vstv %s1342
          %v1344 = vmul.f32 %v1343, %v403
          %v1345 = vadd.f32 %v1341, %v1344
          %s1346 = sld [smem:[#allocation6 + $0x10a]]
          %v1347 = vstv %s1346
          %v1348 = vmul.f32 %v1347, %v415
          %v1349 = vadd.f32 %v1338, %v1348
          %s1350 = sld [smem:[#allocation6 + $0x18a]]
          %v1351 = vstv %s1350
          %v1352 = vmul.f32 %v1351, %v427
          %v1353 = vadd.f32 %v1345, %v1352
          %s1354 = sld [smem:[#allocation6 + $0x20a]]
          %v1355 = vstv %s1354
          %v1356 = vmul.f32 %v1355, %v439
          %v1357 = vadd.f32 %v1349, %v1356
          %s1358 = sld [smem:[#allocation6 + $0x28a]]
          %v1359 = vstv %s1358
          %v1360 = vmul.f32 %v1359, %v451
          %v1361 = vadd.f32 %v1353, %v1360
          %s1362 = sld [smem:[#allocation6 + $0x30a]]
          %v1363 = vstv %s1362
          %v1364 = vmul.f32 %v1363, %v463
          %v1365 = vadd.f32 %v1357, %v1364
          %s1366 = sld [smem:[#allocation6 + $0x38a]]
          %v1367 = vstv %s1366
          %v1368 = vmul.f32 %v1367, %v475
          %v1369 = vadd.f32 %v1361, %v1368
          %s1370 = sld [smem:[#allocation6 + $0x40a]]
          %v1371 = vstv %s1370
          %v1372 = vmul.f32 %v1371, %v487
          %v1373 = vadd.f32 %v1365, %v1372
          %s1374 = sld [smem:[#allocation6 + $0x48a]]
          %v1375 = vstv %s1374
          %v1376 = vmul.f32 %v1375, %v499
          %v1377 = vadd.f32 %v1369, %v1376
          %s1378 = sld [smem:[#allocation6 + $0x50a]]
          %v1379 = vstv %s1378
          %v1380 = vmul.f32 %v1379, %v511
          %v1381 = vadd.f32 %v1373, %v1380
          %s1382 = sld [smem:[#allocation6 + $0x58a]]
          %v1383 = vstv %s1382
          %v1384 = vmul.f32 %v1383, %v523
          %v1385 = vadd.f32 %v1377, %v1384
          %s1386 = sld [smem:[#allocation6 + $0x60a]]
          %v1387 = vstv %s1386
          %v1388 = vmul.f32 %v1387, %v535
          %v1389 = vadd.f32 %v1381, %v1388
          %s1390 = sld [smem:[#allocation6 + $0x68a]]
          %v1391 = vstv %s1390
          %v1392 = vmul.f32 %v1391, %v547
          %v1393 = vadd.f32 %v1385, %v1392
          %s1394 = sld [smem:[#allocation6 + $0x70a]]
          %v1395 = vstv %s1394
          %v1396 = vmul.f32 %v1395, %v559
          %v1397 = vadd.f32 %v1389, %v1396
          %s1398 = sld [smem:[#allocation6 + $0x78a]]
          %v1399 = vstv %s1398
          %v1400 = vmul.f32 %v1399, %v571
          %v1401 = vadd.f32 %v1393, %v1400
          %v1402 = vadd.f32 %v1397, %v1401
          %v1403 = vmax.f32 %v1402, 0.0
          %vm1404 = vcmp.ge.f32.partialorder %v1403, 0.01
          %v1405 = vmul.f32 %v1403, %v1403
          %v1406 = vmul.f32 %v1405, 50.0
          %v1407 = vsel %vm1404, %v1403, %v1406
          %s1408 = sld [smem:[#allocation4 + $0xb]]
          %v1409 = vstv %s1408
          %v1410 = vmul.f32 %v1409, %v376
          %s1411 = sld [smem:[#allocation4 + $0x8b]]
          %v1412 = vstv %s1411
          %v1413 = vmul.f32 %v1412, %v379
          %v1414 = vadd.f32 %v1410, %v1413
          %s1415 = sld [smem:[#allocation6 + $0xb]]
          %v1416 = vstv %s1415
          %v1417 = vmul.f32 %v1416, %v391
          %s1418 = sld [smem:[#allocation6 + $0x8b]]
          %v1419 = vstv %s1418
          %v1420 = vmul.f32 %v1419, %v403
          %v1421 = vadd.f32 %v1417, %v1420
          %s1422 = sld [smem:[#allocation6 + $0x10b]]
          %v1423 = vstv %s1422
          %v1424 = vmul.f32 %v1423, %v415
          %v1425 = vadd.f32 %v1414, %v1424
          %s1426 = sld [smem:[#allocation6 + $0x18b]]
          %v1427 = vstv %s1426
          %v1428 = vmul.f32 %v1427, %v427
          %v1429 = vadd.f32 %v1421, %v1428
          %s1430 = sld [smem:[#allocation6 + $0x20b]]
          %v1431 = vstv %s1430
          %v1432 = vmul.f32 %v1431, %v439
          %v1433 = vadd.f32 %v1425, %v1432
          %s1434 = sld [smem:[#allocation6 + $0x28b]]
          %v1435 = vstv %s1434
          %v1436 = vmul.f32 %v1435, %v451
          %v1437 = vadd.f32 %v1429, %v1436
          %s1438 = sld [smem:[#allocation6 + $0x30b]]
          %v1439 = vstv %s1438
          %v1440 = vmul.f32 %v1439, %v463
          %v1441 = vadd.f32 %v1433, %v1440
          %s1442 = sld [smem:[#allocation6 + $0x38b]]
          %v1443 = vstv %s1442
          %v1444 = vmul.f32 %v1443, %v475
          %v1445 = vadd.f32 %v1437, %v1444
          %s1446 = sld [smem:[#allocation6 + $0x40b]]
          %v1447 = vstv %s1446
          %v1448 = vmul.f32 %v1447, %v487
          %v1449 = vadd.f32 %v1441, %v1448
          %s1450 = sld [smem:[#allocation6 + $0x48b]]
          %v1451 = vstv %s1450
          %v1452 = vmul.f32 %v1451, %v499
          %v1453 = vadd.f32 %v1445, %v1452
          %s1454 = sld [smem:[#allocation6 + $0x50b]]
          %v1455 = vstv %s1454
          %v1456 = vmul.f32 %v1455, %v511
          %v1457 = vadd.f32 %v1449, %v1456
          %s1458 = sld [smem:[#allocation6 + $0x58b]]
          %v1459 = vstv %s1458
          %v1460 = vmul.f32 %v1459, %v523
          %v1461 = vadd.f32 %v1453, %v1460
          %s1462 = sld [smem:[#allocation6 + $0x60b]]
          %v1463 = vstv %s1462
          %v1464 = vmul.f32 %v1463, %v535
          %v1465 = vadd.f32 %v1457, %v1464
          %s1466 = sld [smem:[#allocation6 + $0x68b]]
          %v1467 = vstv %s1466
          %v1468 = vmul.f32 %v1467, %v547
          %v1469 = vadd.f32 %v1461, %v1468
          %s1470 = sld [smem:[#allocation6 + $0x70b]]
          %v1471 = vstv %s1470
          %v1472 = vmul.f32 %v1471, %v559
          %v1473 = vadd.f32 %v1465, %v1472
          %s1474 = sld [smem:[#allocation6 + $0x78b]]
          %v1475 = vstv %s1474
          %v1476 = vmul.f32 %v1475, %v571
          %v1477 = vadd.f32 %v1469, %v1476
          %v1478 = vadd.f32 %v1473, %v1477
          %v1479 = vmax.f32 %v1478, 0.0
          %vm1480 = vcmp.ge.f32.partialorder %v1479, 0.01
          %v1481 = vmul.f32 %v1479, %v1479
          %v1482 = vmul.f32 %v1481, 50.0
          %v1483 = vsel %vm1480, %v1479, %v1482
          %s1484 = sld [smem:[#allocation4 + $0xc]]
          %v1485 = vstv %s1484
          %v1486 = vmul.f32 %v1485, %v376
          %s1487 = sld [smem:[#allocation4 + $0x8c]]
          %v1488 = vstv %s1487
          %v1489 = vmul.f32 %v1488, %v379
          %v1490 = vadd.f32 %v1486, %v1489
          %s1491 = sld [smem:[#allocation6 + $0xc]]
          %v1492 = vstv %s1491
          %v1493 = vmul.f32 %v1492, %v391
          %s1494 = sld [smem:[#allocation6 + $0x8c]]
          %v1495 = vstv %s1494
          %v1496 = vmul.f32 %v1495, %v403
          %v1497 = vadd.f32 %v1493, %v1496
          %s1498 = sld [smem:[#allocation6 + $0x10c]]
          %v1499 = vstv %s1498
          %v1500 = vmul.f32 %v1499, %v415
          %v1501 = vadd.f32 %v1490, %v1500
          %s1502 = sld [smem:[#allocation6 + $0x18c]]
          %v1503 = vstv %s1502
          %v1504 = vmul.f32 %v1503, %v427
          %v1505 = vadd.f32 %v1497, %v1504
          %s1506 = sld [smem:[#allocation6 + $0x20c]]
          %v1507 = vstv %s1506
          %v1508 = vmul.f32 %v1507, %v439
          %v1509 = vadd.f32 %v1501, %v1508
          %s1510 = sld [smem:[#allocation6 + $0x28c]]
          %v1511 = vstv %s1510
          %v1512 = vmul.f32 %v1511, %v451
          %v1513 = vadd.f32 %v1505, %v1512
          %s1514 = sld [smem:[#allocation6 + $0x30c]]
          %v1515 = vstv %s1514
          %v1516 = vmul.f32 %v1515, %v463
          %v1517 = vadd.f32 %v1509, %v1516
          %s1518 = sld [smem:[#allocation6 + $0x38c]]
          %v1519 = vstv %s1518
          %v1520 = vmul.f32 %v1519, %v475
          %v1521 = vadd.f32 %v1513, %v1520
          %s1522 = sld [smem:[#allocation6 + $0x40c]]
          %v1523 = vstv %s1522
          %v1524 = vmul.f32 %v1523, %v487
          %v1525 = vadd.f32 %v1517, %v1524
          %s1526 = sld [smem:[#allocation6 + $0x48c]]
          %v1527 = vstv %s1526
          %v1528 = vmul.f32 %v1527, %v499
          %v1529 = vadd.f32 %v1521, %v1528
          %s1530 = sld [smem:[#allocation6 + $0x50c]]
          %v1531 = vstv %s1530
          %v1532 = vmul.f32 %v1531, %v511
          %v1533 = vadd.f32 %v1525, %v1532
          %s1534 = sld [smem:[#allocation6 + $0x58c]]
          %v1535 = vstv %s1534
          %v1536 = vmul.f32 %v1535, %v523
          %v1537 = vadd.f32 %v1529, %v1536
          %s1538 = sld [smem:[#allocation6 + $0x60c]]
          %v1539 = vstv %s1538
          %v1540 = vmul.f32 %v1539, %v535
          %v1541 = vadd.f32 %v1533, %v1540
          %s1542 = sld [smem:[#allocation6 + $0x68c]]
          %v1543 = vstv %s1542
          %v1544 = vmul.f32 %v1543, %v547
          %v1545 = vadd.f32 %v1537, %v1544
          %s1546 = sld [smem:[#allocation6 + $0x70c]]
          %v1547 = vstv %s1546
          %v1548 = vmul.f32 %v1547, %v559
          %v1549 = vadd.f32 %v1541, %v1548
          %s1550 = sld [smem:[#allocation6 + $0x78c]]
          %v1551 = vstv %s1550
          %v1552 = vmul.f32 %v1551, %v571
          %v1553 = vadd.f32 %v1545, %v1552
          %v1554 = vadd.f32 %v1549, %v1553
          %v1555 = vmax.f32 %v1554, 0.0
          %vm1556 = vcmp.ge.f32.partialorder %v1555, 0.01
          %v1557 = vmul.f32 %v1555, %v1555
          %v1558 = vmul.f32 %v1557, 50.0
          %v1559 = vsel %vm1556, %v1555, %v1558
          %s1560 = sld [smem:[#allocation4 + $0xd]]
          %v1561 = vstv %s1560
          %v1562 = vmul.f32 %v1561, %v376
          %s1563 = sld [smem:[#allocation4 + $0x8d]]
          %v1564 = vstv %s1563
          %v1565 = vmul.f32 %v1564, %v379
          %v1566 = vadd.f32 %v1562, %v1565
          %s1567 = sld [smem:[#allocation6 + $0xd]]
          %v1568 = vstv %s1567
          %v1569 = vmul.f32 %v1568, %v391
          %s1570 = sld [smem:[#allocation6 + $0x8d]]
          %v1571 = vstv %s1570
          %v1572 = vmul.f32 %v1571, %v403
          %v1573 = vadd.f32 %v1569, %v1572
          %s1574 = sld [smem:[#allocation6 + $0x10d]]
          %v1575 = vstv %s1574
          %v1576 = vmul.f32 %v1575, %v415
          %v1577 = vadd.f32 %v1566, %v1576
          %s1578 = sld [smem:[#allocation6 + $0x18d]]
          %v1579 = vstv %s1578
          %v1580 = vmul.f32 %v1579, %v427
          %v1581 = vadd.f32 %v1573, %v1580
          %s1582 = sld [smem:[#allocation6 + $0x20d]]
          %v1583 = vstv %s1582
          %v1584 = vmul.f32 %v1583, %v439
          %v1585 = vadd.f32 %v1577, %v1584
          %s1586 = sld [smem:[#allocation6 + $0x28d]]
          %v1587 = vstv %s1586
          %v1588 = vmul.f32 %v1587, %v451
          %v1589 = vadd.f32 %v1581, %v1588
          %s1590 = sld [smem:[#allocation6 + $0x30d]]
          %v1591 = vstv %s1590
          %v1592 = vmul.f32 %v1591, %v463
          %v1593 = vadd.f32 %v1585, %v1592
          %s1594 = sld [smem:[#allocation6 + $0x38d]]
          %v1595 = vstv %s1594
          %v1596 = vmul.f32 %v1595, %v475
          %v1597 = vadd.f32 %v1589, %v1596
          %s1598 = sld [smem:[#allocation6 + $0x40d]]
          %v1599 = vstv %s1598
          %v1600 = vmul.f32 %v1599, %v487
          %v1601 = vadd.f32 %v1593, %v1600
          %s1602 = sld [smem:[#allocation6 + $0x48d]]
          %v1603 = vstv %s1602
          %v1604 = vmul.f32 %v1603, %v499
          %v1605 = vadd.f32 %v1597, %v1604
          %s1606 = sld [smem:[#allocation6 + $0x50d]]
          %v1607 = vstv %s1606
          %v1608 = vmul.f32 %v1607, %v511
          %v1609 = vadd.f32 %v1601, %v1608
          %s1610 = sld [smem:[#allocation6 + $0x58d]]
          %v1611 = vstv %s1610
          %v1612 = vmul.f32 %v1611, %v523
          %v1613 = vadd.f32 %v1605, %v1612
          %s1614 = sld [smem:[#allocation6 + $0x60d]]
          %v1615 = vstv %s1614
          %v1616 = vmul.f32 %v1615, %v535
          %v1617 = vadd.f32 %v1609, %v1616
          %s1618 = sld [smem:[#allocation6 + $0x68d]]
          %v1619 = vstv %s1618
          %v1620 = vmul.f32 %v1619, %v547
          %v1621 = vadd.f32 %v1613, %v1620
          %s1622 = sld [smem:[#allocation6 + $0x70d]]
          %v1623 = vstv %s1622
          %v1624 = vmul.f32 %v1623, %v559
          %v1625 = vadd.f32 %v1617, %v1624
          %s1626 = sld [smem:[#allocation6 + $0x78d]]
          %v1627 = vstv %s1626
          %v1628 = vmul.f32 %v1627, %v571
          %v1629 = vadd.f32 %v1621, %v1628
          %v1630 = vadd.f32 %v1625, %v1629
          %v1631 = vmax.f32 %v1630, 0.0
          %vm1632 = vcmp.ge.f32.partialorder %v1631, 0.01
          %v1633 = vmul.f32 %v1631, %v1631
          %v1634 = vmul.f32 %v1633, 50.0
          %v1635 = vsel %vm1632, %v1631, %v1634
          %s1636 = sld [smem:[#allocation4 + $0xe]]
          %v1637 = vstv %s1636
          %v1638 = vmul.f32 %v1637, %v376
          %s1639 = sld [smem:[#allocation4 + $0x8e]]
          %v1640 = vstv %s1639
          %v1641 = vmul.f32 %v1640, %v379
          %v1642 = vadd.f32 %v1638, %v1641
          %s1643 = sld [smem:[#allocation6 + $0xe]]
          %v1644 = vstv %s1643
          %v1645 = vmul.f32 %v1644, %v391
          %s1646 = sld [smem:[#allocation6 + $0x8e]]
          %v1647 = vstv %s1646
          %v1648 = vmul.f32 %v1647, %v403
          %v1649 = vadd.f32 %v1645, %v1648
          %s1650 = sld [smem:[#allocation6 + $0x10e]]
          %v1651 = vstv %s1650
          %v1652 = vmul.f32 %v1651, %v415
          %v1653 = vadd.f32 %v1642, %v1652
          %s1654 = sld [smem:[#allocation6 + $0x18e]]
          %v1655 = vstv %s1654
          %v1656 = vmul.f32 %v1655, %v427
          %v1657 = vadd.f32 %v1649, %v1656
          %s1658 = sld [smem:[#allocation6 + $0x20e]]
          %v1659 = vstv %s1658
          %v1660 = vmul.f32 %v1659, %v439
          %v1661 = vadd.f32 %v1653, %v1660
          %s1662 = sld [smem:[#allocation6 + $0x28e]]
          %v1663 = vstv %s1662
          %v1664 = vmul.f32 %v1663, %v451
          %v1665 = vadd.f32 %v1657, %v1664
          %s1666 = sld [smem:[#allocation6 + $0x30e]]
          %v1667 = vstv %s1666
          %v1668 = vmul.f32 %v1667, %v463
          %v1669 = vadd.f32 %v1661, %v1668
          %s1670 = sld [smem:[#allocation6 + $0x38e]]
          %v1671 = vstv %s1670
          %v1672 = vmul.f32 %v1671, %v475
          %v1673 = vadd.f32 %v1665, %v1672
          %s1674 = sld [smem:[#allocation6 + $0x40e]]
          %v1675 = vstv %s1674
          %v1676 = vmul.f32 %v1675, %v487
          %v1677 = vadd.f32 %v1669, %v1676
          %s1678 = sld [smem:[#allocation6 + $0x48e]]
          %v1679 = vstv %s1678
          %v1680 = vmul.f32 %v1679, %v499
          %v1681 = vadd.f32 %v1673, %v1680
          %s1682 = sld [smem:[#allocation6 + $0x50e]]
          %v1683 = vstv %s1682
          %v1684 = vmul.f32 %v1683, %v511
          %v1685 = vadd.f32 %v1677, %v1684
          %s1686 = sld [smem:[#allocation6 + $0x58e]]
          %v1687 = vstv %s1686
          %v1688 = vmul.f32 %v1687, %v523
          %v1689 = vadd.f32 %v1681, %v1688
          %s1690 = sld [smem:[#allocation6 + $0x60e]]
          %v1691 = vstv %s1690
          %v1692 = vmul.f32 %v1691, %v535
          %v1693 = vadd.f32 %v1685, %v1692
          %s1694 = sld [smem:[#allocation6 + $0x68e]]
          %v1695 = vstv %s1694
          %v1696 = vmul.f32 %v1695, %v547
          %v1697 = vadd.f32 %v1689, %v1696
          %s1698 = sld [smem:[#allocation6 + $0x70e]]
          %v1699 = vstv %s1698
          %v1700 = vmul.f32 %v1699, %v559
          %v1701 = vadd.f32 %v1693, %v1700
          %s1702 = sld [smem:[#allocation6 + $0x78e]]
          %v1703 = vstv %s1702
          %v1704 = vmul.f32 %v1703, %v571
          %v1705 = vadd.f32 %v1697, %v1704
          %v1706 = vadd.f32 %v1701, %v1705
          %v1707 = vmax.f32 %v1706, 0.0
          %vm1708 = vcmp.ge.f32.partialorder %v1707, 0.01
          %v1709 = vmul.f32 %v1707, %v1707
          %v1710 = vmul.f32 %v1709, 50.0
          %v1711 = vsel %vm1708, %v1707, %v1710
          %s1712 = sld [smem:[#allocation4 + $0xf]]
          %v1713 = vstv %s1712
          %v1714 = vmul.f32 %v1713, %v376
          %s1715 = sld [smem:[#allocation4 + $0x8f]]
          %v1716 = vstv %s1715
          %v1717 = vmul.f32 %v1716, %v379
          %v1718 = vadd.f32 %v1714, %v1717
          %s1719 = sld [smem:[#allocation6 + $0xf]]
          %v1720 = vstv %s1719
          %v1721 = vmul.f32 %v1720, %v391
          %s1722 = sld [smem:[#allocation6 + $0x8f]]
          %v1723 = vstv %s1722
          %v1724 = vmul.f32 %v1723, %v403
          %v1725 = vadd.f32 %v1721, %v1724
          %s1726 = sld [smem:[#allocation6 + $0x10f]]
          %v1727 = vstv %s1726
          %v1728 = vmul.f32 %v1727, %v415
          %v1729 = vadd.f32 %v1718, %v1728
          %s1730 = sld [smem:[#allocation6 + $0x18f]]
          %v1731 = vstv %s1730
          %v1732 = vmul.f32 %v1731, %v427
          %v1733 = vadd.f32 %v1725, %v1732
          %s1734 = sld [smem:[#allocation6 + $0x20f]]
          %v1735 = vstv %s1734
          %v1736 = vmul.f32 %v1735, %v439
          %v1737 = vadd.f32 %v1729, %v1736
          %s1738 = sld [smem:[#allocation6 + $0x28f]]
          %v1739 = vstv %s1738
          %v1740 = vmul.f32 %v1739, %v451
          %v1741 = vadd.f32 %v1733, %v1740
          %s1742 = sld [smem:[#allocation6 + $0x30f]]
          %v1743 = vstv %s1742
          %v1744 = vmul.f32 %v1743, %v463
          %v1745 = vadd.f32 %v1737, %v1744
          %s1746 = sld [smem:[#allocation6 + $0x38f]]
          %v1747 = vstv %s1746
          %v1748 = vmul.f32 %v1747, %v475
          %v1749 = vadd.f32 %v1741, %v1748
          %s1750 = sld [smem:[#allocation6 + $0x40f]]
          %v1751 = vstv %s1750
          %v1752 = vmul.f32 %v1751, %v487
          %v1753 = vadd.f32 %v1745, %v1752
          %s1754 = sld [smem:[#allocation6 + $0x48f]]
          %v1755 = vstv %s1754
          %v1756 = vmul.f32 %v1755, %v499
          %v1757 = vadd.f32 %v1749, %v1756
          %s1758 = sld [smem:[#allocation6 + $0x50f]]
          %v1759 = vstv %s1758
          %v1760 = vmul.f32 %v1759, %v511
          %v1761 = vadd.f32 %v1753, %v1760
          %s1762 = sld [smem:[#allocation6 + $0x58f]]
          %v1763 = vstv %s1762
          %v1764 = vmul.f32 %v1763, %v523
          %v1765 = vadd.f32 %v1757, %v1764
          %s1766 = sld [smem:[#allocation6 + $0x60f]]
          %v1767 = vstv %s1766
          %v1768 = vmul.f32 %v1767, %v535
          %v1769 = vadd.f32 %v1761, %v1768
          %s1770 = sld [smem:[#allocation6 + $0x68f]]
          %v1771 = vstv %s1770
          %v1772 = vmul.f32 %v1771, %v547
          %v1773 = vadd.f32 %v1765, %v1772
          %s1774 = sld [smem:[#allocation6 + $0x70f]]
          %v1775 = vstv %s1774
          %v1776 = vmul.f32 %v1775, %v559
          %v1777 = vadd.f32 %v1769, %v1776
          %s1778 = sld [smem:[#allocation6 + $0x78f]]
          %v1779 = vstv %s1778
          %v1780 = vmul.f32 %v1779, %v571
          %v1781 = vadd.f32 %v1773, %v1780
          %v1782 = vadd.f32 %v1777, %v1781
          %v1783 = vmax.f32 %v1782, 0.0
          %vm1784 = vcmp.ge.f32.partialorder %v1783, 0.01
          %v1785 = vmul.f32 %v1783, %v1783
          %v1786 = vmul.f32 %v1785, 50.0
          %v1787 = vsel %vm1784, %v1783, %v1786
          %s1788 = sld [smem:[#allocation9]]
          %v1789 = vstv %s1788
          %v1790 = vmul.f32 %v1789, %v376
          %s1791 = sld [smem:[#allocation9 + $0x1]]
          %v1792 = vstv %s1791
          %v1793 = vmul.f32 %v1792, %v379
          %v1794 = vadd.f32 %v1790, %v1793
          %s1795 = sld [smem:[#allocation7]]
          %v1796 = vstv %s1795
          %v1797 = vmul.f32 %v1796, %v647
          %s1798 = sld [smem:[#allocation7 + $0x1]]
          %v1799 = vstv %s1798
          %v1800 = vmul.f32 %v1799, %v723
          %v1801 = vadd.f32 %v1797, %v1800
          %s1802 = sld [smem:[#allocation7 + $0x2]]
          %v1803 = vstv %s1802
          %v1804 = vmul.f32 %v1803, %v799
          %v1805 = vadd.f32 %v1794, %v1804
          %s1806 = sld [smem:[#allocation7 + $0x3]]
          %v1807 = vstv %s1806
          %v1808 = vmul.f32 %v1807, %v875
          %v1809 = vadd.f32 %v1801, %v1808
          %s1810 = sld [smem:[#allocation7 + $0x4]]
          %v1811 = vstv %s1810
          %v1812 = vmul.f32 %v1811, %v951
          %v1813 = vadd.f32 %v1805, %v1812
          %s1814 = sld [smem:[#allocation7 + $0x5]]
          %v1815 = vstv %s1814
          %v1816 = vmul.f32 %v1815, %v1027
          %v1817 = vadd.f32 %v1809, %v1816
          %s1818 = sld [smem:[#allocation7 + $0x6]]
          %v1819 = vstv %s1818
          %v1820 = vmul.f32 %v1819, %v1103
          %v1821 = vadd.f32 %v1813, %v1820
          %s1822 = sld [smem:[#allocation7 + $0x7]]
          %v1823 = vstv %s1822
          %v1824 = vmul.f32 %v1823, %v1179
          %v1825 = vadd.f32 %v1817, %v1824
          %s1826 = sld [smem:[#allocation7 + $0x8]]
          %v1827 = vstv %s1826
          %v1828 = vmul.f32 %v1827, %v1255
          %v1829 = vadd.f32 %v1821, %v1828
          %s1830 = sld [smem:[#allocation7 + $0x9]]
          %v1831 = vstv %s1830
          %v1832 = vmul.f32 %v1831, %v1331
          %v1833 = vadd.f32 %v1825, %v1832
          %s1834 = sld [smem:[#allocation7 + $0xa]]
          %v1835 = vstv %s1834
          %v1836 = vmul.f32 %v1835, %v1407
          %v1837 = vadd.f32 %v1829, %v1836
          %s1838 = sld [smem:[#allocation7 + $0xb]]
          %v1839 = vstv %s1838
          %v1840 = vmul.f32 %v1839, %v1483
          %v1841 = vadd.f32 %v1833, %v1840
          %s1842 = sld [smem:[#allocation7 + $0xc]]
          %v1843 = vstv %s1842
          %v1844 = vmul.f32 %v1843, %v1559
          %v1845 = vadd.f32 %v1837, %v1844
          %s1846 = sld [smem:[#allocation7 + $0xd]]
          %v1847 = vstv %s1846
          %v1848 = vmul.f32 %v1847, %v1635
          %v1849 = vadd.f32 %v1841, %v1848
          %s1850 = sld [smem:[#allocation7 + $0xe]]
          %v1851 = vstv %s1850
          %v1852 = vmul.f32 %v1851, %v1711
          %v1853 = vadd.f32 %v1845, %v1852
          %s1854 = sld [smem:[#allocation7 + $0xf]]
          %v1855 = vstv %s1854
          %v1856 = vmul.f32 %v1855, %v1787
          %v1857 = vadd.f32 %v1849, %v1856
          %v1858 = vadd.f32 %v1853, %v1857
          %v1859 = vmax.f32 %v1858, 0.0
          %vm1860 = vcmp.ge.f32.partialorder %v1859, 0.01
          %v1861 = vmul.f32 %v1859, %v1859
          %v1862 = vmul.f32 %v1861, 50.0
          %v1863 = vsel %vm1860, %v1859, %v1862
          %s1864 = scalar_lea.vmem %s366, %s374
          %1865 = vst [vmem:[%s1864] sm:$0xff] %v1863
        $region107: #{_lambda_.1} parent=77 // loop_footer
          %s373 = sadd.s32 1, %s369
        $region108: #{_lambda_.1} parent=77 // loop_footer_branch
          %368 = sbr.rel target = $region104
        $region109: #{_lambda_.1} parent=77 // loop_exit
          _
        %s1866 = smul.u32 2, %s20
        %p1867 = scmp.lt.s32.totalorder %s1866, 3
        %s1868 = scalar_select %p1867, %s1866, 3
        %s1869 = smul.addr %s1868, 8
        %s1870 = scalar_lea.vmem %s6, %s1869
        // Predicated region
        $region110: #{_lambda_.1} parent=77 // pred_check
          %p1871 = pneg %p169
        $region111: #{_lambda_.1} parent=77 // pred_check_branch
          %1873 = sbr.rel (%p1871) target = $region113
        $region112: #{_lambda_.1} parent=77 // pred_region
          %s1874 = smul.u32 2, %s20
        $region113: #{_lambda_.1} parent=77 // pred_fallthru
          _
      $region78: #{_lambda_.1} parent=5 // pred_fallthru
        _
      %p1875 = scmp.le.s32.totalorder 2, %s15
      // Predicated region
      $region114: #{_lambda_.1} parent=5 // pred_check
        %p1876 = pneg %p1875
      $region115: #{_lambda_.1} parent=5 // pred_check_branch
        %1878 = sbr.rel (%p1876) target = $region117
      $region116: #{_lambda_.1} parent=5 // pred_region
        %s1879 = ssub.s32 %s15, 2
        // Predicated region
        $region118: #{_lambda_.1} parent=116 // pred_check
          %p1880 = pneg %p175
        $region119: #{_lambda_.1} parent=116 // pred_check_branch
          %1882 = sbr.rel (%p1880) target = $region121
        $region120: #{_lambda_.1} parent=116 // pred_region
          %s1883 = smul.u32 2, %s21
          %p1884 = scmp.lt.s32.totalorder %s1883, 3
          %s1885 = scalar_select %p1884, %s1883, 3
          %s1886 = smul.addr %s1885, 8
          %s1887 = scalar_lea.vmem %s6, %s1886
        $region121: #{_lambda_.1} parent=116 // pred_fallthru
          _
      $region117: #{_lambda_.1} parent=5 // pred_fallthru
        _
    $region6: #{_lambda_.1} parent=1 // loop_footer
      %s19 = sadd.s32 1, %s15
    $region7: #{_lambda_.1} parent=1 // loop_footer_branch
      %14 = sbr.rel target = $region3
    $region8: #{_lambda_.1} parent=1 // loop_exit
      _
    %1888 = vsyncpa [#allocation3], 1
    %s1889 = scalar_lea.sflag [#allocation3], 1
    %1890 = vsyncpa %s1889, 1
    %1891 = vsyncpa [#allocation5], 1
    %1892 = vsyncpa [#allocation8], 1

</llo_original>
